<compile_context>
chip_gen: v7x
topology: tpu7x:2x2x1
jax: 0.10.0
libtpu: 0.0.40
codegen_flags: <defaults>
</compile_context>

<pallas_src>
import functools

import jax
import jax.numpy as jnp
from jax.experimental import pallas as pl
from jax.experimental.pallas import tpu as pltpu

EPS = 1e-5  # torch.nn.LayerNorm default eps


# ----------------------------- in-kernel helpers -----------------------------

def _layer_norm(x, g, b):
    mu = jnp.mean(x, axis=-1, keepdims=True)
    var = jnp.mean((x - mu) ** 2, axis=-1, keepdims=True)
    return (x - mu) * jax.lax.rsqrt(var + EPS) * g + b


def _gelu(x):
    # TODO(synk): PyTorch F.gelu default is the exact erf-GELU; the tanh
    # approximation is used because erf lowering in Mosaic is not guaranteed
    # across jax versions (difference ~1e-3).
    c = 0.7978845608028654  # sqrt(2/pi)
    return 0.5 * x * (1.0 + jnp.tanh(c * (x + 0.044715 * x * x * x)))


# ------------------------------ fused ViT kernel ------------------------------

def _vit_fused_kernel(patches_ref, conv_w_ref, conv_b_ref, cls_row_ref,
                      pos_tok_ref, pn_g_ref, pn_b_ref, wqkv_ref, wproj_ref,
                      bproj_ref, n1_g_ref, n1_b_ref, w1_ref, b1_ref, w2_ref,
                      b2_ref, hg_ref, hb_ref, fcw_ref, fcb_ref,
                      o_ref, x_scr,
                      *, num_heads, num_layers, block_b, n_tokens, n_pad):
    f32 = jnp.float32
    bf16 = jnp.bfloat16

    BT = block_b
    P = pos_tok_ref.shape[0]
    D = conv_w_ref.shape[1]
    H = num_heads
    dh = D // H
    M = BT * n_pad                        # rows processed per grid step

    # --- Tokenizer: Conv2d(kernel=stride=K, pad=0) == one big patch matmul ---
    tok = (jnp.dot(patches_ref[...], conv_w_ref[...],
                   preferred_element_type=f32)
           + conv_b_ref[...])                                   # (BT*P, D) f32

    # --- assemble tokens (class token + positional emb) into VMEM scratch ---
    # (no sublane concat; padded rows are zeroed so padded K/V stay finite)
    pad_rows = n_pad - 1 - P
    zeros_pad = jnp.zeros((pad_rows, D), f32) if pad_rows > 0 else None
    for b in range(BT):
        x_scr[b, 0:1, :] = cls_row_ref[...]                     # cls + pos[0]
        x_scr[b, 1:1 + P, :] = tok[b * P:(b + 1) * P, :] + pos_tok_ref[...]
        if pad_rows > 0:
            x_scr[b, 1 + P:, :] = zeros_pad

    x = x_scr[...].reshape(M, D)          # tile-aligned reshape (n_pad == 8k)

    # key-padding mask (hoisted out of the layer loop)
    if n_pad > n_tokens:
        col = jax.lax.broadcasted_iota(jnp.int32, (n_pad, n_pad), 1)
        neg_mask = jnp.where(col < n_tokens, 0.0, -1e30).astype(f32)
    else:
        neg_mask = None

    x_cls = None
    for l in range(num_layers):           # static unroll, static weight indices
        # ----- pre-norm multi-head self-attention (fused lane-dense QKV) -----
        xn = _layer_norm(x, pn_g_ref[l], pn_b_ref[l])           # (M, D) f32
        qkv = jnp.dot(xn.astype(bf16), wqkv_ref[l],
                      preferred_element_type=f32)               # (M, 3D) f32
        qkv_b = qkv.astype(bf16)          # 1/sqrt(dh) pre-folded into Q weights

        ctx_cols = []
        for h in range(H):
            qh = qkv_b[:, h * dh:(h + 1) * dh].reshape(BT, n_pad, dh)
            kh = qkv_b[:, D + h * dh:D + (h + 1) * dh].reshape(BT, n_pad, dh)
            vh = qkv_b[:, 2 * D + h * dh:2 * D + (h + 1) * dh].reshape(
                BT, n_pad, dh)

            s = jnp.einsum('bnd,bmd->bnm', qh, kh,
                           preferred_element_type=f32)          # (BT,Np,Np) f32
            if neg_mask is not None:
                s = s + neg_mask
            s = s - jnp.max(s, axis=-1, keepdims=True)
            e = jnp.exp(s)
            p = e * pl.reciprocal(jnp.sum(e, axis=-1, keepdims=True),
                                  approx=True)

            ctx_h = jnp.einsum('bnm,bmd->bnd', p.astype(bf16), vh,
                               preferred_element_type=f32)      # (BT, Np, dh)
            ctx_cols.append(ctx_h.reshape(M, dh))
        ctx = jnp.concatenate(ctx_cols, axis=-1)                # (M, D)

        attn = (jnp.dot(ctx.astype(bf16), wproj_ref[l],
                        preferred_element_type=f32)
                + bproj_ref[l])                                 # (M, D)
        y = x + attn                                            # residual

        if l < num_layers - 1:
            # norm1 output is the new residual base (matches CCT encoder block)
            src = _layer_norm(y, n1_g_ref[l], n1_b_ref[l])
            h1 = _gelu(jnp.dot(src.astype(bf16), w1_ref[l],
                               preferred_element_type=f32) + b1_ref[l])
            h2 = jnp.dot(h1.astype(bf16), w2_ref[l],
                         preferred_element_type=f32) + b2_ref[l]
            x = src + h2
        else:
            # Last layer: only the class-token rows feed the head -> run
            # norm1 + MLP on them only.
            y3 = y.reshape(BT, n_pad, D)
            y_cls = jnp.concatenate([y3[b, 0:1, :] for b in range(BT)], axis=0)
            src = _layer_norm(y_cls, n1_g_ref[l], n1_b_ref[l])  # (BT, D)
            h1 = _gelu(jnp.dot(src.astype(bf16), w1_ref[l],
                               preferred_element_type=f32) + b1_ref[l])
            h2 = jnp.dot(h1.astype(bf16), w2_ref[l],
                         preferred_element_type=f32) + b2_ref[l]
            x_cls = src + h2                                    # (BT, D)

    # --- final LayerNorm + linear head (lane-padded to 128 classes) ---
    cls_n = _layer_norm(x_cls, hg_ref[...], hb_ref[...])        # (BT, D)
    o_ref[...] = (jnp.dot(cls_n.astype(bf16), fcw_ref[...],
                          preferred_element_type=f32)
                  + fcb_ref[...])                               # (BT, NC_pad)


# ------------------------------- model assembly ------------------------------

def init_params(key, *, img=16, patch=8, cin=4, dim=32, heads=4, layers=2,
                mlp_ratio=4.0, num_classes=10):
    assert img % patch == 0 and dim % heads == 0
    n_patches = (img // patch) ** 2
    seq = n_patches + 1                    # +1 class token (seq_pool=False)
    ff = int(dim * mlp_ratio)
    dh = dim // heads
    nc_pad = -(-num_classes // 128) * 128  # lane-dense head output

    keys = iter(jax.random.split(key, 8))
    nrm = lambda shape, std=0.02: std * jax.random.normal(next(keys), shape,
                                                          jnp.float32)
    bf16 = jnp.bfloat16

    pos = nrm((seq, dim), std=0.2)                       # learnable pos emb
    class_emb = jnp.zeros((1, dim), jnp.float32)         # torch init: zeros

    # qkv Linear(dim, 3*dim, bias=False): torch W (3D, D) used as x @ W.T, so
    # store W.T = (D, 3D) with columns [q | k | v]; fold the 1/sqrt(dh)
    # attention scale into the Q columns.
    wqkv = nrm((layers, dim, 3 * dim))
    wqkv = wqkv.at[:, :, :dim].multiply(float(dh) ** -0.5)

    # head Linear(dim, num_classes): W.T = (D, NC), zero-padded to 128 lanes
    fc_w = jnp.zeros((dim, nc_pad), jnp.float32).at[:, :num_classes].set(
        nrm((dim, num_classes)))

    return {
        "patch": patch, "num_heads": heads, "num_layers": layers,
        "num_classes": num_classes,
        # Conv2d weight (D, C, K, K) flattened (C,K,K)-major -> (C*K*K, D)
        "conv_w": nrm((cin * patch * patch, dim)).astype(bf16),
        "conv_b": jnp.zeros((1, dim), jnp.float32),
        "cls_row": class_emb + pos[0:1],          # class token + its pos emb
        "pos_tok": pos[1:],                       # (P, D) pos emb for patches
        # --- per-layer weight stacks (leading layer axis) ---
        "pn_g": jnp.ones((layers, 1, dim), jnp.float32),
        "pn_b": jnp.zeros((layers, 1, dim), jnp.float32),
        "wqkv": wqkv.astype(bf16),                # (L, D, 3D), Q pre-scaled
        "wproj": nrm((layers, dim, dim)).astype(bf16),
        "bproj": jnp.zeros((layers, 1, dim), jnp.float32),
        "n1_g": jnp.ones((layers, 1, dim), jnp.float32),
        "n1_b": jnp.zeros((layers, 1, dim), jnp.float32),
        "w1": nrm((layers, dim, ff)).astype(bf16),
        "b1": jnp.zeros((layers, 1, ff), jnp.float32),
        "w2": nrm((layers, ff, dim)).astype(bf16),
        "b2": jnp.zeros((layers, 1, dim), jnp.float32),
        "head_ln_g": jnp.ones((1, dim), jnp.float32),
        "head_ln_b": jnp.zeros((1, dim), jnp.float32),
        "fc_w": fc_w.astype(bf16),                # (D, NC_pad)
        "fc_b": jnp.zeros((1, nc_pad), jnp.float32),
    }


def vit_lite_forward(x, params, *, block_b=8):
    """x: (B, C, H, W) float32, NCHW like the PyTorch module."""
    B, C, Himg, Wimg = x.shape
    K = params["patch"]
    Ph, Pw = Himg // K, Wimg // K
    P = Ph * Pw
    D = params["conv_w"].shape[1]
    NC = params["num_classes"]
    NC_pad = params["fc_w"].shape[1]
    L = params["num_layers"]
    heads = params["num_heads"]
    N = P + 1
    N_pad = -(-N // 8) * 8                 # pad sequence to a sublane multiple

    # One grid step processes BT images (bigger DMAs, better MXU row fill).
    if B <= block_b:
        BT = B                              # single step, full-dim blocks
    else:
        assert block_b % 8 == 0, "block_b must be a multiple of 8 when B > block_b"
        BT = block_b
    n_blocks = -(-B // BT)
    Bpad = n_blocks * BT

    # Non-overlapping patch extraction (glue); feature dim (C,K,K)-major to
    # match the flattened Conv2d weight.  Flattened to (Bpad*P, C*K*K) so the
    # kernel's tokenizer matmul needs no in-kernel reshape.
    patches = (x.reshape(B, C, Ph, K, Pw, K)
                 .transpose(0, 2, 4, 1, 3, 5)
                 .reshape(B * P, C * K * K))
    if Bpad != B:
        patches = jnp.pad(patches, ((0, (Bpad - B) * P), (0, 0)))
    patches = patches.astype(jnp.bfloat16)

    weights = [params[k] for k in (
        "conv_w", "conv_b", "cls_row", "pos_tok", "pn_g", "pn_b", "wqkv",
        "wproj", "bproj", "n1_g", "n1_b", "w1", "b1", "w2", "b2",
        "head_ln_g", "head_ln_b", "fc_w", "fc_b")]

    def full_spec(a):
        return pl.BlockSpec(a.shape, lambda i, nd=a.ndim: (0,) * nd)

    out = pl.pallas_call(
        functools.partial(_vit_fused_kernel, num_heads=heads, num_layers=L,
                          block_b=BT, n_tokens=N, n_pad=N_pad),
        out_shape=jax.ShapeDtypeStruct((Bpad, NC_pad), jnp.float32),
        grid=(n_blocks,),
        in_specs=[pl.BlockSpec((BT * P, C * K * K), lambda i: (i, 0))]
                 + [full_spec(w) for w in weights],
        out_specs=pl.BlockSpec((BT, NC_pad), lambda i: (i, 0)),
        scratch_shapes=[pltpu.VMEM((BT, N_pad, D), jnp.float32)],
        compiler_params=pltpu.CompilerParams(
            dimension_semantics=("parallel",),
            vmem_limit_bytes=32 * 1024 * 1024),
    )(patches, *weights)
    return out[:B, :NC]


if __name__ == "__main__":
    key = jax.random.PRNGKey(0)
    k_param, k_x = jax.random.split(key)

    # Small ViT-Lite: img=16, patch=8 -> 4 patches (+1 cls), dim=32, 4 heads, 2 layers.
    params = init_params(k_param, img=16, patch=8, cin=4, dim=32, heads=4,
                         layers=2, mlp_ratio=4.0, num_classes=10)

    x = jax.random.normal(k_x, (2, 4, 16, 16), jnp.float32)   # NCHW

    out = vit_lite_forward(x, params)
    out = jax.block_until_ready(out)
    assert out.shape == (2, 10) and out.dtype == jnp.float32
    print("KERNEL_OK")
</pallas_src>

<mosaic_0001>
module attributes {stable_mosaic.version = 11 : i64} {
  func.func @_vit_fused_kernel(%arg0: i32, %arg1: memref<8x256xbf16, #tpu.memory_space<vmem>>, %arg2: memref<256x32xbf16, #tpu.memory_space<vmem>>, %arg3: memref<1x32xf32, #tpu.memory_space<vmem>>, %arg4: memref<1x32xf32, #tpu.memory_space<vmem>>, %arg5: memref<4x32xf32, #tpu.memory_space<vmem>>, %arg6: memref<2x1x32xf32, #tpu.memory_space<vmem>>, %arg7: memref<2x1x32xf32, #tpu.memory_space<vmem>>, %arg8: memref<2x32x96xbf16, #tpu.memory_space<vmem>>, %arg9: memref<2x32x32xbf16, #tpu.memory_space<vmem>>, %arg10: memref<2x1x32xf32, #tpu.memory_space<vmem>>, %arg11: memref<2x1x32xf32, #tpu.memory_space<vmem>>, %arg12: memref<2x1x32xf32, #tpu.memory_space<vmem>>, %arg13: memref<2x32x128xbf16, #tpu.memory_space<vmem>>, %arg14: memref<2x1x128xf32, #tpu.memory_space<vmem>>, %arg15: memref<2x128x32xbf16, #tpu.memory_space<vmem>>, %arg16: memref<2x1x32xf32, #tpu.memory_space<vmem>>, %arg17: memref<1x32xf32, #tpu.memory_space<vmem>>, %arg18: memref<1x32xf32, #tpu.memory_space<vmem>>, %arg19: memref<32x128xbf16, #tpu.memory_space<vmem>>, %arg20: memref<1x128xf32, #tpu.memory_space<vmem>>, %arg21: memref<2x128xf32, #tpu.memory_space<vmem>>, %arg22: memref<2x8x32xf32, #tpu.memory_space<vmem>>) attributes {dimension_semantics = [#tpu.dimension_semantics<parallel>], iteration_bounds = array<i64: 1>, scalar_prefetch = 0 : i64, scratch_operands = 1 : i64, tpu.core_type = #tpu.core_type<tc>, window_params = [{transform_indices = @transform_0, window_bounds = array<i64: 8, 256>}, {pipeline_mode = #tpu.pipeline_mode<synchronous>, transform_indices = @transform_1, window_bounds = array<i64: 256, 32>}, {pipeline_mode = #tpu.pipeline_mode<synchronous>, transform_indices = @transform_2, window_bounds = array<i64: 1, 32>}, {pipeline_mode = #tpu.pipeline_mode<synchronous>, transform_indices = @transform_3, window_bounds = array<i64: 1, 32>}, {pipeline_mode = #tpu.pipeline_mode<synchronous>, transform_indices = @transform_4, window_bounds = array<i64: 4, 32>}, {pipeline_mode = #tpu.pipeline_mode<synchronous>, transform_indices = @transform_5, window_bounds = array<i64: 2, 1, 32>}, {pipeline_mode = #tpu.pipeline_mode<synchronous>, transform_indices = @transform_6, window_bounds = array<i64: 2, 1, 32>}, {pipeline_mode = #tpu.pipeline_mode<synchronous>, transform_indices = @transform_7, window_bounds = array<i64: 2, 32, 96>}, {pipeline_mode = #tpu.pipeline_mode<synchronous>, transform_indices = @transform_8, window_bounds = array<i64: 2, 32, 32>}, {pipeline_mode = #tpu.pipeline_mode<synchronous>, transform_indices = @transform_9, window_bounds = array<i64: 2, 1, 32>}, {pipeline_mode = #tpu.pipeline_mode<synchronous>, transform_indices = @transform_10, window_bounds = array<i64: 2, 1, 32>}, {pipeline_mode = #tpu.pipeline_mode<synchronous>, transform_indices = @transform_11, window_bounds = array<i64: 2, 1, 32>}, {pipeline_mode = #tpu.pipeline_mode<synchronous>, transform_indices = @transform_12, window_bounds = array<i64: 2, 32, 128>}, {pipeline_mode = #tpu.pipeline_mode<synchronous>, transform_indices = @transform_13, window_bounds = array<i64: 2, 1, 128>}, {pipeline_mode = #tpu.pipeline_mode<synchronous>, transform_indices = @transform_14, window_bounds = array<i64: 2, 128, 32>}, {pipeline_mode = #tpu.pipeline_mode<synchronous>, transform_indices = @transform_15, window_bounds = array<i64: 2, 1, 32>}, {pipeline_mode = #tpu.pipeline_mode<synchronous>, transform_indices = @transform_16, window_bounds = array<i64: 1, 32>}, {pipeline_mode = #tpu.pipeline_mode<synchronous>, transform_indices = @transform_17, window_bounds = array<i64: 1, 32>}, {pipeline_mode = #tpu.pipeline_mode<synchronous>, transform_indices = @transform_18, window_bounds = array<i64: 32, 128>}, {pipeline_mode = #tpu.pipeline_mode<synchronous>, transform_indices = @transform_19, window_bounds = array<i64: 1, 128>}, {transform_indices = @transform_20, window_bounds = array<i64: 2, 128>}]} {
    %c0 = arith.constant 0 : index
    %c0_0 = arith.constant 0 : index
    %0 = vector.load %arg1[%c0, %c0_0] : memref<8x256xbf16, #tpu.memory_space<vmem>>, vector<8x256xbf16>
    %c0_1 = arith.constant 0 : index
    %c0_2 = arith.constant 0 : index
    %1 = vector.load %arg2[%c0_1, %c0_2] : memref<256x32xbf16, #tpu.memory_space<vmem>>, vector<256x32xbf16>
    %cst = arith.constant dense<0.000000e+00> : vector<8x32xf32>
    %2 = tpu.matmul %0, %1, %cst {dimension_numbers = #tpu.dot_dimension_numbers<[1], [0], [0], [1], [0, 0, 1, 1], [], []>} : vector<8x256xbf16>, vector<256x32xbf16>, vector<8x32xf32> -> vector<8x32xf32>
    %c0_3 = arith.constant 0 : index
    %c0_4 = arith.constant 0 : index
    %3 = vector.load %arg3[%c0_3, %c0_4] : memref<1x32xf32, #tpu.memory_space<vmem>>, vector<1x32xf32>
    %4 = vector.broadcast %3 : vector<1x32xf32> to vector<8x32xf32>
    %5 = arith.addf %2, %4 : vector<8x32xf32>
    %cst_5 = arith.constant 0.000000e+00 : f32
    %6 = vector.broadcast %cst_5 : f32 to vector<3x32xf32>
    %c0_6 = arith.constant 0 : index
    %c0_7 = arith.constant 0 : index
    %7 = vector.load %arg4[%c0_6, %c0_7] : memref<1x32xf32, #tpu.memory_space<vmem>>, vector<1x32xf32>
    %c0_8 = arith.constant 0 : index
    %c0_9 = arith.constant 0 : index
    %c0_10 = arith.constant 0 : index
    %8 = vector.load %arg22[%c0_8, %c0_9, %c0_10] : memref<2x8x32xf32, #tpu.memory_space<vmem>>, vector<1x1x32xf32>
    %9 = vector.shape_cast %8 : vector<1x1x32xf32> to vector<1x32xf32>
    %10 = vector.shape_cast %7 : vector<1x32xf32> to vector<1x1x32xf32>
    tpu.vector_store %arg22[%c0_8, %c0_9, %c0_10], %10 {strides = array<i32>} : memref<2x8x32xf32, #tpu.memory_space<vmem>>, vector<1x1x32xf32>,
    %11 = vector.extract_strided_slice %5 {offsets = [0, 0], sizes = [4, 32], strides = [1, 1]} : vector<8x32xf32> to vector<4x32xf32>
    %c0_11 = arith.constant 0 : index
    %c0_12 = arith.constant 0 : index
    %12 = vector.load %arg5[%c0_11, %c0_12] : memref<4x32xf32, #tpu.memory_space<vmem>>, vector<4x32xf32>
    %13 = arith.addf %11, %12 : vector<4x32xf32>
    %c0_13 = arith.constant 0 : index
    %c1 = arith.constant 1 : index
    %c0_14 = arith.constant 0 : index
    %14 = vector.load %arg22[%c0_13, %c1, %c0_14] : memref<2x8x32xf32, #tpu.memory_space<vmem>>, vector<1x4x32xf32>
    %15 = vector.shape_cast %14 : vector<1x4x32xf32> to vector<4x32xf32>
    %16 = vector.shape_cast %13 : vector<4x32xf32> to vector<1x4x32xf32>
    tpu.vector_store %arg22[%c0_13, %c1, %c0_14], %16 {strides = array<i32>} : memref<2x8x32xf32, #tpu.memory_space<vmem>>, vector<1x4x32xf32>,
    %c0_15 = arith.constant 0 : index
    %c5 = arith.constant 5 : index
    %c0_16 = arith.constant 0 : index
    %17 = vector.load %arg22[%c0_15, %c5, %c0_16] : memref<2x8x32xf32, #tpu.memory_space<vmem>>, vector<1x3x32xf32>
    %18 = vector.shape_cast %17 : vector<1x3x32xf32> to vector<3x32xf32>
    %19 = vector.shape_cast %6 : vector<3x32xf32> to vector<1x3x32xf32>
    tpu.vector_store %arg22[%c0_15, %c5, %c0_16], %19 {strides = array<i32>} : memref<2x8x32xf32, #tpu.memory_space<vmem>>, vector<1x3x32xf32>,
    %c0_17 = arith.constant 0 : index
    %c0_18 = arith.constant 0 : index
    %20 = vector.load %arg4[%c0_17, %c0_18] : memref<1x32xf32, #tpu.memory_space<vmem>>, vector<1x32xf32>
    %c1_19 = arith.constant 1 : index
    %c0_20 = arith.constant 0 : index
    %c0_21 = arith.constant 0 : index
    %21 = vector.load %arg22[%c1_19, %c0_20, %c0_21] : memref<2x8x32xf32, #tpu.memory_space<vmem>>, vector<1x1x32xf32>
    %22 = vector.shape_cast %21 : vector<1x1x32xf32> to vector<1x32xf32>
    %23 = vector.shape_cast %20 : vector<1x32xf32> to vector<1x1x32xf32>
    tpu.vector_store %arg22[%c1_19, %c0_20, %c0_21], %23 {strides = array<i32>} : memref<2x8x32xf32, #tpu.memory_space<vmem>>, vector<1x1x32xf32>,
    %24 = vector.extract_strided_slice %5 {offsets = [4, 0], sizes = [4, 32], strides = [1, 1]} : vector<8x32xf32> to vector<4x32xf32>
    %c0_22 = arith.constant 0 : index
    %c0_23 = arith.constant 0 : index
    %25 = vector.load %arg5[%c0_22, %c0_23] : memref<4x32xf32, #tpu.memory_space<vmem>>, vector<4x32xf32>
    %26 = arith.addf %24, %25 : vector<4x32xf32>
    %c1_24 = arith.constant 1 : index
    %c1_25 = arith.constant 1 : index
    %c0_26 = arith.constant 0 : index
    %27 = vector.load %arg22[%c1_24, %c1_25, %c0_26] : memref<2x8x32xf32, #tpu.memory_space<vmem>>, vector<1x4x32xf32>
    %28 = vector.shape_cast %27 : vector<1x4x32xf32> to vector<4x32xf32>
    %29 = vector.shape_cast %26 : vector<4x32xf32> to vector<1x4x32xf32>
    tpu.vector_store %arg22[%c1_24, %c1_25, %c0_26], %29 {strides = array<i32>} : memref<2x8x32xf32, #tpu.memory_space<vmem>>, vector<1x4x32xf32>,
    %c1_27 = arith.constant 1 : index
    %c5_28 = arith.constant 5 : index
    %c0_29 = arith.constant 0 : index
    %30 = vector.load %arg22[%c1_27, %c5_28, %c0_29] : memref<2x8x32xf32, #tpu.memory_space<vmem>>, vector<1x3x32xf32>
    %31 = vector.shape_cast %30 : vector<1x3x32xf32> to vector<3x32xf32>
    %32 = vector.shape_cast %6 : vector<3x32xf32> to vector<1x3x32xf32>
    tpu.vector_store %arg22[%c1_27, %c5_28, %c0_29], %32 {strides = array<i32>} : memref<2x8x32xf32, #tpu.memory_space<vmem>>, vector<1x3x32xf32>,
    %c0_30 = arith.constant 0 : index
    %c0_31 = arith.constant 0 : index
    %c0_32 = arith.constant 0 : index
    %33 = vector.load %arg22[%c0_30, %c0_31, %c0_32] : memref<2x8x32xf32, #tpu.memory_space<vmem>>, vector<2x8x32xf32>
    %34 = vector.shape_cast %33 : vector<2x8x32xf32> to vector<16x32xf32>
    %35 = tpu.iota {dimensions = array<i32: 1>} : vector<8x8xi32>
    %c5_i32 = arith.constant 5 : i32
    %36 = vector.broadcast %c5_i32 : i32 to vector<8x8xi32>
    %37 = arith.cmpi slt, %35, %36 : vector<8x8xi32>
    %cst_33 = arith.constant 0.000000e+00 : f32
    %cst_34 = arith.constant -1.000000e+30 : f32
    %38 = vector.broadcast %cst_33 : f32 to vector<8x8xf32>
    %39 = vector.broadcast %cst_34 : f32 to vector<8x8xf32>
    %40 = arith.select %37, %38, %39 : vector<8x8xi1>, vector<8x8xf32>
    %c0_35 = arith.constant 0 : index
    %c0_36 = arith.constant 0 : index
    %c0_37 = arith.constant 0 : index
    %41 = vector.load %arg6[%c0_35, %c0_36, %c0_37] : memref<2x1x32xf32, #tpu.memory_space<vmem>>, vector<1x1x32xf32>
    %42 = vector.shape_cast %41 : vector<1x1x32xf32> to vector<1x32xf32>
    %c0_38 = arith.constant 0 : index
    %c0_39 = arith.constant 0 : index
    %c0_40 = arith.constant 0 : index
    %43 = vector.load %arg7[%c0_38, %c0_39, %c0_40] : memref<2x1x32xf32, #tpu.memory_space<vmem>>, vector<1x1x32xf32>
    %44 = vector.shape_cast %43 : vector<1x1x32xf32> to vector<1x32xf32>
    %cst_41 = arith.constant dense<0.000000e+00> : vector<16xf32>
    %45 = vector.multi_reduction <add>, %34, %cst_41 [1] : vector<16x32xf32> to vector<16xf32>
    %46 = vector.shape_cast %45 : vector<16xf32> to vector<16x1xf32>
    %cst_42 = arith.constant 3.200000e+01 : f32
    %47 = vector.broadcast %cst_42 : f32 to vector<16x1xf32>
    %48 = arith.divf %46, %47 : vector<16x1xf32>
    %49 = vector.broadcast %48 : vector<16x1xf32> to vector<16x32xf32>
    %50 = arith.subf %34, %49 : vector<16x32xf32>
    %51 = arith.mulf %50, %50 : vector<16x32xf32>
    %cst_43 = arith.constant dense<0.000000e+00> : vector<16xf32>
    %52 = vector.multi_reduction <add>, %51, %cst_43 [1] : vector<16x32xf32> to vector<16xf32>
    %53 = vector.shape_cast %52 : vector<16xf32> to vector<16x1xf32>
    %cst_44 = arith.constant 3.200000e+01 : f32
    %54 = vector.broadcast %cst_44 : f32 to vector<16x1xf32>
    %55 = arith.divf %53, %54 : vector<16x1xf32>
    %56 = vector.broadcast %48 : vector<16x1xf32> to vector<16x32xf32>
    %57 = arith.subf %34, %56 : vector<16x32xf32>
    %cst_45 = arith.constant 9.99999974E-6 : f32
    %58 = vector.broadcast %cst_45 : f32 to vector<16x1xf32>
    %59 = arith.addf %55, %58 : vector<16x1xf32>
    %60 = math.rsqrt %59 : vector<16x1xf32>
    %61 = vector.broadcast %60 : vector<16x1xf32> to vector<16x32xf32>
    %62 = arith.mulf %57, %61 : vector<16x32xf32>
    %63 = vector.broadcast %42 : vector<1x32xf32> to vector<16x32xf32>
    %64 = arith.mulf %62, %63 : vector<16x32xf32>
    %65 = vector.broadcast %44 : vector<1x32xf32> to vector<16x32xf32>
    %66 = arith.addf %64, %65 : vector<16x32xf32>
    %67 = arith.truncf %66 : vector<16x32xf32> to vector<16x32xbf16>
    %c0_46 = arith.constant 0 : index
    %c0_47 = arith.constant 0 : index
    %c0_48 = arith.constant 0 : index
    %68 = vector.load %arg8[%c0_46, %c0_47, %c0_48] : memref<2x32x96xbf16, #tpu.memory_space<vmem>>, vector<1x32x96xbf16>
    %69 = vector.shape_cast %68 : vector<1x32x96xbf16> to vector<32x96xbf16>
    %cst_49 = arith.constant dense<0.000000e+00> : vector<16x96xf32>
    %70 = tpu.matmul %67, %69, %cst_49 {dimension_numbers = #tpu.dot_dimension_numbers<[1], [0], [0], [1], [0, 0, 1, 1], [], []>} : vector<16x32xbf16>, vector<32x96xbf16>, vector<16x96xf32> -> vector<16x96xf32>
    %71 = arith.truncf %70 : vector<16x96xf32> to vector<16x96xbf16>
    %72 = vector.extract_strided_slice %71 {offsets = [0, 0], sizes = [16, 8], strides = [1, 1]} : vector<16x96xbf16> to vector<16x8xbf16>
    %73 = vector.shape_cast %72 : vector<16x8xbf16> to vector<2x8x8xbf16>
    %74 = vector.extract_strided_slice %71 {offsets = [0, 32], sizes = [16, 8], strides = [1, 1]} : vector<16x96xbf16> to vector<16x8xbf16>
    %75 = vector.shape_cast %74 : vector<16x8xbf16> to vector<2x8x8xbf16>
    %76 = vector.extract_strided_slice %71 {offsets = [0, 64], sizes = [16, 8], strides = [1, 1]} : vector<16x96xbf16> to vector<16x8xbf16>
    %77 = vector.shape_cast %76 : vector<16x8xbf16> to vector<2x8x8xbf16>
    "tpu.trace_start"() <{level = 10 : i32, message = "bnd,bmd->bnm"}> : () -> ()
    %cst_50 = arith.constant dense<0.000000e+00> : vector<2x8x8xf32>
    %78 = tpu.matmul %73, %75, %cst_50 {dimension_numbers = #tpu.dot_dimension_numbers<[2], [2], [1], [1], [0, 0, 0, 1, 1, 1], [0], [0]>} : vector<2x8x8xbf16>, vector<2x8x8xbf16>, vector<2x8x8xf32> -> vector<2x8x8xf32>
    "tpu.trace_stop"() : () -> ()
    %79 = vector.shape_cast %40 : vector<8x8xf32> to vector<1x8x8xf32>
    %80 = vector.broadcast %79 : vector<1x8x8xf32> to vector<2x8x8xf32>
    %81 = arith.addf %78, %80 : vector<2x8x8xf32>
    %cst_51 = arith.constant dense<0xFF800000> : vector<2x8xf32>
    %82 = vector.multi_reduction <maximumf>, %81, %cst_51 [2] : vector<2x8x8xf32> to vector<2x8xf32>
    %83 = vector.shape_cast %82 : vector<2x8xf32> to vector<2x8x1xf32>
    %84 = vector.broadcast %83 : vector<2x8x1xf32> to vector<2x8x8xf32>
    %85 = arith.subf %81, %84 : vector<2x8x8xf32>
    %86 = math.exp %85 : vector<2x8x8xf32>
    %cst_52 = arith.constant dense<0.000000e+00> : vector<2x8xf32>
    %87 = vector.multi_reduction <add>, %86, %cst_52 [2] : vector<2x8x8xf32> to vector<2x8xf32>
    %88 = vector.shape_cast %87 : vector<2x8xf32> to vector<2x8x1xf32>
    %89 = tpu.reciprocal %88 {approx = true} : vector<2x8x1xf32> -> vector<2x8x1xf32>
    %90 = vector.broadcast %89 : vector<2x8x1xf32> to vector<2x8x8xf32>
    %91 = arith.mulf %86, %90 : vector<2x8x8xf32>
    %92 = arith.truncf %91 : vector<2x8x8xf32> to vector<2x8x8xbf16>
    "tpu.trace_start"() <{level = 10 : i32, message = "bnm,bmd->bnd"}> : () -> ()
    %cst_53 = arith.constant dense<0.000000e+00> : vector<2x8x8xf32>
    %93 = tpu.matmul %92, %77, %cst_53 {dimension_numbers = #tpu.dot_dimension_numbers<[2], [1], [1], [2], [0, 0, 0, 1, 1, 2], [0], [0]>} : vector<2x8x8xbf16>, vector<2x8x8xbf16>, vector<2x8x8xf32> -> vector<2x8x8xf32>
    "tpu.trace_stop"() : () -> ()
    %94 = vector.shape_cast %93 : vector<2x8x8xf32> to vector<16x8xf32>
    %95 = vector.extract_strided_slice %71 {offsets = [0, 8], sizes = [16, 8], strides = [1, 1]} : vector<16x96xbf16> to vector<16x8xbf16>
    %96 = vector.shape_cast %95 : vector<16x8xbf16> to vector<2x8x8xbf16>
    %97 = vector.extract_strided_slice %71 {offsets = [0, 40], sizes = [16, 8], strides = [1, 1]} : vector<16x96xbf16> to vector<16x8xbf16>
    %98 = vector.shape_cast %97 : vector<16x8xbf16> to vector<2x8x8xbf16>
    %99 = vector.extract_strided_slice %71 {offsets = [0, 72], sizes = [16, 8], strides = [1, 1]} : vector<16x96xbf16> to vector<16x8xbf16>
    %100 = vector.shape_cast %99 : vector<16x8xbf16> to vector<2x8x8xbf16>
    "tpu.trace_start"() <{level = 10 : i32, message = "bnd,bmd->bnm"}> : () -> ()
    %cst_54 = arith.constant dense<0.000000e+00> : vector<2x8x8xf32>
    %101 = tpu.matmul %96, %98, %cst_54 {dimension_numbers = #tpu.dot_dimension_numbers<[2], [2], [1], [1], [0, 0, 0, 1, 1, 1], [0], [0]>} : vector<2x8x8xbf16>, vector<2x8x8xbf16>, vector<2x8x8xf32> -> vector<2x8x8xf32>
    "tpu.trace_stop"() : () -> ()
    %102 = vector.shape_cast %40 : vector<8x8xf32> to vector<1x8x8xf32>
    %103 = vector.broadcast %102 : vector<1x8x8xf32> to vector<2x8x8xf32>
    %104 = arith.addf %101, %103 : vector<2x8x8xf32>
    %cst_55 = arith.constant dense<0xFF800000> : vector<2x8xf32>
    %105 = vector.multi_reduction <maximumf>, %104, %cst_55 [2] : vector<2x8x8xf32> to vector<2x8xf32>
    %106 = vector.shape_cast %105 : vector<2x8xf32> to vector<2x8x1xf32>
    %107 = vector.broadcast %106 : vector<2x8x1xf32> to vector<2x8x8xf32>
    %108 = arith.subf %104, %107 : vector<2x8x8xf32>
    %109 = math.exp %108 : vector<2x8x8xf32>
    %cst_56 = arith.constant dense<0.000000e+00> : vector<2x8xf32>
    %110 = vector.multi_reduction <add>, %109, %cst_56 [2] : vector<2x8x8xf32> to vector<2x8xf32>
    %111 = vector.shape_cast %110 : vector<2x8xf32> to vector<2x8x1xf32>
    %112 = tpu.reciprocal %111 {approx = true} : vector<2x8x1xf32> -> vector<2x8x1xf32>
    %113 = vector.broadcast %112 : vector<2x8x1xf32> to vector<2x8x8xf32>
    %114 = arith.mulf %109, %113 : vector<2x8x8xf32>
    %115 = arith.truncf %114 : vector<2x8x8xf32> to vector<2x8x8xbf16>
    "tpu.trace_start"() <{level = 10 : i32, message = "bnm,bmd->bnd"}> : () -> ()
    %cst_57 = arith.constant dense<0.000000e+00> : vector<2x8x8xf32>
    %116 = tpu.matmul %115, %100, %cst_57 {dimension_numbers = #tpu.dot_dimension_numbers<[2], [1], [1], [2], [0, 0, 0, 1, 1, 2], [0], [0]>} : vector<2x8x8xbf16>, vector<2x8x8xbf16>, vector<2x8x8xf32> -> vector<2x8x8xf32>
    "tpu.trace_stop"() : () -> ()
    %117 = vector.shape_cast %116 : vector<2x8x8xf32> to vector<16x8xf32>
    %118 = vector.extract_strided_slice %71 {offsets = [0, 16], sizes = [16, 8], strides = [1, 1]} : vector<16x96xbf16> to vector<16x8xbf16>
    %119 = vector.shape_cast %118 : vector<16x8xbf16> to vector<2x8x8xbf16>
    %120 = vector.extract_strided_slice %71 {offsets = [0, 48], sizes = [16, 8], strides = [1, 1]} : vector<16x96xbf16> to vector<16x8xbf16>
    %121 = vector.shape_cast %120 : vector<16x8xbf16> to vector<2x8x8xbf16>
    %122 = vector.extract_strided_slice %71 {offsets = [0, 80], sizes = [16, 8], strides = [1, 1]} : vector<16x96xbf16> to vector<16x8xbf16>
    %123 = vector.shape_cast %122 : vector<16x8xbf16> to vector<2x8x8xbf16>
    "tpu.trace_start"() <{level = 10 : i32, message = "bnd,bmd->bnm"}> : () -> ()
    %cst_58 = arith.constant dense<0.000000e+00> : vector<2x8x8xf32>
    %124 = tpu.matmul %119, %121, %cst_58 {dimension_numbers = #tpu.dot_dimension_numbers<[2], [2], [1], [1], [0, 0, 0, 1, 1, 1], [0], [0]>} : vector<2x8x8xbf16>, vector<2x8x8xbf16>, vector<2x8x8xf32> -> vector<2x8x8xf32>
    "tpu.trace_stop"() : () -> ()
    %125 = vector.shape_cast %40 : vector<8x8xf32> to vector<1x8x8xf32>
    %126 = vector.broadcast %125 : vector<1x8x8xf32> to vector<2x8x8xf32>
    %127 = arith.addf %124, %126 : vector<2x8x8xf32>
    %cst_59 = arith.constant dense<0xFF800000> : vector<2x8xf32>
    %128 = vector.multi_reduction <maximumf>, %127, %cst_59 [2] : vector<2x8x8xf32> to vector<2x8xf32>
    %129 = vector.shape_cast %128 : vector<2x8xf32> to vector<2x8x1xf32>
    %130 = vector.broadcast %129 : vector<2x8x1xf32> to vector<2x8x8xf32>
    %131 = arith.subf %127, %130 : vector<2x8x8xf32>
    %132 = math.exp %131 : vector<2x8x8xf32>
    %cst_60 = arith.constant dense<0.000000e+00> : vector<2x8xf32>
    %133 = vector.multi_reduction <add>, %132, %cst_60 [2] : vector<2x8x8xf32> to vector<2x8xf32>
    %134 = vector.shape_cast %133 : vector<2x8xf32> to vector<2x8x1xf32>
    %135 = tpu.reciprocal %134 {approx = true} : vector<2x8x1xf32> -> vector<2x8x1xf32>
    %136 = vector.broadcast %135 : vector<2x8x1xf32> to vector<2x8x8xf32>
    %137 = arith.mulf %132, %136 : vector<2x8x8xf32>
    %138 = arith.truncf %137 : vector<2x8x8xf32> to vector<2x8x8xbf16>
    "tpu.trace_start"() <{level = 10 : i32, message = "bnm,bmd->bnd"}> : () -> ()
    %cst_61 = arith.constant dense<0.000000e+00> : vector<2x8x8xf32>
    %139 = tpu.matmul %138, %123, %cst_61 {dimension_numbers = #tpu.dot_dimension_numbers<[2], [1], [1], [2], [0, 0, 0, 1, 1, 2], [0], [0]>} : vector<2x8x8xbf16>, vector<2x8x8xbf16>, vector<2x8x8xf32> -> vector<2x8x8xf32>
    "tpu.trace_stop"() : () -> ()
    %140 = vector.shape_cast %139 : vector<2x8x8xf32> to vector<16x8xf32>
    %141 = vector.extract_strided_slice %71 {offsets = [0, 24], sizes = [16, 8], strides = [1, 1]} : vector<16x96xbf16> to vector<16x8xbf16>
    %142 = vector.shape_cast %141 : vector<16x8xbf16> to vector<2x8x8xbf16>
    %143 = vector.extract_strided_slice %71 {offsets = [0, 56], sizes = [16, 8], strides = [1, 1]} : vector<16x96xbf16> to vector<16x8xbf16>
    %144 = vector.shape_cast %143 : vector<16x8xbf16> to vector<2x8x8xbf16>
    %145 = vector.extract_strided_slice %71 {offsets = [0, 88], sizes = [16, 8], strides = [1, 1]} : vector<16x96xbf16> to vector<16x8xbf16>
    %146 = vector.shape_cast %145 : vector<16x8xbf16> to vector<2x8x8xbf16>
    "tpu.trace_start"() <{level = 10 : i32, message = "bnd,bmd->bnm"}> : () -> ()
    %cst_62 = arith.constant dense<0.000000e+00> : vector<2x8x8xf32>
    %147 = tpu.matmul %142, %144, %cst_62 {dimension_numbers = #tpu.dot_dimension_numbers<[2], [2], [1], [1], [0, 0, 0, 1, 1, 1], [0], [0]>} : vector<2x8x8xbf16>, vector<2x8x8xbf16>, vector<2x8x8xf32> -> vector<2x8x8xf32>
    "tpu.trace_stop"() : () -> ()
    %148 = vector.shape_cast %40 : vector<8x8xf32> to vector<1x8x8xf32>
    %149 = vector.broadcast %148 : vector<1x8x8xf32> to vector<2x8x8xf32>
    %150 = arith.addf %147, %149 : vector<2x8x8xf32>
    %cst_63 = arith.constant dense<0xFF800000> : vector<2x8xf32>
    %151 = vector.multi_reduction <maximumf>, %150, %cst_63 [2] : vector<2x8x8xf32> to vector<2x8xf32>
    %152 = vector.shape_cast %151 : vector<2x8xf32> to vector<2x8x1xf32>
    %153 = vector.broadcast %152 : vector<2x8x1xf32> to vector<2x8x8xf32>
    %154 = arith.subf %150, %153 : vector<2x8x8xf32>
    %155 = math.exp %154 : vector<2x8x8xf32>
    %cst_64 = arith.constant dense<0.000000e+00> : vector<2x8xf32>
    %156 = vector.multi_reduction <add>, %155, %cst_64 [2] : vector<2x8x8xf32> to vector<2x8xf32>
    %157 = vector.shape_cast %156 : vector<2x8xf32> to vector<2x8x1xf32>
    %158 = tpu.reciprocal %157 {approx = true} : vector<2x8x1xf32> -> vector<2x8x1xf32>
    %159 = vector.broadcast %158 : vector<2x8x1xf32> to vector<2x8x8xf32>
    %160 = arith.mulf %155, %159 : vector<2x8x8xf32>
    %161 = arith.truncf %160 : vector<2x8x8xf32> to vector<2x8x8xbf16>
    "tpu.trace_start"() <{level = 10 : i32, message = "bnm,bmd->bnd"}> : () -> ()
    %cst_65 = arith.constant dense<0.000000e+00> : vector<2x8x8xf32>
    %162 = tpu.matmul %161, %146, %cst_65 {dimension_numbers = #tpu.dot_dimension_numbers<[2], [1], [1], [2], [0, 0, 0, 1, 1, 2], [0], [0]>} : vector<2x8x8xbf16>, vector<2x8x8xbf16>, vector<2x8x8xf32> -> vector<2x8x8xf32>
    "tpu.trace_stop"() : () -> ()
    %163 = vector.shape_cast %162 : vector<2x8x8xf32> to vector<16x8xf32>
    %164 = tpu.concatenate %94, %117, %140, %163 in 1 : vector<16x8xf32>, vector<16x8xf32>, vector<16x8xf32>, vector<16x8xf32> -> vector<16x32xf32>
    %165 = arith.truncf %164 : vector<16x32xf32> to vector<16x32xbf16>
    %c0_66 = arith.constant 0 : index
    %c0_67 = arith.constant 0 : index
    %c0_68 = arith.constant 0 : index
    %166 = vector.load %arg9[%c0_66, %c0_67, %c0_68] : memref<2x32x32xbf16, #tpu.memory_space<vmem>>, vector<1x32x32xbf16>
    %167 = vector.shape_cast %166 : vector<1x32x32xbf16> to vector<32x32xbf16>
    %cst_69 = arith.constant dense<0.000000e+00> : vector<16x32xf32>
    %168 = tpu.matmul %165, %167, %cst_69 {dimension_numbers = #tpu.dot_dimension_numbers<[1], [0], [0], [1], [0, 0, 1, 1], [], []>} : vector<16x32xbf16>, vector<32x32xbf16>, vector<16x32xf32> -> vector<16x32xf32>
    %c0_70 = arith.constant 0 : index
    %c0_71 = arith.constant 0 : index
    %c0_72 = arith.constant 0 : index
    %169 = vector.load %arg10[%c0_70, %c0_71, %c0_72] : memref<2x1x32xf32, #tpu.memory_space<vmem>>, vector<1x1x32xf32>
    %170 = vector.shape_cast %169 : vector<1x1x32xf32> to vector<1x32xf32>
    %171 = vector.broadcast %170 : vector<1x32xf32> to vector<16x32xf32>
    %172 = arith.addf %168, %171 : vector<16x32xf32>
    %173 = arith.addf %34, %172 : vector<16x32xf32>
    %c0_73 = arith.constant 0 : index
    %c0_74 = arith.constant 0 : index
    %c0_75 = arith.constant 0 : index
    %174 = vector.load %arg11[%c0_73, %c0_74, %c0_75] : memref<2x1x32xf32, #tpu.memory_space<vmem>>, vector<1x1x32xf32>
    %175 = vector.shape_cast %174 : vector<1x1x32xf32> to vector<1x32xf32>
    %c0_76 = arith.constant 0 : index
    %c0_77 = arith.constant 0 : index
    %c0_78 = arith.constant 0 : index
    %176 = vector.load %arg12[%c0_76, %c0_77, %c0_78] : memref<2x1x32xf32, #tpu.memory_space<vmem>>, vector<1x1x32xf32>
    %177 = vector.shape_cast %176 : vector<1x1x32xf32> to vector<1x32xf32>
    %cst_79 = arith.constant dense<0.000000e+00> : vector<16xf32>
    %178 = vector.multi_reduction <add>, %173, %cst_79 [1] : vector<16x32xf32> to vector<16xf32>
    %179 = vector.shape_cast %178 : vector<16xf32> to vector<16x1xf32>
    %cst_80 = arith.constant 3.200000e+01 : f32
    %180 = vector.broadcast %cst_80 : f32 to vector<16x1xf32>
    %181 = arith.divf %179, %180 : vector<16x1xf32>
    %182 = vector.broadcast %181 : vector<16x1xf32> to vector<16x32xf32>
    %183 = arith.subf %173, %182 : vector<16x32xf32>
    %184 = arith.mulf %183, %183 : vector<16x32xf32>
    %cst_81 = arith.constant dense<0.000000e+00> : vector<16xf32>
    %185 = vector.multi_reduction <add>, %184, %cst_81 [1] : vector<16x32xf32> to vector<16xf32>
    %186 = vector.shape_cast %185 : vector<16xf32> to vector<16x1xf32>
    %cst_82 = arith.constant 3.200000e+01 : f32
    %187 = vector.broadcast %cst_82 : f32 to vector<16x1xf32>
    %188 = arith.divf %186, %187 : vector<16x1xf32>
    %189 = vector.broadcast %181 : vector<16x1xf32> to vector<16x32xf32>
    %190 = arith.subf %173, %189 : vector<16x32xf32>
    %cst_83 = arith.constant 9.99999974E-6 : f32
    %191 = vector.broadcast %cst_83 : f32 to vector<16x1xf32>
    %192 = arith.addf %188, %191 : vector<16x1xf32>
    %193 = math.rsqrt %192 : vector<16x1xf32>
    %194 = vector.broadcast %193 : vector<16x1xf32> to vector<16x32xf32>
    %195 = arith.mulf %190, %194 : vector<16x32xf32>
    %196 = vector.broadcast %175 : vector<1x32xf32> to vector<16x32xf32>
    %197 = arith.mulf %195, %196 : vector<16x32xf32>
    %198 = vector.broadcast %177 : vector<1x32xf32> to vector<16x32xf32>
    %199 = arith.addf %197, %198 : vector<16x32xf32>
    %200 = arith.truncf %199 : vector<16x32xf32> to vector<16x32xbf16>
    %c0_84 = arith.constant 0 : index
    %c0_85 = arith.constant 0 : index
    %c0_86 = arith.constant 0 : index
    %201 = vector.load %arg13[%c0_84, %c0_85, %c0_86] : memref<2x32x128xbf16, #tpu.memory_space<vmem>>, vector<1x32x128xbf16>
    %202 = vector.shape_cast %201 : vector<1x32x128xbf16> to vector<32x128xbf16>
    %cst_87 = arith.constant dense<0.000000e+00> : vector<16x128xf32>
    %203 = tpu.matmul %200, %202, %cst_87 {dimension_numbers = #tpu.dot_dimension_numbers<[1], [0], [0], [1], [0, 0, 1, 1], [], []>} : vector<16x32xbf16>, vector<32x128xbf16>, vector<16x128xf32> -> vector<16x128xf32>
    %c0_88 = arith.constant 0 : index
    %c0_89 = arith.constant 0 : index
    %c0_90 = arith.constant 0 : index
    %204 = vector.load %arg14[%c0_88, %c0_89, %c0_90] : memref<2x1x128xf32, #tpu.memory_space<vmem>>, vector<1x1x128xf32>
    %205 = vector.shape_cast %204 : vector<1x1x128xf32> to vector<1x128xf32>
    %206 = vector.broadcast %205 : vector<1x128xf32> to vector<16x128xf32>
    %207 = arith.addf %203, %206 : vector<16x128xf32>
    %cst_91 = arith.constant 5.000000e-01 : f32
    %208 = vector.broadcast %cst_91 : f32 to vector<16x128xf32>
    %209 = arith.mulf %208, %207 : vector<16x128xf32>
    %cst_92 = arith.constant 4.471500e-02 : f32
    %210 = vector.broadcast %cst_92 : f32 to vector<16x128xf32>
    %211 = arith.mulf %210, %207 : vector<16x128xf32>
    %212 = arith.mulf %211, %207 : vector<16x128xf32>
    %213 = arith.mulf %212, %207 : vector<16x128xf32>
    %214 = arith.addf %207, %213 : vector<16x128xf32>
    %cst_93 = arith.constant 0.797884583 : f32
    %215 = vector.broadcast %cst_93 : f32 to vector<16x128xf32>
    %216 = arith.mulf %215, %214 : vector<16x128xf32>
    %217 = math.tanh %216 : vector<16x128xf32>
    %cst_94 = arith.constant 1.000000e+00 : f32
    %218 = vector.broadcast %cst_94 : f32 to vector<16x128xf32>
    %219 = arith.addf %218, %217 : vector<16x128xf32>
    %220 = arith.mulf %209, %219 : vector<16x128xf32>
    %221 = arith.truncf %220 : vector<16x128xf32> to vector<16x128xbf16>
    %c0_95 = arith.constant 0 : index
    %c0_96 = arith.constant 0 : index
    %c0_97 = arith.constant 0 : index
    %222 = vector.load %arg15[%c0_95, %c0_96, %c0_97] : memref<2x128x32xbf16, #tpu.memory_space<vmem>>, vector<1x128x32xbf16>
    %223 = vector.shape_cast %222 : vector<1x128x32xbf16> to vector<128x32xbf16>
    %cst_98 = arith.constant dense<0.000000e+00> : vector<16x32xf32>
    %224 = tpu.matmul %221, %223, %cst_98 {dimension_numbers = #tpu.dot_dimension_numbers<[1], [0], [0], [1], [0, 0, 1, 1], [], []>} : vector<16x128xbf16>, vector<128x32xbf16>, vector<16x32xf32> -> vector<16x32xf32>
    %c0_99 = arith.constant 0 : index
    %c0_100 = arith.constant 0 : index
    %c0_101 = arith.constant 0 : index
    %225 = vector.load %arg16[%c0_99, %c0_100, %c0_101] : memref<2x1x32xf32, #tpu.memory_space<vmem>>, vector<1x1x32xf32>
    %226 = vector.shape_cast %225 : vector<1x1x32xf32> to vector<1x32xf32>
    %227 = vector.broadcast %226 : vector<1x32xf32> to vector<16x32xf32>
    %228 = arith.addf %224, %227 : vector<16x32xf32>
    %229 = arith.addf %199, %228 : vector<16x32xf32>
    %c1_102 = arith.constant 1 : index
    %c0_103 = arith.constant 0 : index
    %c0_104 = arith.constant 0 : index
    %230 = vector.load %arg6[%c1_102, %c0_103, %c0_104] : memref<2x1x32xf32, #tpu.memory_space<vmem>>, vector<1x1x32xf32>
    %231 = vector.shape_cast %230 : vector<1x1x32xf32> to vector<1x32xf32>
    %c1_105 = arith.constant 1 : index
    %c0_106 = arith.constant 0 : index
    %c0_107 = arith.constant 0 : index
    %232 = vector.load %arg7[%c1_105, %c0_106, %c0_107] : memref<2x1x32xf32, #tpu.memory_space<vmem>>, vector<1x1x32xf32>
    %233 = vector.shape_cast %232 : vector<1x1x32xf32> to vector<1x32xf32>
    %cst_108 = arith.constant dense<0.000000e+00> : vector<16xf32>
    %234 = vector.multi_reduction <add>, %229, %cst_108 [1] : vector<16x32xf32> to vector<16xf32>
    %235 = vector.shape_cast %234 : vector<16xf32> to vector<16x1xf32>
    %cst_109 = arith.constant 3.200000e+01 : f32
    %236 = vector.broadcast %cst_109 : f32 to vector<16x1xf32>
    %237 = arith.divf %235, %236 : vector<16x1xf32>
    %238 = vector.broadcast %237 : vector<16x1xf32> to vector<16x32xf32>
    %239 = arith.subf %229, %238 : vector<16x32xf32>
    %240 = arith.mulf %239, %239 : vector<16x32xf32>
    %cst_110 = arith.constant dense<0.000000e+00> : vector<16xf32>
    %241 = vector.multi_reduction <add>, %240, %cst_110 [1] : vector<16x32xf32> to vector<16xf32>
    %242 = vector.shape_cast %241 : vector<16xf32> to vector<16x1xf32>
    %cst_111 = arith.constant 3.200000e+01 : f32
    %243 = vector.broadcast %cst_111 : f32 to vector<16x1xf32>
    %244 = arith.divf %242, %243 : vector<16x1xf32>
    %245 = vector.broadcast %237 : vector<16x1xf32> to vector<16x32xf32>
    %246 = arith.subf %229, %245 : vector<16x32xf32>
    %cst_112 = arith.constant 9.99999974E-6 : f32
    %247 = vector.broadcast %cst_112 : f32 to vector<16x1xf32>
    %248 = arith.addf %244, %247 : vector<16x1xf32>
    %249 = math.rsqrt %248 : vector<16x1xf32>
    %250 = vector.broadcast %249 : vector<16x1xf32> to vector<16x32xf32>
    %251 = arith.mulf %246, %250 : vector<16x32xf32>
    %252 = vector.broadcast %231 : vector<1x32xf32> to vector<16x32xf32>
    %253 = arith.mulf %251, %252 : vector<16x32xf32>
    %254 = vector.broadcast %233 : vector<1x32xf32> to vector<16x32xf32>
    %255 = arith.addf %253, %254 : vector<16x32xf32>
    %256 = arith.truncf %255 : vector<16x32xf32> to vector<16x32xbf16>
    %c1_113 = arith.constant 1 : index
    %c0_114 = arith.constant 0 : index
    %c0_115 = arith.constant 0 : index
    %257 = vector.load %arg8[%c1_113, %c0_114, %c0_115] : memref<2x32x96xbf16, #tpu.memory_space<vmem>>, vector<1x32x96xbf16>
    %258 = vector.shape_cast %257 : vector<1x32x96xbf16> to vector<32x96xbf16>
    %cst_116 = arith.constant dense<0.000000e+00> : vector<16x96xf32>
    %259 = tpu.matmul %256, %258, %cst_116 {dimension_numbers = #tpu.dot_dimension_numbers<[1], [0], [0], [1], [0, 0, 1, 1], [], []>} : vector<16x32xbf16>, vector<32x96xbf16>, vector<16x96xf32> -> vector<16x96xf32>
    %260 = arith.truncf %259 : vector<16x96xf32> to vector<16x96xbf16>
    %261 = vector.extract_strided_slice %260 {offsets = [0, 0], sizes = [16, 8], strides = [1, 1]} : vector<16x96xbf16> to vector<16x8xbf16>
    %262 = vector.shape_cast %261 : vector<16x8xbf16> to vector<2x8x8xbf16>
    %263 = vector.extract_strided_slice %260 {offsets = [0, 32], sizes = [16, 8], strides = [1, 1]} : vector<16x96xbf16> to vector<16x8xbf16>
    %264 = vector.shape_cast %263 : vector<16x8xbf16> to vector<2x8x8xbf16>
    %265 = vector.extract_strided_slice %260 {offsets = [0, 64], sizes = [16, 8], strides = [1, 1]} : vector<16x96xbf16> to vector<16x8xbf16>
    %266 = vector.shape_cast %265 : vector<16x8xbf16> to vector<2x8x8xbf16>
    "tpu.trace_start"() <{level = 10 : i32, message = "bnd,bmd->bnm"}> : () -> ()
    %cst_117 = arith.constant dense<0.000000e+00> : vector<2x8x8xf32>
    %267 = tpu.matmul %262, %264, %cst_117 {dimension_numbers = #tpu.dot_dimension_numbers<[2], [2], [1], [1], [0, 0, 0, 1, 1, 1], [0], [0]>} : vector<2x8x8xbf16>, vector<2x8x8xbf16>, vector<2x8x8xf32> -> vector<2x8x8xf32>
    "tpu.trace_stop"() : () -> ()
    %268 = vector.shape_cast %40 : vector<8x8xf32> to vector<1x8x8xf32>
    %269 = vector.broadcast %268 : vector<1x8x8xf32> to vector<2x8x8xf32>
    %270 = arith.addf %267, %269 : vector<2x8x8xf32>
    %cst_118 = arith.constant dense<0xFF800000> : vector<2x8xf32>
    %271 = vector.multi_reduction <maximumf>, %270, %cst_118 [2] : vector<2x8x8xf32> to vector<2x8xf32>
    %272 = vector.shape_cast %271 : vector<2x8xf32> to vector<2x8x1xf32>
    %273 = vector.broadcast %272 : vector<2x8x1xf32> to vector<2x8x8xf32>
    %274 = arith.subf %270, %273 : vector<2x8x8xf32>
    %275 = math.exp %274 : vector<2x8x8xf32>
    %cst_119 = arith.constant dense<0.000000e+00> : vector<2x8xf32>
    %276 = vector.multi_reduction <add>, %275, %cst_119 [2] : vector<2x8x8xf32> to vector<2x8xf32>
    %277 = vector.shape_cast %276 : vector<2x8xf32> to vector<2x8x1xf32>
    %278 = tpu.reciprocal %277 {approx = true} : vector<2x8x1xf32> -> vector<2x8x1xf32>
    %279 = vector.broadcast %278 : vector<2x8x1xf32> to vector<2x8x8xf32>
    %280 = arith.mulf %275, %279 : vector<2x8x8xf32>
    %281 = arith.truncf %280 : vector<2x8x8xf32> to vector<2x8x8xbf16>
    "tpu.trace_start"() <{level = 10 : i32, message = "bnm,bmd->bnd"}> : () -> ()
    %cst_120 = arith.constant dense<0.000000e+00> : vector<2x8x8xf32>
    %282 = tpu.matmul %281, %266, %cst_120 {dimension_numbers = #tpu.dot_dimension_numbers<[2], [1], [1], [2], [0, 0, 0, 1, 1, 2], [0], [0]>} : vector<2x8x8xbf16>, vector<2x8x8xbf16>, vector<2x8x8xf32> -> vector<2x8x8xf32>
    "tpu.trace_stop"() : () -> ()
    %283 = vector.shape_cast %282 : vector<2x8x8xf32> to vector<16x8xf32>
    %284 = vector.extract_strided_slice %260 {offsets = [0, 8], sizes = [16, 8], strides = [1, 1]} : vector<16x96xbf16> to vector<16x8xbf16>
    %285 = vector.shape_cast %284 : vector<16x8xbf16> to vector<2x8x8xbf16>
    %286 = vector.extract_strided_slice %260 {offsets = [0, 40], sizes = [16, 8], strides = [1, 1]} : vector<16x96xbf16> to vector<16x8xbf16>
    %287 = vector.shape_cast %286 : vector<16x8xbf16> to vector<2x8x8xbf16>
    %288 = vector.extract_strided_slice %260 {offsets = [0, 72], sizes = [16, 8], strides = [1, 1]} : vector<16x96xbf16> to vector<16x8xbf16>
    %289 = vector.shape_cast %288 : vector<16x8xbf16> to vector<2x8x8xbf16>
    "tpu.trace_start"() <{level = 10 : i32, message = "bnd,bmd->bnm"}> : () -> ()
    %cst_121 = arith.constant dense<0.000000e+00> : vector<2x8x8xf32>
    %290 = tpu.matmul %285, %287, %cst_121 {dimension_numbers = #tpu.dot_dimension_numbers<[2], [2], [1], [1], [0, 0, 0, 1, 1, 1], [0], [0]>} : vector<2x8x8xbf16>, vector<2x8x8xbf16>, vector<2x8x8xf32> -> vector<2x8x8xf32>
    "tpu.trace_stop"() : () -> ()
    %291 = vector.shape_cast %40 : vector<8x8xf32> to vector<1x8x8xf32>
    %292 = vector.broadcast %291 : vector<1x8x8xf32> to vector<2x8x8xf32>
    %293 = arith.addf %290, %292 : vector<2x8x8xf32>
    %cst_122 = arith.constant dense<0xFF800000> : vector<2x8xf32>
    %294 = vector.multi_reduction <maximumf>, %293, %cst_122 [2] : vector<2x8x8xf32> to vector<2x8xf32>
    %295 = vector.shape_cast %294 : vector<2x8xf32> to vector<2x8x1xf32>
    %296 = vector.broadcast %295 : vector<2x8x1xf32> to vector<2x8x8xf32>
    %297 = arith.subf %293, %296 : vector<2x8x8xf32>
    %298 = math.exp %297 : vector<2x8x8xf32>
    %cst_123 = arith.constant dense<0.000000e+00> : vector<2x8xf32>
    %299 = vector.multi_reduction <add>, %298, %cst_123 [2] : vector<2x8x8xf32> to vector<2x8xf32>
    %300 = vector.shape_cast %299 : vector<2x8xf32> to vector<2x8x1xf32>
    %301 = tpu.reciprocal %300 {approx = true} : vector<2x8x1xf32> -> vector<2x8x1xf32>
    %302 = vector.broadcast %301 : vector<2x8x1xf32> to vector<2x8x8xf32>
    %303 = arith.mulf %298, %302 : vector<2x8x8xf32>
    %304 = arith.truncf %303 : vector<2x8x8xf32> to vector<2x8x8xbf16>
    "tpu.trace_start"() <{level = 10 : i32, message = "bnm,bmd->bnd"}> : () -> ()
    %cst_124 = arith.constant dense<0.000000e+00> : vector<2x8x8xf32>
    %305 = tpu.matmul %304, %289, %cst_124 {dimension_numbers = #tpu.dot_dimension_numbers<[2], [1], [1], [2], [0, 0, 0, 1, 1, 2], [0], [0]>} : vector<2x8x8xbf16>, vector<2x8x8xbf16>, vector<2x8x8xf32> -> vector<2x8x8xf32>
    "tpu.trace_stop"() : () -> ()
    %306 = vector.shape_cast %305 : vector<2x8x8xf32> to vector<16x8xf32>
    %307 = vector.extract_strided_slice %260 {offsets = [0, 16], sizes = [16, 8], strides = [1, 1]} : vector<16x96xbf16> to vector<16x8xbf16>
    %308 = vector.shape_cast %307 : vector<16x8xbf16> to vector<2x8x8xbf16>
    %309 = vector.extract_strided_slice %260 {offsets = [0, 48], sizes = [16, 8], strides = [1, 1]} : vector<16x96xbf16> to vector<16x8xbf16>
    %310 = vector.shape_cast %309 : vector<16x8xbf16> to vector<2x8x8xbf16>
    %311 = vector.extract_strided_slice %260 {offsets = [0, 80], sizes = [16, 8], strides = [1, 1]} : vector<16x96xbf16> to vector<16x8xbf16>
    %312 = vector.shape_cast %311 : vector<16x8xbf16> to vector<2x8x8xbf16>
    "tpu.trace_start"() <{level = 10 : i32, message = "bnd,bmd->bnm"}> : () -> ()
    %cst_125 = arith.constant dense<0.000000e+00> : vector<2x8x8xf32>
    %313 = tpu.matmul %308, %310, %cst_125 {dimension_numbers = #tpu.dot_dimension_numbers<[2], [2], [1], [1], [0, 0, 0, 1, 1, 1], [0], [0]>} : vector<2x8x8xbf16>, vector<2x8x8xbf16>, vector<2x8x8xf32> -> vector<2x8x8xf32>
    "tpu.trace_stop"() : () -> ()
    %314 = vector.shape_cast %40 : vector<8x8xf32> to vector<1x8x8xf32>
    %315 = vector.broadcast %314 : vector<1x8x8xf32> to vector<2x8x8xf32>
    %316 = arith.addf %313, %315 : vector<2x8x8xf32>
    %cst_126 = arith.constant dense<0xFF800000> : vector<2x8xf32>
    %317 = vector.multi_reduction <maximumf>, %316, %cst_126 [2] : vector<2x8x8xf32> to vector<2x8xf32>
    %318 = vector.shape_cast %317 : vector<2x8xf32> to vector<2x8x1xf32>
    %319 = vector.broadcast %318 : vector<2x8x1xf32> to vector<2x8x8xf32>
    %320 = arith.subf %316, %319 : vector<2x8x8xf32>
    %321 = math.exp %320 : vector<2x8x8xf32>
    %cst_127 = arith.constant dense<0.000000e+00> : vector<2x8xf32>
    %322 = vector.multi_reduction <add>, %321, %cst_127 [2] : vector<2x8x8xf32> to vector<2x8xf32>
    %323 = vector.shape_cast %322 : vector<2x8xf32> to vector<2x8x1xf32>
    %324 = tpu.reciprocal %323 {approx = true} : vector<2x8x1xf32> -> vector<2x8x1xf32>
    %325 = vector.broadcast %324 : vector<2x8x1xf32> to vector<2x8x8xf32>
    %326 = arith.mulf %321, %325 : vector<2x8x8xf32>
    %327 = arith.truncf %326 : vector<2x8x8xf32> to vector<2x8x8xbf16>
    "tpu.trace_start"() <{level = 10 : i32, message = "bnm,bmd->bnd"}> : () -> ()
    %cst_128 = arith.constant dense<0.000000e+00> : vector<2x8x8xf32>
    %328 = tpu.matmul %327, %312, %cst_128 {dimension_numbers = #tpu.dot_dimension_numbers<[2], [1], [1], [2], [0, 0, 0, 1, 1, 2], [0], [0]>} : vector<2x8x8xbf16>, vector<2x8x8xbf16>, vector<2x8x8xf32> -> vector<2x8x8xf32>
    "tpu.trace_stop"() : () -> ()
    %329 = vector.shape_cast %328 : vector<2x8x8xf32> to vector<16x8xf32>
    %330 = vector.extract_strided_slice %260 {offsets = [0, 24], sizes = [16, 8], strides = [1, 1]} : vector<16x96xbf16> to vector<16x8xbf16>
    %331 = vector.shape_cast %330 : vector<16x8xbf16> to vector<2x8x8xbf16>
    %332 = vector.extract_strided_slice %260 {offsets = [0, 56], sizes = [16, 8], strides = [1, 1]} : vector<16x96xbf16> to vector<16x8xbf16>
    %333 = vector.shape_cast %332 : vector<16x8xbf16> to vector<2x8x8xbf16>
    %334 = vector.extract_strided_slice %260 {offsets = [0, 88], sizes = [16, 8], strides = [1, 1]} : vector<16x96xbf16> to vector<16x8xbf16>
    %335 = vector.shape_cast %334 : vector<16x8xbf16> to vector<2x8x8xbf16>
    "tpu.trace_start"() <{level = 10 : i32, message = "bnd,bmd->bnm"}> : () -> ()
    %cst_129 = arith.constant dense<0.000000e+00> : vector<2x8x8xf32>
    %336 = tpu.matmul %331, %333, %cst_129 {dimension_numbers = #tpu.dot_dimension_numbers<[2], [2], [1], [1], [0, 0, 0, 1, 1, 1], [0], [0]>} : vector<2x8x8xbf16>, vector<2x8x8xbf16>, vector<2x8x8xf32> -> vector<2x8x8xf32>
    "tpu.trace_stop"() : () -> ()
    %337 = vector.shape_cast %40 : vector<8x8xf32> to vector<1x8x8xf32>
    %338 = vector.broadcast %337 : vector<1x8x8xf32> to vector<2x8x8xf32>
    %339 = arith.addf %336, %338 : vector<2x8x8xf32>
    %cst_130 = arith.constant dense<0xFF800000> : vector<2x8xf32>
    %340 = vector.multi_reduction <maximumf>, %339, %cst_130 [2] : vector<2x8x8xf32> to vector<2x8xf32>
    %341 = vector.shape_cast %340 : vector<2x8xf32> to vector<2x8x1xf32>
    %342 = vector.broadcast %341 : vector<2x8x1xf32> to vector<2x8x8xf32>
    %343 = arith.subf %339, %342 : vector<2x8x8xf32>
    %344 = math.exp %343 : vector<2x8x8xf32>
    %cst_131 = arith.constant dense<0.000000e+00> : vector<2x8xf32>
    %345 = vector.multi_reduction <add>, %344, %cst_131 [2] : vector<2x8x8xf32> to vector<2x8xf32>
    %346 = vector.shape_cast %345 : vector<2x8xf32> to vector<2x8x1xf32>
    %347 = tpu.reciprocal %346 {approx = true} : vector<2x8x1xf32> -> vector<2x8x1xf32>
    %348 = vector.broadcast %347 : vector<2x8x1xf32> to vector<2x8x8xf32>
    %349 = arith.mulf %344, %348 : vector<2x8x8xf32>
    %350 = arith.truncf %349 : vector<2x8x8xf32> to vector<2x8x8xbf16>
    "tpu.trace_start"() <{level = 10 : i32, message = "bnm,bmd->bnd"}> : () -> ()
    %cst_132 = arith.constant dense<0.000000e+00> : vector<2x8x8xf32>
    %351 = tpu.matmul %350, %335, %cst_132 {dimension_numbers = #tpu.dot_dimension_numbers<[2], [1], [1], [2], [0, 0, 0, 1, 1, 2], [0], [0]>} : vector<2x8x8xbf16>, vector<2x8x8xbf16>, vector<2x8x8xf32> -> vector<2x8x8xf32>
    "tpu.trace_stop"() : () -> ()
    %352 = vector.shape_cast %351 : vector<2x8x8xf32> to vector<16x8xf32>
    %353 = tpu.concatenate %283, %306, %329, %352 in 1 : vector<16x8xf32>, vector<16x8xf32>, vector<16x8xf32>, vector<16x8xf32> -> vector<16x32xf32>
    %354 = arith.truncf %353 : vector<16x32xf32> to vector<16x32xbf16>
    %c1_133 = arith.constant 1 : index
    %c0_134 = arith.constant 0 : index
    %c0_135 = arith.constant 0 : index
    %355 = vector.load %arg9[%c1_133, %c0_134, %c0_135] : memref<2x32x32xbf16, #tpu.memory_space<vmem>>, vector<1x32x32xbf16>
    %356 = vector.shape_cast %355 : vector<1x32x32xbf16> to vector<32x32xbf16>
    %cst_136 = arith.constant dense<0.000000e+00> : vector<16x32xf32>
    %357 = tpu.matmul %354, %356, %cst_136 {dimension_numbers = #tpu.dot_dimension_numbers<[1], [0], [0], [1], [0, 0, 1, 1], [], []>} : vector<16x32xbf16>, vector<32x32xbf16>, vector<16x32xf32> -> vector<16x32xf32>
    %c1_137 = arith.constant 1 : index
    %c0_138 = arith.constant 0 : index
    %c0_139 = arith.constant 0 : index
    %358 = vector.load %arg10[%c1_137, %c0_138, %c0_139] : memref<2x1x32xf32, #tpu.memory_space<vmem>>, vector<1x1x32xf32>
    %359 = vector.shape_cast %358 : vector<1x1x32xf32> to vector<1x32xf32>
    %360 = vector.broadcast %359 : vector<1x32xf32> to vector<16x32xf32>
    %361 = arith.addf %357, %360 : vector<16x32xf32>
    %362 = arith.addf %229, %361 : vector<16x32xf32>
    %363 = vector.shape_cast %362 : vector<16x32xf32> to vector<2x8x32xf32>
    %364 = vector.extract_strided_slice %363 {offsets = [0, 0, 0], sizes = [1, 1, 32], strides = [1, 1, 1]} : vector<2x8x32xf32> to vector<1x1x32xf32>
    %365 = vector.shape_cast %364 : vector<1x1x32xf32> to vector<1x32xf32>
    %366 = vector.extract_strided_slice %363 {offsets = [1, 0, 0], sizes = [1, 1, 32], strides = [1, 1, 1]} : vector<2x8x32xf32> to vector<1x1x32xf32>
    %367 = vector.shape_cast %366 : vector<1x1x32xf32> to vector<1x32xf32>
    %368 = tpu.concatenate %365, %367 in 0 : vector<1x32xf32>, vector<1x32xf32> -> vector<2x32xf32>
    %c1_140 = arith.constant 1 : index
    %c0_141 = arith.constant 0 : index
    %c0_142 = arith.constant 0 : index
    %369 = vector.load %arg11[%c1_140, %c0_141, %c0_142] : memref<2x1x32xf32, #tpu.memory_space<vmem>>, vector<1x1x32xf32>
    %370 = vector.shape_cast %369 : vector<1x1x32xf32> to vector<1x32xf32>
    %c1_143 = arith.constant 1 : index
    %c0_144 = arith.constant 0 : index
    %c0_145 = arith.constant 0 : index
    %371 = vector.load %arg12[%c1_143, %c0_144, %c0_145] : memref<2x1x32xf32, #tpu.memory_space<vmem>>, vector<1x1x32xf32>
    %372 = vector.shape_cast %371 : vector<1x1x32xf32> to vector<1x32xf32>
    %cst_146 = arith.constant dense<0.000000e+00> : vector<2xf32>
    %373 = vector.multi_reduction <add>, %368, %cst_146 [1] : vector<2x32xf32> to vector<2xf32>
    %374 = vector.shape_cast %373 : vector<2xf32> to vector<2x1xf32>
    %cst_147 = arith.constant 3.200000e+01 : f32
    %375 = vector.broadcast %cst_147 : f32 to vector<2x1xf32>
    %376 = arith.divf %374, %375 : vector<2x1xf32>
    %377 = vector.broadcast %376 : vector<2x1xf32> to vector<2x32xf32>
    %378 = arith.subf %368, %377 : vector<2x32xf32>
    %379 = arith.mulf %378, %378 : vector<2x32xf32>
    %cst_148 = arith.constant dense<0.000000e+00> : vector<2xf32>
    %380 = vector.multi_reduction <add>, %379, %cst_148 [1] : vector<2x32xf32> to vector<2xf32>
    %381 = vector.shape_cast %380 : vector<2xf32> to vector<2x1xf32>
    %cst_149 = arith.constant 3.200000e+01 : f32
    %382 = vector.broadcast %cst_149 : f32 to vector<2x1xf32>
    %383 = arith.divf %381, %382 : vector<2x1xf32>
    %384 = vector.broadcast %376 : vector<2x1xf32> to vector<2x32xf32>
    %385 = arith.subf %368, %384 : vector<2x32xf32>
    %cst_150 = arith.constant 9.99999974E-6 : f32
    %386 = vector.broadcast %cst_150 : f32 to vector<2x1xf32>
    %387 = arith.addf %383, %386 : vector<2x1xf32>
    %388 = math.rsqrt %387 : vector<2x1xf32>
    %389 = vector.broadcast %388 : vector<2x1xf32> to vector<2x32xf32>
    %390 = arith.mulf %385, %389 : vector<2x32xf32>
    %391 = vector.broadcast %370 : vector<1x32xf32> to vector<2x32xf32>
    %392 = arith.mulf %390, %391 : vector<2x32xf32>
    %393 = vector.broadcast %372 : vector<1x32xf32> to vector<2x32xf32>
    %394 = arith.addf %392, %393 : vector<2x32xf32>
    %395 = arith.truncf %394 : vector<2x32xf32> to vector<2x32xbf16>
    %c1_151 = arith.constant 1 : index
    %c0_152 = arith.constant 0 : index
    %c0_153 = arith.constant 0 : index
    %396 = vector.load %arg13[%c1_151, %c0_152, %c0_153] : memref<2x32x128xbf16, #tpu.memory_space<vmem>>, vector<1x32x128xbf16>
    %397 = vector.shape_cast %396 : vector<1x32x128xbf16> to vector<32x128xbf16>
    %cst_154 = arith.constant dense<0.000000e+00> : vector<2x128xf32>
    %398 = tpu.matmul %395, %397, %cst_154 {dimension_numbers = #tpu.dot_dimension_numbers<[1], [0], [0], [1], [0, 0, 1, 1], [], []>} : vector<2x32xbf16>, vector<32x128xbf16>, vector<2x128xf32> -> vector<2x128xf32>
    %c1_155 = arith.constant 1 : index
    %c0_156 = arith.constant 0 : index
    %c0_157 = arith.constant 0 : index
    %399 = vector.load %arg14[%c1_155, %c0_156, %c0_157] : memref<2x1x128xf32, #tpu.memory_space<vmem>>, vector<1x1x128xf32>
    %400 = vector.shape_cast %399 : vector<1x1x128xf32> to vector<1x128xf32>
    %401 = vector.broadcast %400 : vector<1x128xf32> to vector<2x128xf32>
    %402 = arith.addf %398, %401 : vector<2x128xf32>
    %cst_158 = arith.constant 5.000000e-01 : f32
    %403 = vector.broadcast %cst_158 : f32 to vector<2x128xf32>
    %404 = arith.mulf %403, %402 : vector<2x128xf32>
    %cst_159 = arith.constant 4.471500e-02 : f32
    %405 = vector.broadcast %cst_159 : f32 to vector<2x128xf32>
    %406 = arith.mulf %405, %402 : vector<2x128xf32>
    %407 = arith.mulf %406, %402 : vector<2x128xf32>
    %408 = arith.mulf %407, %402 : vector<2x128xf32>
    %409 = arith.addf %402, %408 : vector<2x128xf32>
    %cst_160 = arith.constant 0.797884583 : f32
    %410 = vector.broadcast %cst_160 : f32 to vector<2x128xf32>
    %411 = arith.mulf %410, %409 : vector<2x128xf32>
    %412 = math.tanh %411 : vector<2x128xf32>
    %cst_161 = arith.constant 1.000000e+00 : f32
    %413 = vector.broadcast %cst_161 : f32 to vector<2x128xf32>
    %414 = arith.addf %413, %412 : vector<2x128xf32>
    %415 = arith.mulf %404, %414 : vector<2x128xf32>
    %416 = arith.truncf %415 : vector<2x128xf32> to vector<2x128xbf16>
    %c1_162 = arith.constant 1 : index
    %c0_163 = arith.constant 0 : index
    %c0_164 = arith.constant 0 : index
    %417 = vector.load %arg15[%c1_162, %c0_163, %c0_164] : memref<2x128x32xbf16, #tpu.memory_space<vmem>>, vector<1x128x32xbf16>
    %418 = vector.shape_cast %417 : vector<1x128x32xbf16> to vector<128x32xbf16>
    %cst_165 = arith.constant dense<0.000000e+00> : vector<2x32xf32>
    %419 = tpu.matmul %416, %418, %cst_165 {dimension_numbers = #tpu.dot_dimension_numbers<[1], [0], [0], [1], [0, 0, 1, 1], [], []>} : vector<2x128xbf16>, vector<128x32xbf16>, vector<2x32xf32> -> vector<2x32xf32>
    %c1_166 = arith.constant 1 : index
    %c0_167 = arith.constant 0 : index
    %c0_168 = arith.constant 0 : index
    %420 = vector.load %arg16[%c1_166, %c0_167, %c0_168] : memref<2x1x32xf32, #tpu.memory_space<vmem>>, vector<1x1x32xf32>
    %421 = vector.shape_cast %420 : vector<1x1x32xf32> to vector<1x32xf32>
    %422 = vector.broadcast %421 : vector<1x32xf32> to vector<2x32xf32>
    %423 = arith.addf %419, %422 : vector<2x32xf32>
    %424 = arith.addf %394, %423 : vector<2x32xf32>
    %c0_169 = arith.constant 0 : index
    %c0_170 = arith.constant 0 : index
    %425 = vector.load %arg17[%c0_169, %c0_170] : memref<1x32xf32, #tpu.memory_space<vmem>>, vector<1x32xf32>
    %c0_171 = arith.constant 0 : index
    %c0_172 = arith.constant 0 : index
    %426 = vector.load %arg18[%c0_171, %c0_172] : memref<1x32xf32, #tpu.memory_space<vmem>>, vector<1x32xf32>
    %cst_173 = arith.constant dense<0.000000e+00> : vector<2xf32>
    %427 = vector.multi_reduction <add>, %424, %cst_173 [1] : vector<2x32xf32> to vector<2xf32>
    %428 = vector.shape_cast %427 : vector<2xf32> to vector<2x1xf32>
    %cst_174 = arith.constant 3.200000e+01 : f32
    %429 = vector.broadcast %cst_174 : f32 to vector<2x1xf32>
    %430 = arith.divf %428, %429 : vector<2x1xf32>
    %431 = vector.broadcast %430 : vector<2x1xf32> to vector<2x32xf32>
    %432 = arith.subf %424, %431 : vector<2x32xf32>
    %433 = arith.mulf %432, %432 : vector<2x32xf32>
    %cst_175 = arith.constant dense<0.000000e+00> : vector<2xf32>
    %434 = vector.multi_reduction <add>, %433, %cst_175 [1] : vector<2x32xf32> to vector<2xf32>
    %435 = vector.shape_cast %434 : vector<2xf32> to vector<2x1xf32>
    %cst_176 = arith.constant 3.200000e+01 : f32
    %436 = vector.broadcast %cst_176 : f32 to vector<2x1xf32>
    %437 = arith.divf %435, %436 : vector<2x1xf32>
    %438 = vector.broadcast %430 : vector<2x1xf32> to vector<2x32xf32>
    %439 = arith.subf %424, %438 : vector<2x32xf32>
    %cst_177 = arith.constant 9.99999974E-6 : f32
    %440 = vector.broadcast %cst_177 : f32 to vector<2x1xf32>
    %441 = arith.addf %437, %440 : vector<2x1xf32>
    %442 = math.rsqrt %441 : vector<2x1xf32>
    %443 = vector.broadcast %442 : vector<2x1xf32> to vector<2x32xf32>
    %444 = arith.mulf %439, %443 : vector<2x32xf32>
    %445 = vector.broadcast %425 : vector<1x32xf32> to vector<2x32xf32>
    %446 = arith.mulf %444, %445 : vector<2x32xf32>
    %447 = vector.broadcast %426 : vector<1x32xf32> to vector<2x32xf32>
    %448 = arith.addf %446, %447 : vector<2x32xf32>
    %449 = arith.truncf %448 : vector<2x32xf32> to vector<2x32xbf16>
    %c0_178 = arith.constant 0 : index
    %c0_179 = arith.constant 0 : index
    %450 = vector.load %arg19[%c0_178, %c0_179] : memref<32x128xbf16, #tpu.memory_space<vmem>>, vector<32x128xbf16>
    %cst_180 = arith.constant dense<0.000000e+00> : vector<2x128xf32>
    %451 = tpu.matmul %449, %450, %cst_180 {dimension_numbers = #tpu.dot_dimension_numbers<[1], [0], [0], [1], [0, 0, 1, 1], [], []>} : vector<2x32xbf16>, vector<32x128xbf16>, vector<2x128xf32> -> vector<2x128xf32>
    %c0_181 = arith.constant 0 : index
    %c0_182 = arith.constant 0 : index
    %452 = vector.load %arg20[%c0_181, %c0_182] : memref<1x128xf32, #tpu.memory_space<vmem>>, vector<1x128xf32>
    %453 = vector.broadcast %452 : vector<1x128xf32> to vector<2x128xf32>
    %454 = arith.addf %451, %453 : vector<2x128xf32>
    %c0_183 = arith.constant 0 : index
    %c0_184 = arith.constant 0 : index
    %455 = vector.load %arg21[%c0_183, %c0_184] : memref<2x128xf32, #tpu.memory_space<vmem>>, vector<2x128xf32>
    tpu.vector_store %arg21[%c0_183, %c0_184], %454 {strides = array<i32>} : memref<2x128xf32, #tpu.memory_space<vmem>>, vector<2x128xf32>,
    return
  }
  func.func @transform_0(%arg0: i32) -> (i32, i32) {
    %c0_i32 = arith.constant 0 : i32
    %c0_i32_0 = arith.constant 0 : i32
    return %arg0, %c0_i32 : i32, i32
  }
  func.func @transform_1(%arg0: i32) -> (i32, i32) {
    %c0_i32 = arith.constant 0 : i32
    %c0_i32_0 = arith.constant 0 : i32
    %c0_i32_1 = arith.constant 0 : i32
    return %c0_i32, %c0_i32_0 : i32, i32
  }
  func.func @transform_2(%arg0: i32) -> (i32, i32) {
    %c0_i32 = arith.constant 0 : i32
    %c0_i32_0 = arith.constant 0 : i32
    %c0_i32_1 = arith.constant 0 : i32
    return %c0_i32, %c0_i32_0 : i32, i32
  }
  func.func @transform_3(%arg0: i32) -> (i32, i32) {
    %c0_i32 = arith.constant 0 : i32
    %c0_i32_0 = arith.constant 0 : i32
    %c0_i32_1 = arith.constant 0 : i32
    return %c0_i32, %c0_i32_0 : i32, i32
  }
  func.func @transform_4(%arg0: i32) -> (i32, i32) {
    %c0_i32 = arith.constant 0 : i32
    %c0_i32_0 = arith.constant 0 : i32
    %c0_i32_1 = arith.constant 0 : i32
    return %c0_i32, %c0_i32_0 : i32, i32
  }
  func.func @transform_5(%arg0: i32) -> (i32, i32, i32) {
    %c0_i32 = arith.constant 0 : i32
    %c0_i32_0 = arith.constant 0 : i32
    %c0_i32_1 = arith.constant 0 : i32
    %c0_i32_2 = arith.constant 0 : i32
    return %c0_i32, %c0_i32_0, %c0_i32_1 : i32, i32, i32
  }
  func.func @transform_6(%arg0: i32) -> (i32, i32, i32) {
    %c0_i32 = arith.constant 0 : i32
    %c0_i32_0 = arith.constant 0 : i32
    %c0_i32_1 = arith.constant 0 : i32
    %c0_i32_2 = arith.constant 0 : i32
    return %c0_i32, %c0_i32_0, %c0_i32_1 : i32, i32, i32
  }
  func.func @transform_7(%arg0: i32) -> (i32, i32, i32) {
    %c0_i32 = arith.constant 0 : i32
    %c0_i32_0 = arith.constant 0 : i32
    %c0_i32_1 = arith.constant 0 : i32
    %c0_i32_2 = arith.constant 0 : i32
    return %c0_i32, %c0_i32_0, %c0_i32_1 : i32, i32, i32
  }
  func.func @transform_8(%arg0: i32) -> (i32, i32, i32) {
    %c0_i32 = arith.constant 0 : i32
    %c0_i32_0 = arith.constant 0 : i32
    %c0_i32_1 = arith.constant 0 : i32
    %c0_i32_2 = arith.constant 0 : i32
    return %c0_i32, %c0_i32_0, %c0_i32_1 : i32, i32, i32
  }
  func.func @transform_9(%arg0: i32) -> (i32, i32, i32) {
    %c0_i32 = arith.constant 0 : i32
    %c0_i32_0 = arith.constant 0 : i32
    %c0_i32_1 = arith.constant 0 : i32
    %c0_i32_2 = arith.constant 0 : i32
    return %c0_i32, %c0_i32_0, %c0_i32_1 : i32, i32, i32
  }
  func.func @transform_10(%arg0: i32) -> (i32, i32, i32) {
    %c0_i32 = arith.constant 0 : i32
    %c0_i32_0 = arith.constant 0 : i32
    %c0_i32_1 = arith.constant 0 : i32
    %c0_i32_2 = arith.constant 0 : i32
    return %c0_i32, %c0_i32_0, %c0_i32_1 : i32, i32, i32
  }
  func.func @transform_11(%arg0: i32) -> (i32, i32, i32) {
    %c0_i32 = arith.constant 0 : i32
    %c0_i32_0 = arith.constant 0 : i32
    %c0_i32_1 = arith.constant 0 : i32
    %c0_i32_2 = arith.constant 0 : i32
    return %c0_i32, %c0_i32_0, %c0_i32_1 : i32, i32, i32
  }
  func.func @transform_12(%arg0: i32) -> (i32, i32, i32) {
    %c0_i32 = arith.constant 0 : i32
    %c0_i32_0 = arith.constant 0 : i32
    %c0_i32_1 = arith.constant 0 : i32
    %c0_i32_2 = arith.constant 0 : i32
    return %c0_i32, %c0_i32_0, %c0_i32_1 : i32, i32, i32
  }
  func.func @transform_13(%arg0: i32) -> (i32, i32, i32) {
    %c0_i32 = arith.constant 0 : i32
    %c0_i32_0 = arith.constant 0 : i32
    %c0_i32_1 = arith.constant 0 : i32
    %c0_i32_2 = arith.constant 0 : i32
    return %c0_i32, %c0_i32_0, %c0_i32_1 : i32, i32, i32
  }
  func.func @transform_14(%arg0: i32) -> (i32, i32, i32) {
    %c0_i32 = arith.constant 0 : i32
    %c0_i32_0 = arith.constant 0 : i32
    %c0_i32_1 = arith.constant 0 : i32
    %c0_i32_2 = arith.constant 0 : i32
    return %c0_i32, %c0_i32_0, %c0_i32_1 : i32, i32, i32
  }
  func.func @transform_15(%arg0: i32) -> (i32, i32, i32) {
    %c0_i32 = arith.constant 0 : i32
    %c0_i32_0 = arith.constant 0 : i32
    %c0_i32_1 = arith.constant 0 : i32
    %c0_i32_2 = arith.constant 0 : i32
    return %c0_i32, %c0_i32_0, %c0_i32_1 : i32, i32, i32
  }
  func.func @transform_16(%arg0: i32) -> (i32, i32) {
    %c0_i32 = arith.constant 0 : i32
    %c0_i32_0 = arith.constant 0 : i32
    %c0_i32_1 = arith.constant 0 : i32
    return %c0_i32, %c0_i32_0 : i32, i32
  }
  func.func @transform_17(%arg0: i32) -> (i32, i32) {
    %c0_i32 = arith.constant 0 : i32
    %c0_i32_0 = arith.constant 0 : i32
    %c0_i32_1 = arith.constant 0 : i32
    return %c0_i32, %c0_i32_0 : i32, i32
  }
  func.func @transform_18(%arg0: i32) -> (i32, i32) {
    %c0_i32 = arith.constant 0 : i32
    %c0_i32_0 = arith.constant 0 : i32
    %c0_i32_1 = arith.constant 0 : i32
    return %c0_i32, %c0_i32_0 : i32, i32
  }
  func.func @transform_19(%arg0: i32) -> (i32, i32) {
    %c0_i32 = arith.constant 0 : i32
    %c0_i32_0 = arith.constant 0 : i32
    %c0_i32_1 = arith.constant 0 : i32
    return %c0_i32, %c0_i32_0 : i32, i32
  }
  func.func @transform_20(%arg0: i32) -> (i32, i32) {
    %c0_i32 = arith.constant 0 : i32
    %c0_i32_0 = arith.constant 0 : i32
    return %arg0, %c0_i32 : i32, i32
  }
}

</mosaic_0001>

<llo_original>
// kernel: tpu_custom_call.1
$region0: #{tpu_custom_call.1}
  #allocation0 [shape = 'u32[]', space=smem, size = 0x4, offset = 0x4, fixed_abs, tag = 'smem constant byte address 0x4 - core index']
  #allocation1 [shape = 'u32[144,128]{1,0:T(1,128)}', space=vmem, size = 0x12000, scoped, tag = 'internal scratch']
  #allocation2 [shape = 'f32[2,8,32]{2,1,0:T(8,128)}', space=vmem, size = 0x2000, scoped, tag = 'scratch operand']
  %s0 = inlined_call_operand.vmem [shape: bf16[8,256], index: 0, kind: input, shape index: {}]
  %s1 = inlined_call_operand.vmem [shape: bf16[256,32], index: 1, kind: input, shape index: {}]
  %s2 = inlined_call_operand.vmem [shape: f32[1,32], index: 2, kind: input, shape index: {}]
  %s3 = inlined_call_operand.vmem [shape: f32[1,32], index: 3, kind: input, shape index: {}]
  %s4 = inlined_call_operand.vmem [shape: f32[4,32], index: 4, kind: input, shape index: {}]
  %s5 = inlined_call_operand.vmem [shape: f32[2,1,32], index: 5, kind: input, shape index: {}]
  %s6 = inlined_call_operand.vmem [shape: f32[2,1,32], index: 6, kind: input, shape index: {}]
  %s7 = inlined_call_operand.vmem [shape: bf16[2,32,96], index: 7, kind: input, shape index: {}]
  %s8 = inlined_call_operand.vmem [shape: bf16[2,32,32], index: 8, kind: input, shape index: {}]
  %s9 = inlined_call_operand.vmem [shape: f32[2,1,32], index: 9, kind: input, shape index: {}]
  %s10 = inlined_call_operand.vmem [shape: f32[2,1,32], index: 10, kind: input, shape index: {}]
  %s11 = inlined_call_operand.vmem [shape: f32[2,1,32], index: 11, kind: input, shape index: {}]
  %s12 = inlined_call_operand.vmem [shape: bf16[2,32,128], index: 12, kind: input, shape index: {}]
  %s13 = inlined_call_operand.vmem [shape: f32[2,1,128], index: 13, kind: input, shape index: {}]
  %s14 = inlined_call_operand.vmem [shape: bf16[2,128,32], index: 14, kind: input, shape index: {}]
  %s15 = inlined_call_operand.vmem [shape: f32[2,1,32], index: 15, kind: input, shape index: {}]
  %s16 = inlined_call_operand.vmem [shape: f32[1,32], index: 16, kind: input, shape index: {}]
  %s17 = inlined_call_operand.vmem [shape: f32[1,32], index: 17, kind: input, shape index: {}]
  %s18 = inlined_call_operand.vmem [shape: bf16[32,128], index: 18, kind: input, shape index: {}]
  %s19 = inlined_call_operand.vmem [shape: f32[1,128], index: 19, kind: input, shape index: {}]
  %s20 = inlined_call_operand.hbm [shape: f32[2,128], index: 20, kind: output, shape index: {}]
  %s21 = sld [smem:[#allocation0]]
  $region90: #{tpu_custom_call.1} parent=0
    _
  %s23 = ssub.s32 1, %s21
  %s24 = scalar_select 0, %s23, %s21
  $region1: #{tpu_custom_call.1} parent=0
    #allocation3 [shape = 'u8[1024]{0}', space=vmem, size = 0x400, scoped, tag = 'output window, operand 0, single buffered']
    #allocation4 [shape = 's32[1]{0}', space=sflag, size = 0x4, scoped, tag = 'scoped memory for tpu_custom_call.1']
    %25 = vsyncpa [#allocation4], 0
    // Predicated region
    $region2: #{tpu_custom_call.1} parent=1 // pred_check
      _
    $region3: #{tpu_custom_call.1} parent=1 // pred_check_branch
      %27 = sbr.rel (0) target = $region5
    $region4: #{tpu_custom_call.1} parent=1 // pred_region
      _
    $region5: #{tpu_custom_call.1} parent=1 // pred_fallthru
      _
    // Predicated region
    $region6: #{tpu_custom_call.1} parent=1 // pred_check
      _
    $region7: #{tpu_custom_call.1} parent=1 // pred_check_branch
      %29 = sbr.rel (0) target = $region9
    $region8: #{tpu_custom_call.1} parent=1 // pred_region
      _
    $region9: #{tpu_custom_call.1} parent=1 // pred_fallthru
      _
    // Predicated region
    $region10: #{tpu_custom_call.1} parent=1 // pred_check
      _
    $region11: #{tpu_custom_call.1} parent=1 // pred_check_branch
      %31 = sbr.rel (0) target = $region13
    $region12: #{tpu_custom_call.1} parent=1 // pred_region
      _
    $region13: #{tpu_custom_call.1} parent=1 // pred_fallthru
      _
    // Predicated region
    $region14: #{tpu_custom_call.1} parent=1 // pred_check
      _
    $region15: #{tpu_custom_call.1} parent=1 // pred_check_branch
      %33 = sbr.rel (0) target = $region17
    $region16: #{tpu_custom_call.1} parent=1 // pred_region
      _
    $region17: #{tpu_custom_call.1} parent=1 // pred_fallthru
      _
    // Predicated region
    $region18: #{tpu_custom_call.1} parent=1 // pred_check
      _
    $region19: #{tpu_custom_call.1} parent=1 // pred_check_branch
      %35 = sbr.rel (0) target = $region21
    $region20: #{tpu_custom_call.1} parent=1 // pred_region
      _
    $region21: #{tpu_custom_call.1} parent=1 // pred_fallthru
      _
    // Predicated region
    $region22: #{tpu_custom_call.1} parent=1 // pred_check
      _
    $region23: #{tpu_custom_call.1} parent=1 // pred_check_branch
      %37 = sbr.rel (0) target = $region25
    $region24: #{tpu_custom_call.1} parent=1 // pred_region
      _
    $region25: #{tpu_custom_call.1} parent=1 // pred_fallthru
      _
    // Predicated region
    $region26: #{tpu_custom_call.1} parent=1 // pred_check
      _
    $region27: #{tpu_custom_call.1} parent=1 // pred_check_branch
      %39 = sbr.rel (0) target = $region29
    $region28: #{tpu_custom_call.1} parent=1 // pred_region
      _
    $region29: #{tpu_custom_call.1} parent=1 // pred_fallthru
      _
    // Predicated region
    $region30: #{tpu_custom_call.1} parent=1 // pred_check
      _
    $region31: #{tpu_custom_call.1} parent=1 // pred_check_branch
      %41 = sbr.rel (0) target = $region33
    $region32: #{tpu_custom_call.1} parent=1 // pred_region
      _
    $region33: #{tpu_custom_call.1} parent=1 // pred_fallthru
      _
    // Predicated region
    $region34: #{tpu_custom_call.1} parent=1 // pred_check
      _
    $region35: #{tpu_custom_call.1} parent=1 // pred_check_branch
      %43 = sbr.rel (0) target = $region37
    $region36: #{tpu_custom_call.1} parent=1 // pred_region
      _
    $region37: #{tpu_custom_call.1} parent=1 // pred_fallthru
      _
    // Predicated region
    $region38: #{tpu_custom_call.1} parent=1 // pred_check
      _
    $region39: #{tpu_custom_call.1} parent=1 // pred_check_branch
      %45 = sbr.rel (0) target = $region41
    $region40: #{tpu_custom_call.1} parent=1 // pred_region
      _
    $region41: #{tpu_custom_call.1} parent=1 // pred_fallthru
      _
    // Predicated region
    $region42: #{tpu_custom_call.1} parent=1 // pred_check
      _
    $region43: #{tpu_custom_call.1} parent=1 // pred_check_branch
      %47 = sbr.rel (0) target = $region45
    $region44: #{tpu_custom_call.1} parent=1 // pred_region
      _
    $region45: #{tpu_custom_call.1} parent=1 // pred_fallthru
      _
    // Predicated region
    $region46: #{tpu_custom_call.1} parent=1 // pred_check
      _
    $region47: #{tpu_custom_call.1} parent=1 // pred_check_branch
      %49 = sbr.rel (0) target = $region49
    $region48: #{tpu_custom_call.1} parent=1 // pred_region
      _
    $region49: #{tpu_custom_call.1} parent=1 // pred_fallthru
      _
    // Predicated region
    $region50: #{tpu_custom_call.1} parent=1 // pred_check
      _
    $region51: #{tpu_custom_call.1} parent=1 // pred_check_branch
      %51 = sbr.rel (0) target = $region53
    $region52: #{tpu_custom_call.1} parent=1 // pred_region
      _
    $region53: #{tpu_custom_call.1} parent=1 // pred_fallthru
      _
    // Predicated region
    $region54: #{tpu_custom_call.1} parent=1 // pred_check
      _
    $region55: #{tpu_custom_call.1} parent=1 // pred_check_branch
      %53 = sbr.rel (0) target = $region57
    $region56: #{tpu_custom_call.1} parent=1 // pred_region
      _
    $region57: #{tpu_custom_call.1} parent=1 // pred_fallthru
      _
    // Predicated region
    $region58: #{tpu_custom_call.1} parent=1 // pred_check
      _
    $region59: #{tpu_custom_call.1} parent=1 // pred_check_branch
      %55 = sbr.rel (0) target = $region61
    $region60: #{tpu_custom_call.1} parent=1 // pred_region
      _
    $region61: #{tpu_custom_call.1} parent=1 // pred_fallthru
      _
    // Predicated region
    $region62: #{tpu_custom_call.1} parent=1 // pred_check
      _
    $region63: #{tpu_custom_call.1} parent=1 // pred_check_branch
      %57 = sbr.rel (0) target = $region65
    $region64: #{tpu_custom_call.1} parent=1 // pred_region
      _
    $region65: #{tpu_custom_call.1} parent=1 // pred_fallthru
      _
    // Predicated region
    $region66: #{tpu_custom_call.1} parent=1 // pred_check
      _
    $region67: #{tpu_custom_call.1} parent=1 // pred_check_branch
      %59 = sbr.rel (0) target = $region69
    $region68: #{tpu_custom_call.1} parent=1 // pred_region
      _
    $region69: #{tpu_custom_call.1} parent=1 // pred_fallthru
      _
    // Predicated region
    $region70: #{tpu_custom_call.1} parent=1 // pred_check
      _
    $region71: #{tpu_custom_call.1} parent=1 // pred_check_branch
      %61 = sbr.rel (0) target = $region73
    $region72: #{tpu_custom_call.1} parent=1 // pred_region
      _
    $region73: #{tpu_custom_call.1} parent=1 // pred_fallthru
      _
    // Predicated region
    $region74: #{tpu_custom_call.1} parent=1 // pred_check
      _
    $region75: #{tpu_custom_call.1} parent=1 // pred_check_branch
      %63 = sbr.rel (0) target = $region77
    $region76: #{tpu_custom_call.1} parent=1 // pred_region
      _
    $region77: #{tpu_custom_call.1} parent=1 // pred_fallthru
      _
    // Predicated region
    $region78: #{tpu_custom_call.1} parent=1 // pred_check
      _
    $region79: #{tpu_custom_call.1} parent=1 // pred_check_branch
      %65 = sbr.rel (0) target = $region81
    $region80: #{tpu_custom_call.1} parent=1 // pred_region
      _
    $region81: #{tpu_custom_call.1} parent=1 // pred_fallthru
      _
    %v67 = vld [vmem:[%s0] sm:$0xff]
    %v68 = vld [vmem:[%s1] sm:$0xf]
    %v69 = vld [vmem:[%s1 + $0x4] sm:$0xf]
    %v70 = vld [vmem:[%s1 + $0x8] sm:$0xf]
    %v71 = vld [vmem:[%s1 + $0xc] sm:$0xf]
    %v72 = vld [vmem:[%s1 + $0x10] sm:$0xf]
    %v73 = vld [vmem:[%s1 + $0x14] sm:$0xf]
    %v74 = vld [vmem:[%s1 + $0x18] sm:$0xf]
    %v75 = vld [vmem:[%s1 + $0x1c] sm:$0xf]
    %v76 = vld [vmem:[%s1 + $0x20] sm:$0xf]
    %v77 = vld [vmem:[%s1 + $0x24] sm:$0xf]
    %v78 = vld [vmem:[%s1 + $0x28] sm:$0xf]
    %v79 = vld [vmem:[%s1 + $0x2c] sm:$0xf]
    %v80 = vld [vmem:[%s1 + $0x30] sm:$0xf]
    %v81 = vld [vmem:[%s1 + $0x34] sm:$0xf]
    %v82 = vld [vmem:[%s1 + $0x38] sm:$0xf]
    %v83 = vld [vmem:[%s1 + $0x3c] sm:$0xf]
    %v84 = vld [vmem:[%s1 + $0x40] sm:$0xf]
    %v85 = vld [vmem:[%s1 + $0x44] sm:$0xf]
    %v86 = vld [vmem:[%s1 + $0x48] sm:$0xf]
    %v87 = vld [vmem:[%s1 + $0x4c] sm:$0xf]
    %v88 = vld [vmem:[%s1 + $0x50] sm:$0xf]
    %v89 = vld [vmem:[%s1 + $0x54] sm:$0xf]
    %v90 = vld [vmem:[%s1 + $0x58] sm:$0xf]
    %v91 = vld [vmem:[%s1 + $0x5c] sm:$0xf]
    %v92 = vld [vmem:[%s1 + $0x60] sm:$0xf]
    %v93 = vld [vmem:[%s1 + $0x64] sm:$0xf]
    %v94 = vld [vmem:[%s1 + $0x68] sm:$0xf]
    %v95 = vld [vmem:[%s1 + $0x6c] sm:$0xf]
    %v96 = vld [vmem:[%s1 + $0x70] sm:$0xf]
    %v97 = vld [vmem:[%s1 + $0x74] sm:$0xf]
    %v98 = vld [vmem:[%s1 + $0x78] sm:$0xf]
    %v99 = vld [vmem:[%s1 + $0x7c] sm:$0xf]
    %v100 = vld [vmem:[%s2] sm:$0x1]
    %v102 = vlaneseq
    %v103 = vshrl.u32 %v102, 7
    %v104 = vsub.s32 0, %v103
    %v105 = vrot.slane %v100, %v104
    %v108 = vunpack.c.l.b16 %v67
    %v109 = vunpack.c.h.b16 %v67
    %v110 = vpack.c.b16 %v108, %v108
    %v111 = vpack.c.b16 %v109, %v109
    %v146 = vunpack.c.l.b16 %v68
    %v147 = vunpack.c.l.b16 %v69
    %v148 = vunpack.c.l.b16 %v70
    %v149 = vunpack.c.l.b16 %v71
    %v150 = vunpack.c.l.b16 %v72
    %v151 = vunpack.c.l.b16 %v73
    %v152 = vunpack.c.l.b16 %v74
    %v153 = vunpack.c.l.b16 %v75
    %v154 = vunpack.c.l.b16 %v76
    %v155 = vunpack.c.l.b16 %v77
    %v156 = vunpack.c.l.b16 %v78
    %v157 = vunpack.c.l.b16 %v79
    %v158 = vunpack.c.l.b16 %v80
    %v159 = vunpack.c.l.b16 %v81
    %v160 = vunpack.c.l.b16 %v82
    %v161 = vunpack.c.l.b16 %v83
    %v162 = vunpack.c.l.b16 %v84
    %v163 = vunpack.c.l.b16 %v85
    %v164 = vunpack.c.l.b16 %v86
    %v165 = vunpack.c.l.b16 %v87
    %v166 = vunpack.c.l.b16 %v88
    %v167 = vunpack.c.l.b16 %v89
    %v168 = vunpack.c.l.b16 %v90
    %v169 = vunpack.c.l.b16 %v91
    %v170 = vunpack.c.l.b16 %v92
    %v171 = vunpack.c.l.b16 %v93
    %v172 = vunpack.c.l.b16 %v94
    %v173 = vunpack.c.l.b16 %v95
    %v174 = vunpack.c.l.b16 %v96
    %v175 = vunpack.c.l.b16 %v97
    %v176 = vunpack.c.l.b16 %v98
    %v177 = vunpack.c.l.b16 %v99
    %v178 = vpack.c.b16 %v147, %v146
    %v179 = vpack.c.b16 %v149, %v148
    %v180 = vpack.c.b16 %v151, %v150
    %v181 = vpack.c.b16 %v153, %v152
    %v182 = vpack.c.b16 %v155, %v154
    %v183 = vpack.c.b16 %v157, %v156
    %v184 = vpack.c.b16 %v159, %v158
    %v185 = vpack.c.b16 %v161, %v160
    %v186 = vpack.c.b16 %v163, %v162
    %v187 = vpack.c.b16 %v165, %v164
    %v188 = vpack.c.b16 %v167, %v166
    %v189 = vpack.c.b16 %v169, %v168
    %v190 = vpack.c.b16 %v171, %v170
    %v191 = vpack.c.b16 %v173, %v172
    %v192 = vpack.c.b16 %v175, %v174
    %v193 = vpack.c.b16 %v177, %v176
    %210 = vmatprep.subr.bf16.mxu0 0
    %211 = vmatpush1.bf16.msra.mxu0 %v178
    %212 = vmatprep.subr.bf16.mxu0 0
    %213 = vmatpush1.bf16.msra.mxu0 %v179
    %214 = vmatprep.subr.bf16.mxu0 0
    %215 = vmatpush1.bf16.msra.mxu0 %v180
    %216 = vmatprep.subr.bf16.mxu0 0
    %217 = vmatpush1.bf16.msra.mxu0 %v181
    %218 = vmatprep.subr.bf16.mxu0 0
    %219 = vmatpush1.bf16.msra.mxu0 %v182
    %220 = vmatprep.subr.bf16.mxu0 0
    %221 = vmatpush1.bf16.msra.mxu0 %v183
    %222 = vmatprep.subr.bf16.mxu0 0
    %223 = vmatpush1.bf16.msra.mxu0 %v184
    %224 = vmatprep.subr.bf16.mxu0 0
    %225 = vmatpush1.bf16.msra.mxu0 %v185
    %226 = vmatprep.subr.bf16.mxu0 0
    %227 = vmatpush1.bf16.msra.mxu0 %v186
    %228 = vmatprep.subr.bf16.mxu0 0
    %229 = vmatpush1.bf16.msra.mxu0 %v187
    %230 = vmatprep.subr.bf16.mxu0 0
    %231 = vmatpush1.bf16.msra.mxu0 %v188
    %232 = vmatprep.subr.bf16.mxu0 0
    %233 = vmatpush1.bf16.msra.mxu0 %v189
    %234 = vmatprep.subr.bf16.mxu0 0
    %235 = vmatpush1.bf16.msra.mxu0 %v190
    %236 = vmatprep.subr.bf16.mxu0 0
    %237 = vmatpush1.bf16.msra.mxu0 %v191
    %238 = vmatprep.subr.bf16.mxu0 0
    %239 = vmatpush1.bf16.msra.mxu0 %v192
    %240 = vmatprep.subr.bf16.mxu0 0
    %241 = vmatpush1.bf16.msra.mxu0 %v193
    %242 = vmatprep.mubr.bf16.mxu0 %v111
    %243 = vmatmul.mubr.bf16.gmra.mrb[0].mxu0 %v110
    %v244 = vpop.f32.mrb[0].mxu0
    %v245 = vadd.f32 %v105, %v244
    %v246 = vpop.f32.mrb[0].mxu0
    %v247 = vpop.f32.mrb[0].mxu0
    %v248 = vpop.f32.mrb[0].mxu0
    %249 = vdwg.mxu0
    %v250 = vld [vmem:[%s3] sm:$0x1]
    %vm251 = vcmask 253952
    %252 = vst.msk [vmem:[#allocation2] sm:$0x1] %vm251, %v250
    %v253 = vld [vmem:[%s4] sm:$0xf]
    %v254 = vadd.f32 %v245, %v253
    %vm255 = vcmask 257024
    %256 = vst.msk [vmem:[#allocation2 + $0x1] sm:$0xf] %vm255, %v254
    %vm257 = vcmask 256000
    %258 = vst.msk [vmem:[#allocation2 + $0x5] sm:$0x7] %vm257, 0.0
    %v259 = vld [vmem:[%s3] sm:$0x1]
    %s260 = scalar_lea.vmem [#allocation2], 8
    %261 = vst.msk [vmem:[%s260] sm:$0x1] %vm251, %v259
    %v262 = vld [vmem:[%s4] sm:$0xf]
    %v264 = vrot.slane %v262, 4
    %v266 = vadd.f32 %v245, %v264
    %vm267 = vcmask 261124
    %268 = vst.msk [vmem:[%s260 - $0x3] sm:$0xf0] %vm267, %v266
    %269 = vst.msk [vmem:[%s260 + $0x5] sm:$0x7] %vm257, 0.0
    %v270 = vld [vmem:[#allocation2] sm:$0xff]
    %v271 = vld [vmem:[#allocation2 + $0x8] sm:$0xff]
    %v272 = vlaneseq
    %v273 = vand.u32 %v272, 127
    %vm274 = vcmp.lt.s32.totalorder %v273, 5
    %v275 = vsel %vm274, 0.0, -1e+30
    %v276 = vld [vmem:[%s5] sm:$0x1]
    %v277 = vld [vmem:[%s6] sm:$0x1]
    %vm278 = vcmask 261120
    %v279 = vsel %vm278, %v270, 0.0
    %280 = vadd.xlane.f32.xlu0 %v279
    %v281 = vpop.xlane.xlu0 %280
    %v282 = vsel %vm278, %v271, 0.0
    %283 = vadd.xlane.f32.xlu0 %v282
    %v284 = vpop.xlane.xlu0 %283
    %v285 = vrcp.pop 32.0
    %v286 = vmul.f32 %v281, %v285
    %v287 = vmul.f32 %v284, %v285
    %v288 = vsub.f32 %v270, %v286
    %v289 = vsub.f32 %v271, %v287
    %v290 = vmul.f32 %v288, %v288
    %v291 = vmul.f32 %v289, %v289
    %v292 = vsel %vm278, %v290, 0.0
    %293 = vadd.xlane.f32.xlu0 %v292
    %v294 = vpop.xlane.xlu0 %293
    %v295 = vsel %vm278, %v291, 0.0
    %296 = vadd.xlane.f32.xlu0 %v295
    %v297 = vpop.xlane.xlu0 %296
    %v298 = vmul.f32 %v294, %v285
    %v299 = vmul.f32 %v297, %v285
    %v300 = vadd.f32 %v298, 1e-05
    %v301 = vadd.f32 %v299, 1e-05
    %v302 = vrsqrt.pop %v300
    %v303 = vrsqrt.pop %v301
    %v304 = vmul.f32 %v288, %v302
    %v305 = vmul.f32 %v289, %v303
    %v307 = vlaneseq
    %v308 = vshrl.u32 %v307, 7
    %v309 = vsub.s32 0, %v308
    %v310 = vrot.slane %v276, %v309
    %v312 = vmul.f32 %v304, %v310
    %v313 = vmul.f32 %v305, %v310
    %v315 = vlaneseq
    %v316 = vshrl.u32 %v315, 7
    %v317 = vsub.s32 0, %v316
    %v318 = vrot.slane %v277, %v317
    %v320 = vadd.f32 %v312, %v318
    %v321 = vadd.f32 %v313, %v318
    %v322 = vpack.c.bf16 %v321, %v320
    %v323 = vld [vmem:[%s7] sm:$0xf]
    %v324 = vld [vmem:[%s7 + $0x4] sm:$0xf]
    %v325 = vld [vmem:[%s7 + $0x8] sm:$0xf]
    %v326 = vld [vmem:[%s7 + $0xc] sm:$0xf]
    %v331 = vunpack.c.l.b16 %v323
    %v332 = vunpack.c.l.b16 %v324
    %v333 = vunpack.c.l.b16 %v325
    %v334 = vunpack.c.l.b16 %v326
    %v335 = vpack.c.b16 %v332, %v331
    %v336 = vpack.c.b16 %v334, %v333
    %v340 = vsel %vm278, %v322, 0
    %342 = vmatprep.subr.bf16.mxu0 0
    %343 = vmatpush1.bf16.msra.mxu0 %v335
    %344 = vmatprep.subr.bf16.mxu0 0
    %345 = vmatpush1.bf16.msra.mxu0 %v336
    %346 = vmatprep.subr.bf16.mxu0 0
    %347 = vmatpush1.bf16.msra.mxu0 0
    %348 = vmatprep.subr.bf16.mxu0 0
    %349 = vmatpush1.bf16.msra.mxu0 0
    %350 = vmatprep.subr.bf16.mxu0 0
    %351 = vmatpush1.bf16.msra.mxu0 0
    %352 = vmatprep.subr.bf16.mxu0 0
    %353 = vmatpush1.bf16.msra.mxu0 0
    %354 = vmatprep.subr.bf16.mxu0 0
    %355 = vmatpush1.bf16.msra.mxu0 0
    %356 = vmatprep.subr.bf16.mxu0 0
    %357 = vmatpush1.bf16.msra.mxu0 0
    %358 = vmatprep.subr.bf16.mxu0 0
    %359 = vmatpush1.bf16.msra.mxu0 0
    %360 = vmatprep.subr.bf16.mxu0 0
    %361 = vmatpush1.bf16.msra.mxu0 0
    %362 = vmatprep.subr.bf16.mxu0 0
    %363 = vmatpush1.bf16.msra.mxu0 0
    %364 = vmatprep.subr.bf16.mxu0 0
    %365 = vmatpush1.bf16.msra.mxu0 0
    %366 = vmatprep.subr.bf16.mxu0 0
    %367 = vmatpush1.bf16.msra.mxu0 0
    %368 = vmatprep.subr.bf16.mxu0 0
    %369 = vmatpush1.bf16.msra.mxu0 0
    %370 = vmatprep.subr.bf16.mxu0 0
    %371 = vmatpush1.bf16.msra.mxu0 0
    %372 = vmatprep.subr.bf16.mxu0 0
    %373 = vmatpush1.bf16.msra.mxu0 0
    %374 = vmatprep.mubr.bf16.mxu0 0
    %375 = vmatmul.mubr.bf16.gmra.mrb[0].mxu0 %v340
    %v376 = vpop.f32.mrb[0].mxu0
    %v377 = vadd.f32 0.0, %v376
    %v378 = vpop.f32.mrb[0].mxu0
    %v379 = vpop.f32.mrb[0].mxu0
    %v380 = vadd.f32 0.0, %v379
    %v381 = vpop.f32.mrb[0].mxu0
    %382 = vdwg.mxu0
    %v383 = vpack.c.bf16 %v380, %v377
    %v385 = vunpack.c.l.b16 %v383
    %v386 = vunpack.c.h.b16 %v383
    %v387 = vpack.c.b16 %v385, %v385
    %v388 = vpack.c.b16 %v386, %v386
    %389 = vrot.lane.b32.xlu0 %v387, 96
    %v390 = vpop.permute.xlu0 %389
    %vm391 = vcmask 64512
    %v393 = vsel %vm391, %v387, 0
    %v396 = vsel %vm391, %v390, 0
    %398 = vmatprep.subr.bf16.mxu0 0
    %399 = vmatpush1.bf16.xpose.msra.mxu0 %v396
    %400 = vmatprep.subr.bf16.mxu0 0
    %401 = vmatpush1.bf16.xpose.msra.mxu0 0
    %402 = vmatprep.subr.bf16.mxu0 0
    %403 = vmatpush1.bf16.xpose.msra.mxu0 0
    %404 = vmatprep.subr.bf16.mxu0 0
    %405 = vmatpush1.bf16.xpose.msra.mxu0 0
    %406 = vmatprep.subr.bf16.mxu0 0
    %407 = vmatpush1.bf16.xpose.msra.mxu0 0
    %408 = vmatprep.subr.bf16.mxu0 0
    %409 = vmatpush1.bf16.xpose.msra.mxu0 0
    %410 = vmatprep.subr.bf16.mxu0 0
    %411 = vmatpush1.bf16.xpose.msra.mxu0 0
    %412 = vmatprep.subr.bf16.mxu0 0
    %413 = vmatpush1.bf16.xpose.msra.mxu0 0
    %414 = vmatprep.subr.bf16.mxu0 0
    %415 = vmatpush1.bf16.xpose.msra.mxu0 0
    %416 = vmatprep.subr.bf16.mxu0 0
    %417 = vmatpush1.bf16.xpose.msra.mxu0 0
    %418 = vmatprep.subr.bf16.mxu0 0
    %419 = vmatpush1.bf16.xpose.msra.mxu0 0
    %420 = vmatprep.subr.bf16.mxu0 0
    %421 = vmatpush1.bf16.xpose.msra.mxu0 0
    %422 = vmatprep.subr.bf16.mxu0 0
    %423 = vmatpush1.bf16.xpose.msra.mxu0 0
    %424 = vmatprep.subr.bf16.mxu0 0
    %425 = vmatpush1.bf16.xpose.msra.mxu0 0
    %426 = vmatprep.subr.bf16.mxu0 0
    %427 = vmatpush1.bf16.xpose.msra.mxu0 0
    %428 = vmatprep.subr.bf16.mxu0 0
    %429 = vmatpush1.bf16.xpose.msra.mxu0 0
    %430 = vmatprep.mubr.bf16.mxu0 0
    %431 = vmatmul.mubr.bf16.gmra.mrb[0].mxu0 %v393
    %v432 = vpop.f32.mrb[0].mxu0
    %v433 = vadd.f32 %v275, %v432
    %v434 = vpop.f32.mrb[0].mxu0
    %v435 = vpop.f32.mrb[0].mxu0
    %v436 = vpop.f32.mrb[0].mxu0
    %437 = vdwg.mxu0
    %438 = vrot.lane.b32.xlu0 %v388, 96
    %v439 = vpop.permute.xlu0 %438
    %v441 = vsel %vm391, %v388, 0
    %v444 = vsel %vm391, %v439, 0
    %446 = vmatprep.subr.bf16.mxu0 0
    %447 = vmatpush1.bf16.xpose.msra.mxu0 %v444
    %448 = vmatprep.subr.bf16.mxu0 0
    %449 = vmatpush1.bf16.xpose.msra.mxu0 0
    %450 = vmatprep.subr.bf16.mxu0 0
    %451 = vmatpush1.bf16.xpose.msra.mxu0 0
    %452 = vmatprep.subr.bf16.mxu0 0
    %453 = vmatpush1.bf16.xpose.msra.mxu0 0
    %454 = vmatprep.subr.bf16.mxu0 0
    %455 = vmatpush1.bf16.xpose.msra.mxu0 0
    %456 = vmatprep.subr.bf16.mxu0 0
    %457 = vmatpush1.bf16.xpose.msra.mxu0 0
    %458 = vmatprep.subr.bf16.mxu0 0
    %459 = vmatpush1.bf16.xpose.msra.mxu0 0
    %460 = vmatprep.subr.bf16.mxu0 0
    %461 = vmatpush1.bf16.xpose.msra.mxu0 0
    %462 = vmatprep.subr.bf16.mxu0 0
    %463 = vmatpush1.bf16.xpose.msra.mxu0 0
    %464 = vmatprep.subr.bf16.mxu0 0
    %465 = vmatpush1.bf16.xpose.msra.mxu0 0
    %466 = vmatprep.subr.bf16.mxu0 0
    %467 = vmatpush1.bf16.xpose.msra.mxu0 0
    %468 = vmatprep.subr.bf16.mxu0 0
    %469 = vmatpush1.bf16.xpose.msra.mxu0 0
    %470 = vmatprep.subr.bf16.mxu0 0
    %471 = vmatpush1.bf16.xpose.msra.mxu0 0
    %472 = vmatprep.subr.bf16.mxu0 0
    %473 = vmatpush1.bf16.xpose.msra.mxu0 0
    %474 = vmatprep.subr.bf16.mxu0 0
    %475 = vmatpush1.bf16.xpose.msra.mxu0 0
    %476 = vmatprep.subr.bf16.mxu0 0
    %477 = vmatpush1.bf16.xpose.msra.mxu0 0
    %478 = vmatprep.mubr.bf16.mxu0 0
    %479 = vmatmul.mubr.bf16.gmra.mrb[0].mxu0 %v441
    %v480 = vpop.f32.mrb[0].mxu0
    %v481 = vadd.f32 %v275, %v480
    %v482 = vpop.f32.mrb[0].mxu0
    %v483 = vpop.f32.mrb[0].mxu0
    %v484 = vpop.f32.mrb[0].mxu0
    %485 = vdwg.mxu0
    %v486 = vsel %vm391, %v433, -inf
    %487 = vmax.xlane.f32.xlu0 %v486
    %v488 = vpop.xlane.xlu0 %487
    %v489 = vsel %vm391, %v481, -inf
    %490 = vmax.xlane.f32.xlu0 %v489
    %v491 = vpop.xlane.xlu0 %490
    %v492 = vsub.f32 %v433, %v488
    %v493 = vsub.f32 %v481, %v491
    %v494 = vmul.f32 %v492, 1.442695
    %v495 = vpow.pop %v494
    %v496 = vmul.f32 %v493, 1.442695
    %v497 = vpow.pop %v496
    %v498 = vsel %vm391, %v495, 0.0
    %499 = vadd.xlane.f32.xlu0 %v498
    %v500 = vpop.xlane.xlu0 %499
    %v501 = vsel %vm391, %v497, 0.0
    %502 = vadd.xlane.f32.xlu0 %v501
    %v503 = vpop.xlane.xlu0 %502
    %v504 = vrcp.pop %v500
    %v505 = vrcp.pop %v503
    %v506 = vmul.f32 %v495, %v504
    %v507 = vmul.f32 %v497, %v505
    %v508 = vpack.c.bf16 %v506, %v506
    %v509 = vpack.c.bf16 %v507, %v507
    %510 = vrot.lane.b32.xlu0 %v387, 64
    %v511 = vpop.permute.xlu0 %510
    %v513 = vsel %vm391, %v508, 0
    %vm515 = vcmask 1043456
    %v517 = vsel %vm515, %v511, 0
    %519 = vmatprep.subr.bf16.mxu0 0
    %520 = vmatpush1.bf16.msra.mxu0 %v517
    %521 = vmatprep.subr.bf16.mxu0 0
    %522 = vmatpush1.bf16.msra.mxu0 0
    %523 = vmatprep.subr.bf16.mxu0 0
    %524 = vmatpush1.bf16.msra.mxu0 0
    %525 = vmatprep.subr.bf16.mxu0 0
    %526 = vmatpush1.bf16.msra.mxu0 0
    %527 = vmatprep.subr.bf16.mxu0 0
    %528 = vmatpush1.bf16.msra.mxu0 0
    %529 = vmatprep.subr.bf16.mxu0 0
    %530 = vmatpush1.bf16.msra.mxu0 0
    %531 = vmatprep.subr.bf16.mxu0 0
    %532 = vmatpush1.bf16.msra.mxu0 0
    %533 = vmatprep.subr.bf16.mxu0 0
    %534 = vmatpush1.bf16.msra.mxu0 0
    %535 = vmatprep.subr.bf16.mxu0 0
    %536 = vmatpush1.bf16.msra.mxu0 0
    %537 = vmatprep.subr.bf16.mxu0 0
    %538 = vmatpush1.bf16.msra.mxu0 0
    %539 = vmatprep.subr.bf16.mxu0 0
    %540 = vmatpush1.bf16.msra.mxu0 0
    %541 = vmatprep.subr.bf16.mxu0 0
    %542 = vmatpush1.bf16.msra.mxu0 0
    %543 = vmatprep.subr.bf16.mxu0 0
    %544 = vmatpush1.bf16.msra.mxu0 0
    %545 = vmatprep.subr.bf16.mxu0 0
    %546 = vmatpush1.bf16.msra.mxu0 0
    %547 = vmatprep.subr.bf16.mxu0 0
    %548 = vmatpush1.bf16.msra.mxu0 0
    %549 = vmatprep.subr.bf16.mxu0 0
    %550 = vmatpush1.bf16.msra.mxu0 0
    %551 = vmatprep.mubr.bf16.mxu0 0
    %552 = vmatmul.mubr.bf16.gmra.mrb[0].mxu0 %v513
    %v553 = vpop.f32.mrb[0].mxu0
    %v554 = vadd.f32 0.0, %v553
    %v555 = vpop.f32.mrb[0].mxu0
    %v556 = vpop.f32.mrb[0].mxu0
    %v557 = vpop.f32.mrb[0].mxu0
    %558 = vdwg.mxu0
    %559 = vrot.lane.b32.xlu0 %v388, 64
    %v560 = vpop.permute.xlu0 %559
    %v562 = vsel %vm391, %v509, 0
    %v565 = vsel %vm515, %v560, 0
    %567 = vmatprep.subr.bf16.mxu0 0
    %568 = vmatpush1.bf16.msra.mxu0 %v565
    %569 = vmatprep.subr.bf16.mxu0 0
    %570 = vmatpush1.bf16.msra.mxu0 0
    %571 = vmatprep.subr.bf16.mxu0 0
    %572 = vmatpush1.bf16.msra.mxu0 0
    %573 = vmatprep.subr.bf16.mxu0 0
    %574 = vmatpush1.bf16.msra.mxu0 0
    %575 = vmatprep.subr.bf16.mxu0 0
    %576 = vmatpush1.bf16.msra.mxu0 0
    %577 = vmatprep.subr.bf16.mxu0 0
    %578 = vmatpush1.bf16.msra.mxu0 0
    %579 = vmatprep.subr.bf16.mxu0 0
    %580 = vmatpush1.bf16.msra.mxu0 0
    %581 = vmatprep.subr.bf16.mxu0 0
    %582 = vmatpush1.bf16.msra.mxu0 0
    %583 = vmatprep.subr.bf16.mxu0 0
    %584 = vmatpush1.bf16.msra.mxu0 0
    %585 = vmatprep.subr.bf16.mxu0 0
    %586 = vmatpush1.bf16.msra.mxu0 0
    %587 = vmatprep.subr.bf16.mxu0 0
    %588 = vmatpush1.bf16.msra.mxu0 0
    %589 = vmatprep.subr.bf16.mxu0 0
    %590 = vmatpush1.bf16.msra.mxu0 0
    %591 = vmatprep.subr.bf16.mxu0 0
    %592 = vmatpush1.bf16.msra.mxu0 0
    %593 = vmatprep.subr.bf16.mxu0 0
    %594 = vmatpush1.bf16.msra.mxu0 0
    %595 = vmatprep.subr.bf16.mxu0 0
    %596 = vmatpush1.bf16.msra.mxu0 0
    %597 = vmatprep.subr.bf16.mxu0 0
    %598 = vmatpush1.bf16.msra.mxu0 0
    %599 = vmatprep.mubr.bf16.mxu0 0
    %600 = vmatmul.mubr.bf16.gmra.mrb[0].mxu0 %v562
    %v601 = vpop.f32.mrb[0].mxu0
    %v602 = vadd.f32 0.0, %v601
    %v603 = vpop.f32.mrb[0].mxu0
    %v604 = vpop.f32.mrb[0].mxu0
    %v605 = vpop.f32.mrb[0].mxu0
    %606 = vdwg.mxu0
    %607 = vrot.lane.b32.xlu0 %v387, 120
    %v608 = vpop.permute.xlu0 %607
    %609 = vrot.lane.b32.xlu0 %v387, 88
    %v610 = vpop.permute.xlu0 %609
    %v612 = vsel %vm391, %v608, 0
    %v615 = vsel %vm391, %v610, 0
    %617 = vmatprep.subr.bf16.mxu0 0
    %618 = vmatpush1.bf16.xpose.msra.mxu0 %v615
    %619 = vmatprep.subr.bf16.mxu0 0
    %620 = vmatpush1.bf16.xpose.msra.mxu0 0
    %621 = vmatprep.subr.bf16.mxu0 0
    %622 = vmatpush1.bf16.xpose.msra.mxu0 0
    %623 = vmatprep.subr.bf16.mxu0 0
    %624 = vmatpush1.bf16.xpose.msra.mxu0 0
    %625 = vmatprep.subr.bf16.mxu0 0
    %626 = vmatpush1.bf16.xpose.msra.mxu0 0
    %627 = vmatprep.subr.bf16.mxu0 0
    %628 = vmatpush1.bf16.xpose.msra.mxu0 0
    %629 = vmatprep.subr.bf16.mxu0 0
    %630 = vmatpush1.bf16.xpose.msra.mxu0 0
    %631 = vmatprep.subr.bf16.mxu0 0
    %632 = vmatpush1.bf16.xpose.msra.mxu0 0
    %633 = vmatprep.subr.bf16.mxu0 0
    %634 = vmatpush1.bf16.xpose.msra.mxu0 0
    %635 = vmatprep.subr.bf16.mxu0 0
    %636 = vmatpush1.bf16.xpose.msra.mxu0 0
    %637 = vmatprep.subr.bf16.mxu0 0
    %638 = vmatpush1.bf16.xpose.msra.mxu0 0
    %639 = vmatprep.subr.bf16.mxu0 0
    %640 = vmatpush1.bf16.xpose.msra.mxu0 0
    %641 = vmatprep.subr.bf16.mxu0 0
    %642 = vmatpush1.bf16.xpose.msra.mxu0 0
    %643 = vmatprep.subr.bf16.mxu0 0
    %644 = vmatpush1.bf16.xpose.msra.mxu0 0
    %645 = vmatprep.subr.bf16.mxu0 0
    %646 = vmatpush1.bf16.xpose.msra.mxu0 0
    %647 = vmatprep.subr.bf16.mxu0 0
    %648 = vmatpush1.bf16.xpose.msra.mxu0 0
    %649 = vmatprep.mubr.bf16.mxu0 0
    %650 = vmatmul.mubr.bf16.gmra.mrb[0].mxu0 %v612
    %v651 = vpop.f32.mrb[0].mxu0
    %v652 = vadd.f32 %v275, %v651
    %v653 = vpop.f32.mrb[0].mxu0
    %v654 = vpop.f32.mrb[0].mxu0
    %v655 = vpop.f32.mrb[0].mxu0
    %656 = vdwg.mxu0
    %657 = vrot.lane.b32.xlu0 %v388, 120
    %v658 = vpop.permute.xlu0 %657
    %659 = vrot.lane.b32.xlu0 %v388, 88
    %v660 = vpop.permute.xlu0 %659
    %v662 = vsel %vm391, %v658, 0
    %v665 = vsel %vm391, %v660, 0
    %667 = vmatprep.subr.bf16.mxu0 0
    %668 = vmatpush1.bf16.xpose.msra.mxu0 %v665
    %669 = vmatprep.subr.bf16.mxu0 0
    %670 = vmatpush1.bf16.xpose.msra.mxu0 0
    %671 = vmatprep.subr.bf16.mxu0 0
    %672 = vmatpush1.bf16.xpose.msra.mxu0 0
    %673 = vmatprep.subr.bf16.mxu0 0
    %674 = vmatpush1.bf16.xpose.msra.mxu0 0
    %675 = vmatprep.subr.bf16.mxu0 0
    %676 = vmatpush1.bf16.xpose.msra.mxu0 0
    %677 = vmatprep.subr.bf16.mxu0 0
    %678 = vmatpush1.bf16.xpose.msra.mxu0 0
    %679 = vmatprep.subr.bf16.mxu0 0
    %680 = vmatpush1.bf16.xpose.msra.mxu0 0
    %681 = vmatprep.subr.bf16.mxu0 0
    %682 = vmatpush1.bf16.xpose.msra.mxu0 0
    %683 = vmatprep.subr.bf16.mxu0 0
    %684 = vmatpush1.bf16.xpose.msra.mxu0 0
    %685 = vmatprep.subr.bf16.mxu0 0
    %686 = vmatpush1.bf16.xpose.msra.mxu0 0
    %687 = vmatprep.subr.bf16.mxu0 0
    %688 = vmatpush1.bf16.xpose.msra.mxu0 0
    %689 = vmatprep.subr.bf16.mxu0 0
    %690 = vmatpush1.bf16.xpose.msra.mxu0 0
    %691 = vmatprep.subr.bf16.mxu0 0
    %692 = vmatpush1.bf16.xpose.msra.mxu0 0
    %693 = vmatprep.subr.bf16.mxu0 0
    %694 = vmatpush1.bf16.xpose.msra.mxu0 0
    %695 = vmatprep.subr.bf16.mxu0 0
    %696 = vmatpush1.bf16.xpose.msra.mxu0 0
    %697 = vmatprep.subr.bf16.mxu0 0
    %698 = vmatpush1.bf16.xpose.msra.mxu0 0
    %699 = vmatprep.mubr.bf16.mxu0 0
    %700 = vmatmul.mubr.bf16.gmra.mrb[0].mxu0 %v662
    %v701 = vpop.f32.mrb[0].mxu0
    %v702 = vadd.f32 %v275, %v701
    %v703 = vpop.f32.mrb[0].mxu0
    %v704 = vpop.f32.mrb[0].mxu0
    %v705 = vpop.f32.mrb[0].mxu0
    %706 = vdwg.mxu0
    %v707 = vsel %vm391, %v652, -inf
    %708 = vmax.xlane.f32.xlu0 %v707
    %v709 = vpop.xlane.xlu0 %708
    %v710 = vsel %vm391, %v702, -inf
    %711 = vmax.xlane.f32.xlu0 %v710
    %v712 = vpop.xlane.xlu0 %711
    %v713 = vsub.f32 %v652, %v709
    %v714 = vsub.f32 %v702, %v712
    %v715 = vmul.f32 %v713, 1.442695
    %v716 = vpow.pop %v715
    %v717 = vmul.f32 %v714, 1.442695
    %v718 = vpow.pop %v717
    %v719 = vsel %vm391, %v716, 0.0
    %720 = vadd.xlane.f32.xlu0 %v719
    %v721 = vpop.xlane.xlu0 %720
    %v722 = vsel %vm391, %v718, 0.0
    %723 = vadd.xlane.f32.xlu0 %v722
    %v724 = vpop.xlane.xlu0 %723
    %v725 = vrcp.pop %v721
    %v726 = vrcp.pop %v724
    %v727 = vmul.f32 %v716, %v725
    %v728 = vmul.f32 %v718, %v726
    %v729 = vpack.c.bf16 %v727, %v727
    %v730 = vpack.c.bf16 %v728, %v728
    %731 = vrot.lane.b32.xlu0 %v387, 56
    %v732 = vpop.permute.xlu0 %731
    %v734 = vsel %vm391, %v729, 0
    %v737 = vsel %vm515, %v732, 0
    %739 = vmatprep.subr.bf16.mxu0 0
    %740 = vmatpush1.bf16.msra.mxu0 %v737
    %741 = vmatprep.subr.bf16.mxu0 0
    %742 = vmatpush1.bf16.msra.mxu0 0
    %743 = vmatprep.subr.bf16.mxu0 0
    %744 = vmatpush1.bf16.msra.mxu0 0
    %745 = vmatprep.subr.bf16.mxu0 0
    %746 = vmatpush1.bf16.msra.mxu0 0
    %747 = vmatprep.subr.bf16.mxu0 0
    %748 = vmatpush1.bf16.msra.mxu0 0
    %749 = vmatprep.subr.bf16.mxu0 0
    %750 = vmatpush1.bf16.msra.mxu0 0
    %751 = vmatprep.subr.bf16.mxu0 0
    %752 = vmatpush1.bf16.msra.mxu0 0
    %753 = vmatprep.subr.bf16.mxu0 0
    %754 = vmatpush1.bf16.msra.mxu0 0
    %755 = vmatprep.subr.bf16.mxu0 0
    %756 = vmatpush1.bf16.msra.mxu0 0
    %757 = vmatprep.subr.bf16.mxu0 0
    %758 = vmatpush1.bf16.msra.mxu0 0
    %759 = vmatprep.subr.bf16.mxu0 0
    %760 = vmatpush1.bf16.msra.mxu0 0
    %761 = vmatprep.subr.bf16.mxu0 0
    %762 = vmatpush1.bf16.msra.mxu0 0
    %763 = vmatprep.subr.bf16.mxu0 0
    %764 = vmatpush1.bf16.msra.mxu0 0
    %765 = vmatprep.subr.bf16.mxu0 0
    %766 = vmatpush1.bf16.msra.mxu0 0
    %767 = vmatprep.subr.bf16.mxu0 0
    %768 = vmatpush1.bf16.msra.mxu0 0
    %769 = vmatprep.subr.bf16.mxu0 0
    %770 = vmatpush1.bf16.msra.mxu0 0
    %771 = vmatprep.mubr.bf16.mxu0 0
    %772 = vmatmul.mubr.bf16.gmra.mrb[0].mxu0 %v734
    %v773 = vpop.f32.mrb[0].mxu0
    %v774 = vadd.f32 0.0, %v773
    %v775 = vpop.f32.mrb[0].mxu0
    %v776 = vpop.f32.mrb[0].mxu0
    %v777 = vpop.f32.mrb[0].mxu0
    %778 = vdwg.mxu0
    %779 = vrot.lane.b32.xlu0 %v388, 56
    %v780 = vpop.permute.xlu0 %779
    %v782 = vsel %vm391, %v730, 0
    %v785 = vsel %vm515, %v780, 0
    %787 = vmatprep.subr.bf16.mxu0 0
    %788 = vmatpush1.bf16.msra.mxu0 %v785
    %789 = vmatprep.subr.bf16.mxu0 0
    %790 = vmatpush1.bf16.msra.mxu0 0
    %791 = vmatprep.subr.bf16.mxu0 0
    %792 = vmatpush1.bf16.msra.mxu0 0
    %793 = vmatprep.subr.bf16.mxu0 0
    %794 = vmatpush1.bf16.msra.mxu0 0
    %795 = vmatprep.subr.bf16.mxu0 0
    %796 = vmatpush1.bf16.msra.mxu0 0
    %797 = vmatprep.subr.bf16.mxu0 0
    %798 = vmatpush1.bf16.msra.mxu0 0
    %799 = vmatprep.subr.bf16.mxu0 0
    %800 = vmatpush1.bf16.msra.mxu0 0
    %801 = vmatprep.subr.bf16.mxu0 0
    %802 = vmatpush1.bf16.msra.mxu0 0
    %803 = vmatprep.subr.bf16.mxu0 0
    %804 = vmatpush1.bf16.msra.mxu0 0
    %805 = vmatprep.subr.bf16.mxu0 0
    %806 = vmatpush1.bf16.msra.mxu0 0
    %807 = vmatprep.subr.bf16.mxu0 0
    %808 = vmatpush1.bf16.msra.mxu0 0
    %809 = vmatprep.subr.bf16.mxu0 0
    %810 = vmatpush1.bf16.msra.mxu0 0
    %811 = vmatprep.subr.bf16.mxu0 0
    %812 = vmatpush1.bf16.msra.mxu0 0
    %813 = vmatprep.subr.bf16.mxu0 0
    %814 = vmatpush1.bf16.msra.mxu0 0
    %815 = vmatprep.subr.bf16.mxu0 0
    %816 = vmatpush1.bf16.msra.mxu0 0
    %817 = vmatprep.subr.bf16.mxu0 0
    %818 = vmatpush1.bf16.msra.mxu0 0
    %819 = vmatprep.mubr.bf16.mxu0 0
    %820 = vmatmul.mubr.bf16.gmra.mrb[0].mxu0 %v782
    %v821 = vpop.f32.mrb[0].mxu0
    %v822 = vadd.f32 0.0, %v821
    %v823 = vpop.f32.mrb[0].mxu0
    %v824 = vpop.f32.mrb[0].mxu0
    %v825 = vpop.f32.mrb[0].mxu0
    %826 = vdwg.mxu0
    %827 = vrot.lane.b32.xlu0 %v387, 112
    %v828 = vpop.permute.xlu0 %827
    %829 = vrot.lane.b32.xlu0 %v387, 80
    %v830 = vpop.permute.xlu0 %829
    %v832 = vsel %vm391, %v828, 0
    %v835 = vsel %vm391, %v830, 0
    %837 = vmatprep.subr.bf16.mxu0 0
    %838 = vmatpush1.bf16.xpose.msra.mxu0 %v835
    %839 = vmatprep.subr.bf16.mxu0 0
    %840 = vmatpush1.bf16.xpose.msra.mxu0 0
    %841 = vmatprep.subr.bf16.mxu0 0
    %842 = vmatpush1.bf16.xpose.msra.mxu0 0
    %843 = vmatprep.subr.bf16.mxu0 0
    %844 = vmatpush1.bf16.xpose.msra.mxu0 0
    %845 = vmatprep.subr.bf16.mxu0 0
    %846 = vmatpush1.bf16.xpose.msra.mxu0 0
    %847 = vmatprep.subr.bf16.mxu0 0
    %848 = vmatpush1.bf16.xpose.msra.mxu0 0
    %849 = vmatprep.subr.bf16.mxu0 0
    %850 = vmatpush1.bf16.xpose.msra.mxu0 0
    %851 = vmatprep.subr.bf16.mxu0 0
    %852 = vmatpush1.bf16.xpose.msra.mxu0 0
    %853 = vmatprep.subr.bf16.mxu0 0
    %854 = vmatpush1.bf16.xpose.msra.mxu0 0
    %855 = vmatprep.subr.bf16.mxu0 0
    %856 = vmatpush1.bf16.xpose.msra.mxu0 0
    %857 = vmatprep.subr.bf16.mxu0 0
    %858 = vmatpush1.bf16.xpose.msra.mxu0 0
    %859 = vmatprep.subr.bf16.mxu0 0
    %860 = vmatpush1.bf16.xpose.msra.mxu0 0
    %861 = vmatprep.subr.bf16.mxu0 0
    %862 = vmatpush1.bf16.xpose.msra.mxu0 0
    %863 = vmatprep.subr.bf16.mxu0 0
    %864 = vmatpush1.bf16.xpose.msra.mxu0 0
    %865 = vmatprep.subr.bf16.mxu0 0
    %866 = vmatpush1.bf16.xpose.msra.mxu0 0
    %867 = vmatprep.subr.bf16.mxu0 0
    %868 = vmatpush1.bf16.xpose.msra.mxu0 0
    %869 = vmatprep.mubr.bf16.mxu0 0
    %870 = vmatmul.mubr.bf16.gmra.mrb[0].mxu0 %v832
    %v871 = vpop.f32.mrb[0].mxu0
    %v872 = vadd.f32 %v275, %v871
    %v873 = vpop.f32.mrb[0].mxu0
    %v874 = vpop.f32.mrb[0].mxu0
    %v875 = vpop.f32.mrb[0].mxu0
    %876 = vdwg.mxu0
    %877 = vrot.lane.b32.xlu0 %v388, 112
    %v878 = vpop.permute.xlu0 %877
    %879 = vrot.lane.b32.xlu0 %v388, 80
    %v880 = vpop.permute.xlu0 %879
    %v882 = vsel %vm391, %v878, 0
    %v885 = vsel %vm391, %v880, 0
    %887 = vmatprep.subr.bf16.mxu0 0
    %888 = vmatpush1.bf16.xpose.msra.mxu0 %v885
    %889 = vmatprep.subr.bf16.mxu0 0
    %890 = vmatpush1.bf16.xpose.msra.mxu0 0
    %891 = vmatprep.subr.bf16.mxu0 0
    %892 = vmatpush1.bf16.xpose.msra.mxu0 0
    %893 = vmatprep.subr.bf16.mxu0 0
    %894 = vmatpush1.bf16.xpose.msra.mxu0 0
    %895 = vmatprep.subr.bf16.mxu0 0
    %896 = vmatpush1.bf16.xpose.msra.mxu0 0
    %897 = vmatprep.subr.bf16.mxu0 0
    %898 = vmatpush1.bf16.xpose.msra.mxu0 0
    %899 = vmatprep.subr.bf16.mxu0 0
    %900 = vmatpush1.bf16.xpose.msra.mxu0 0
    %901 = vmatprep.subr.bf16.mxu0 0
    %902 = vmatpush1.bf16.xpose.msra.mxu0 0
    %903 = vmatprep.subr.bf16.mxu0 0
    %904 = vmatpush1.bf16.xpose.msra.mxu0 0
    %905 = vmatprep.subr.bf16.mxu0 0
    %906 = vmatpush1.bf16.xpose.msra.mxu0 0
    %907 = vmatprep.subr.bf16.mxu0 0
    %908 = vmatpush1.bf16.xpose.msra.mxu0 0
    %909 = vmatprep.subr.bf16.mxu0 0
    %910 = vmatpush1.bf16.xpose.msra.mxu0 0
    %911 = vmatprep.subr.bf16.mxu0 0
    %912 = vmatpush1.bf16.xpose.msra.mxu0 0
    %913 = vmatprep.subr.bf16.mxu0 0
    %914 = vmatpush1.bf16.xpose.msra.mxu0 0
    %915 = vmatprep.subr.bf16.mxu0 0
    %916 = vmatpush1.bf16.xpose.msra.mxu0 0
    %917 = vmatprep.subr.bf16.mxu0 0
    %918 = vmatpush1.bf16.xpose.msra.mxu0 0
    %919 = vmatprep.mubr.bf16.mxu0 0
    %920 = vmatmul.mubr.bf16.gmra.mrb[0].mxu0 %v882
    %v921 = vpop.f32.mrb[0].mxu0
    %v922 = vadd.f32 %v275, %v921
    %v923 = vpop.f32.mrb[0].mxu0
    %v924 = vpop.f32.mrb[0].mxu0
    %v925 = vpop.f32.mrb[0].mxu0
    %926 = vdwg.mxu0
    %v927 = vsel %vm391, %v872, -inf
    %928 = vmax.xlane.f32.xlu0 %v927
    %v929 = vpop.xlane.xlu0 %928
    %v930 = vsel %vm391, %v922, -inf
    %931 = vmax.xlane.f32.xlu0 %v930
    %v932 = vpop.xlane.xlu0 %931
    %v933 = vsub.f32 %v872, %v929
    %v934 = vsub.f32 %v922, %v932
    %v935 = vmul.f32 %v933, 1.442695
    %v936 = vpow.pop %v935
    %v937 = vmul.f32 %v934, 1.442695
    %v938 = vpow.pop %v937
    %v939 = vsel %vm391, %v936, 0.0
    %940 = vadd.xlane.f32.xlu0 %v939
    %v941 = vpop.xlane.xlu0 %940
    %v942 = vsel %vm391, %v938, 0.0
    %943 = vadd.xlane.f32.xlu0 %v942
    %v944 = vpop.xlane.xlu0 %943
    %v945 = vrcp.pop %v941
    %v946 = vrcp.pop %v944
    %v947 = vmul.f32 %v936, %v945
    %v948 = vmul.f32 %v938, %v946
    %v949 = vpack.c.bf16 %v947, %v947
    %v950 = vpack.c.bf16 %v948, %v948
    %951 = vrot.lane.b32.xlu0 %v387, 48
    %v952 = vpop.permute.xlu0 %951
    %v954 = vsel %vm391, %v949, 0
    %v957 = vsel %vm515, %v952, 0
    %959 = vmatprep.subr.bf16.mxu0 0
    %960 = vmatpush1.bf16.msra.mxu0 %v957
    %961 = vmatprep.subr.bf16.mxu0 0
    %962 = vmatpush1.bf16.msra.mxu0 0
    %963 = vmatprep.subr.bf16.mxu0 0
    %964 = vmatpush1.bf16.msra.mxu0 0
    %965 = vmatprep.subr.bf16.mxu0 0
    %966 = vmatpush1.bf16.msra.mxu0 0
    %967 = vmatprep.subr.bf16.mxu0 0
    %968 = vmatpush1.bf16.msra.mxu0 0
    %969 = vmatprep.subr.bf16.mxu0 0
    %970 = vmatpush1.bf16.msra.mxu0 0
    %971 = vmatprep.subr.bf16.mxu0 0
    %972 = vmatpush1.bf16.msra.mxu0 0
    %973 = vmatprep.subr.bf16.mxu0 0
    %974 = vmatpush1.bf16.msra.mxu0 0
    %975 = vmatprep.subr.bf16.mxu0 0
    %976 = vmatpush1.bf16.msra.mxu0 0
    %977 = vmatprep.subr.bf16.mxu0 0
    %978 = vmatpush1.bf16.msra.mxu0 0
    %979 = vmatprep.subr.bf16.mxu0 0
    %980 = vmatpush1.bf16.msra.mxu0 0
    %981 = vmatprep.subr.bf16.mxu0 0
    %982 = vmatpush1.bf16.msra.mxu0 0
    %983 = vmatprep.subr.bf16.mxu0 0
    %984 = vmatpush1.bf16.msra.mxu0 0
    %985 = vmatprep.subr.bf16.mxu0 0
    %986 = vmatpush1.bf16.msra.mxu0 0
    %987 = vmatprep.subr.bf16.mxu0 0
    %988 = vmatpush1.bf16.msra.mxu0 0
    %989 = vmatprep.subr.bf16.mxu0 0
    %990 = vmatpush1.bf16.msra.mxu0 0
    %991 = vmatprep.mubr.bf16.mxu0 0
    %992 = vmatmul.mubr.bf16.gmra.mrb[0].mxu0 %v954
    %v993 = vpop.f32.mrb[0].mxu0
    %v994 = vadd.f32 0.0, %v993
    %v995 = vpop.f32.mrb[0].mxu0
    %v996 = vpop.f32.mrb[0].mxu0
    %v997 = vpop.f32.mrb[0].mxu0
    %998 = vdwg.mxu0
    %999 = vrot.lane.b32.xlu0 %v388, 48
    %v1000 = vpop.permute.xlu0 %999
    %v1002 = vsel %vm391, %v950, 0
    %v1005 = vsel %vm515, %v1000, 0
    %1007 = vmatprep.subr.bf16.mxu0 0
    %1008 = vmatpush1.bf16.msra.mxu0 %v1005
    %1009 = vmatprep.subr.bf16.mxu0 0
    %1010 = vmatpush1.bf16.msra.mxu0 0
    %1011 = vmatprep.subr.bf16.mxu0 0
    %1012 = vmatpush1.bf16.msra.mxu0 0
    %1013 = vmatprep.subr.bf16.mxu0 0
    %1014 = vmatpush1.bf16.msra.mxu0 0
    %1015 = vmatprep.subr.bf16.mxu0 0
    %1016 = vmatpush1.bf16.msra.mxu0 0
    %1017 = vmatprep.subr.bf16.mxu0 0
    %1018 = vmatpush1.bf16.msra.mxu0 0
    %1019 = vmatprep.subr.bf16.mxu0 0
    %1020 = vmatpush1.bf16.msra.mxu0 0
    %1021 = vmatprep.subr.bf16.mxu0 0
    %1022 = vmatpush1.bf16.msra.mxu0 0
    %1023 = vmatprep.subr.bf16.mxu0 0
    %1024 = vmatpush1.bf16.msra.mxu0 0
    %1025 = vmatprep.subr.bf16.mxu0 0
    %1026 = vmatpush1.bf16.msra.mxu0 0
    %1027 = vmatprep.subr.bf16.mxu0 0
    %1028 = vmatpush1.bf16.msra.mxu0 0
    %1029 = vmatprep.subr.bf16.mxu0 0
    %1030 = vmatpush1.bf16.msra.mxu0 0
    %1031 = vmatprep.subr.bf16.mxu0 0
    %1032 = vmatpush1.bf16.msra.mxu0 0
    %1033 = vmatprep.subr.bf16.mxu0 0
    %1034 = vmatpush1.bf16.msra.mxu0 0
    %1035 = vmatprep.subr.bf16.mxu0 0
    %1036 = vmatpush1.bf16.msra.mxu0 0
    %1037 = vmatprep.subr.bf16.mxu0 0
    %1038 = vmatpush1.bf16.msra.mxu0 0
    %1039 = vmatprep.mubr.bf16.mxu0 0
    %1040 = vmatmul.mubr.bf16.gmra.mrb[0].mxu0 %v1002
    %v1041 = vpop.f32.mrb[0].mxu0
    %v1042 = vadd.f32 0.0, %v1041
    %v1043 = vpop.f32.mrb[0].mxu0
    %v1044 = vpop.f32.mrb[0].mxu0
    %v1045 = vpop.f32.mrb[0].mxu0
    %1046 = vdwg.mxu0
    %1047 = vrot.lane.b32.xlu0 %v387, 104
    %v1048 = vpop.permute.xlu0 %1047
    %1049 = vrot.lane.b32.xlu0 %v387, 72
    %v1050 = vpop.permute.xlu0 %1049
    %v1052 = vsel %vm391, %v1048, 0
    %v1055 = vsel %vm391, %v1050, 0
    %1057 = vmatprep.subr.bf16.mxu0 0
    %1058 = vmatpush1.bf16.xpose.msra.mxu0 %v1055
    %1059 = vmatprep.subr.bf16.mxu0 0
    %1060 = vmatpush1.bf16.xpose.msra.mxu0 0
    %1061 = vmatprep.subr.bf16.mxu0 0
    %1062 = vmatpush1.bf16.xpose.msra.mxu0 0
    %1063 = vmatprep.subr.bf16.mxu0 0
    %1064 = vmatpush1.bf16.xpose.msra.mxu0 0
    %1065 = vmatprep.subr.bf16.mxu0 0
    %1066 = vmatpush1.bf16.xpose.msra.mxu0 0
    %1067 = vmatprep.subr.bf16.mxu0 0
    %1068 = vmatpush1.bf16.xpose.msra.mxu0 0
    %1069 = vmatprep.subr.bf16.mxu0 0
    %1070 = vmatpush1.bf16.xpose.msra.mxu0 0
    %1071 = vmatprep.subr.bf16.mxu0 0
    %1072 = vmatpush1.bf16.xpose.msra.mxu0 0
    %1073 = vmatprep.subr.bf16.mxu0 0
    %1074 = vmatpush1.bf16.xpose.msra.mxu0 0
    %1075 = vmatprep.subr.bf16.mxu0 0
    %1076 = vmatpush1.bf16.xpose.msra.mxu0 0
    %1077 = vmatprep.subr.bf16.mxu0 0
    %1078 = vmatpush1.bf16.xpose.msra.mxu0 0
    %1079 = vmatprep.subr.bf16.mxu0 0
    %1080 = vmatpush1.bf16.xpose.msra.mxu0 0
    %1081 = vmatprep.subr.bf16.mxu0 0
    %1082 = vmatpush1.bf16.xpose.msra.mxu0 0
    %1083 = vmatprep.subr.bf16.mxu0 0
    %1084 = vmatpush1.bf16.xpose.msra.mxu0 0
    %1085 = vmatprep.subr.bf16.mxu0 0
    %1086 = vmatpush1.bf16.xpose.msra.mxu0 0
    %1087 = vmatprep.subr.bf16.mxu0 0
    %1088 = vmatpush1.bf16.xpose.msra.mxu0 0
    %1089 = vmatprep.mubr.bf16.mxu0 0
    %1090 = vmatmul.mubr.bf16.gmra.mrb[0].mxu0 %v1052
    %v1091 = vpop.f32.mrb[0].mxu0
    %v1092 = vadd.f32 %v275, %v1091
    %v1093 = vpop.f32.mrb[0].mxu0
    %v1094 = vpop.f32.mrb[0].mxu0
    %v1095 = vpop.f32.mrb[0].mxu0
    %1096 = vdwg.mxu0
    %1097 = vrot.lane.b32.xlu0 %v388, 104
    %v1098 = vpop.permute.xlu0 %1097
    %1099 = vrot.lane.b32.xlu0 %v388, 72
    %v1100 = vpop.permute.xlu0 %1099
    %v1102 = vsel %vm391, %v1098, 0
    %v1105 = vsel %vm391, %v1100, 0
    %1107 = vmatprep.subr.bf16.mxu0 0
    %1108 = vmatpush1.bf16.xpose.msra.mxu0 %v1105
    %1109 = vmatprep.subr.bf16.mxu0 0
    %1110 = vmatpush1.bf16.xpose.msra.mxu0 0
    %1111 = vmatprep.subr.bf16.mxu0 0
    %1112 = vmatpush1.bf16.xpose.msra.mxu0 0
    %1113 = vmatprep.subr.bf16.mxu0 0
    %1114 = vmatpush1.bf16.xpose.msra.mxu0 0
    %1115 = vmatprep.subr.bf16.mxu0 0
    %1116 = vmatpush1.bf16.xpose.msra.mxu0 0
    %1117 = vmatprep.subr.bf16.mxu0 0
    %1118 = vmatpush1.bf16.xpose.msra.mxu0 0
    %1119 = vmatprep.subr.bf16.mxu0 0
    %1120 = vmatpush1.bf16.xpose.msra.mxu0 0
    %1121 = vmatprep.subr.bf16.mxu0 0
    %1122 = vmatpush1.bf16.xpose.msra.mxu0 0
    %1123 = vmatprep.subr.bf16.mxu0 0
    %1124 = vmatpush1.bf16.xpose.msra.mxu0 0
    %1125 = vmatprep.subr.bf16.mxu0 0
    %1126 = vmatpush1.bf16.xpose.msra.mxu0 0
    %1127 = vmatprep.subr.bf16.mxu0 0
    %1128 = vmatpush1.bf16.xpose.msra.mxu0 0
    %1129 = vmatprep.subr.bf16.mxu0 0
    %1130 = vmatpush1.bf16.xpose.msra.mxu0 0
    %1131 = vmatprep.subr.bf16.mxu0 0
    %1132 = vmatpush1.bf16.xpose.msra.mxu0 0
    %1133 = vmatprep.subr.bf16.mxu0 0
    %1134 = vmatpush1.bf16.xpose.msra.mxu0 0
    %1135 = vmatprep.subr.bf16.mxu0 0
    %1136 = vmatpush1.bf16.xpose.msra.mxu0 0
    %1137 = vmatprep.subr.bf16.mxu0 0
    %1138 = vmatpush1.bf16.xpose.msra.mxu0 0
    %1139 = vmatprep.mubr.bf16.mxu0 0
    %1140 = vmatmul.mubr.bf16.gmra.mrb[0].mxu0 %v1102
    %v1141 = vpop.f32.mrb[0].mxu0
    %v1142 = vadd.f32 %v275, %v1141
    %v1143 = vpop.f32.mrb[0].mxu0
    %v1144 = vpop.f32.mrb[0].mxu0
    %v1145 = vpop.f32.mrb[0].mxu0
    %1146 = vdwg.mxu0
    %v1147 = vsel %vm391, %v1092, -inf
    %1148 = vmax.xlane.f32.xlu0 %v1147
    %v1149 = vpop.xlane.xlu0 %1148
    %v1150 = vsel %vm391, %v1142, -inf
    %1151 = vmax.xlane.f32.xlu0 %v1150
    %v1152 = vpop.xlane.xlu0 %1151
    %v1153 = vsub.f32 %v1092, %v1149
    %v1154 = vsub.f32 %v1142, %v1152
    %v1155 = vmul.f32 %v1153, 1.442695
    %v1156 = vpow.pop %v1155
    %v1157 = vmul.f32 %v1154, 1.442695
    %v1158 = vpow.pop %v1157
    %v1159 = vsel %vm391, %v1156, 0.0
    %1160 = vadd.xlane.f32.xlu0 %v1159
    %v1161 = vpop.xlane.xlu0 %1160
    %v1162 = vsel %vm391, %v1158, 0.0
    %1163 = vadd.xlane.f32.xlu0 %v1162
    %v1164 = vpop.xlane.xlu0 %1163
    %v1165 = vrcp.pop %v1161
    %v1166 = vrcp.pop %v1164
    %v1167 = vmul.f32 %v1156, %v1165
    %v1168 = vmul.f32 %v1158, %v1166
    %v1169 = vpack.c.bf16 %v1167, %v1167
    %v1170 = vpack.c.bf16 %v1168, %v1168
    %1171 = vrot.lane.b32.xlu0 %v387, 40
    %v1172 = vpop.permute.xlu0 %1171
    %v1174 = vsel %vm391, %v1169, 0
    %v1177 = vsel %vm515, %v1172, 0
    %1179 = vmatprep.subr.bf16.mxu0 0
    %1180 = vmatpush1.bf16.msra.mxu0 %v1177
    %1181 = vmatprep.subr.bf16.mxu0 0
    %1182 = vmatpush1.bf16.msra.mxu0 0
    %1183 = vmatprep.subr.bf16.mxu0 0
    %1184 = vmatpush1.bf16.msra.mxu0 0
    %1185 = vmatprep.subr.bf16.mxu0 0
    %1186 = vmatpush1.bf16.msra.mxu0 0
    %1187 = vmatprep.subr.bf16.mxu0 0
    %1188 = vmatpush1.bf16.msra.mxu0 0
    %1189 = vmatprep.subr.bf16.mxu0 0
    %1190 = vmatpush1.bf16.msra.mxu0 0
    %1191 = vmatprep.subr.bf16.mxu0 0
    %1192 = vmatpush1.bf16.msra.mxu0 0
    %1193 = vmatprep.subr.bf16.mxu0 0
    %1194 = vmatpush1.bf16.msra.mxu0 0
    %1195 = vmatprep.subr.bf16.mxu0 0
    %1196 = vmatpush1.bf16.msra.mxu0 0
    %1197 = vmatprep.subr.bf16.mxu0 0
    %1198 = vmatpush1.bf16.msra.mxu0 0
    %1199 = vmatprep.subr.bf16.mxu0 0
    %1200 = vmatpush1.bf16.msra.mxu0 0
    %1201 = vmatprep.subr.bf16.mxu0 0
    %1202 = vmatpush1.bf16.msra.mxu0 0
    %1203 = vmatprep.subr.bf16.mxu0 0
    %1204 = vmatpush1.bf16.msra.mxu0 0
    %1205 = vmatprep.subr.bf16.mxu0 0
    %1206 = vmatpush1.bf16.msra.mxu0 0
    %1207 = vmatprep.subr.bf16.mxu0 0
    %1208 = vmatpush1.bf16.msra.mxu0 0
    %1209 = vmatprep.subr.bf16.mxu0 0
    %1210 = vmatpush1.bf16.msra.mxu0 0
    %1211 = vmatprep.mubr.bf16.mxu0 0
    %1212 = vmatmul.mubr.bf16.gmra.mrb[0].mxu0 %v1174
    %v1213 = vpop.f32.mrb[0].mxu0
    %v1214 = vadd.f32 0.0, %v1213
    %v1215 = vpop.f32.mrb[0].mxu0
    %v1216 = vpop.f32.mrb[0].mxu0
    %v1217 = vpop.f32.mrb[0].mxu0
    %1218 = vdwg.mxu0
    %1219 = vrot.lane.b32.xlu0 %v388, 40
    %v1220 = vpop.permute.xlu0 %1219
    %v1222 = vsel %vm391, %v1170, 0
    %v1225 = vsel %vm515, %v1220, 0
    %1227 = vmatprep.subr.bf16.mxu0 0
    %1228 = vmatpush1.bf16.msra.mxu0 %v1225
    %1229 = vmatprep.subr.bf16.mxu0 0
    %1230 = vmatpush1.bf16.msra.mxu0 0
    %1231 = vmatprep.subr.bf16.mxu0 0
    %1232 = vmatpush1.bf16.msra.mxu0 0
    %1233 = vmatprep.subr.bf16.mxu0 0
    %1234 = vmatpush1.bf16.msra.mxu0 0
    %1235 = vmatprep.subr.bf16.mxu0 0
    %1236 = vmatpush1.bf16.msra.mxu0 0
    %1237 = vmatprep.subr.bf16.mxu0 0
    %1238 = vmatpush1.bf16.msra.mxu0 0
    %1239 = vmatprep.subr.bf16.mxu0 0
    %1240 = vmatpush1.bf16.msra.mxu0 0
    %1241 = vmatprep.subr.bf16.mxu0 0
    %1242 = vmatpush1.bf16.msra.mxu0 0
    %1243 = vmatprep.subr.bf16.mxu0 0
    %1244 = vmatpush1.bf16.msra.mxu0 0
    %1245 = vmatprep.subr.bf16.mxu0 0
    %1246 = vmatpush1.bf16.msra.mxu0 0
    %1247 = vmatprep.subr.bf16.mxu0 0
    %1248 = vmatpush1.bf16.msra.mxu0 0
    %1249 = vmatprep.subr.bf16.mxu0 0
    %1250 = vmatpush1.bf16.msra.mxu0 0
    %1251 = vmatprep.subr.bf16.mxu0 0
    %1252 = vmatpush1.bf16.msra.mxu0 0
    %1253 = vmatprep.subr.bf16.mxu0 0
    %1254 = vmatpush1.bf16.msra.mxu0 0
    %1255 = vmatprep.subr.bf16.mxu0 0
    %1256 = vmatpush1.bf16.msra.mxu0 0
    %1257 = vmatprep.subr.bf16.mxu0 0
    %1258 = vmatpush1.bf16.msra.mxu0 0
    %1259 = vmatprep.mubr.bf16.mxu0 0
    %1260 = vmatmul.mubr.bf16.gmra.mrb[0].mxu0 %v1222
    %v1261 = vpop.f32.mrb[0].mxu0
    %v1262 = vadd.f32 0.0, %v1261
    %v1263 = vpop.f32.mrb[0].mxu0
    %v1264 = vpop.f32.mrb[0].mxu0
    %v1265 = vpop.f32.mrb[0].mxu0
    %1266 = vdwg.mxu0
    %1269 = vrot.lane.b32.xlu0 %v774, 8
    %v1270 = vpop.permute.xlu0 %1269
    %1271 = vrot.lane.b32.xlu0 %v822, 8
    %v1272 = vpop.permute.xlu0 %1271
    %1277 = vrot.lane.b32.xlu0 %v994, 16
    %v1278 = vpop.permute.xlu0 %1277
    %1279 = vrot.lane.b32.xlu0 %v1042, 16
    %v1280 = vpop.permute.xlu0 %1279
    %1285 = vrot.lane.b32.xlu0 %v1214, 24
    %v1286 = vpop.permute.xlu0 %1285
    %1287 = vrot.lane.b32.xlu0 %v1262, 24
    %v1288 = vpop.permute.xlu0 %1287
    %v1291 = vsel %vm391, %v554, %v1270
    %v1292 = vsel %vm391, %v602, %v1272
    %vm1293 = vcmask 130048
    %v1294 = vsel %vm1293, %v1291, %v1278
    %v1295 = vsel %vm1293, %v1292, %v1280
    %vm1296 = vcmask 195584
    %v1297 = vsel %vm1296, %v1294, %v1286
    %v1298 = vsel %vm1296, %v1295, %v1288
    %v1299 = vpack.c.bf16 %v1298, %v1297
    %v1300 = vld [vmem:[%s8] sm:$0xf]
    %v1301 = vld [vmem:[%s8 + $0x4] sm:$0xf]
    %v1302 = vld [vmem:[%s8 + $0x8] sm:$0xf]
    %v1303 = vld [vmem:[%s8 + $0xc] sm:$0xf]
    %v1304 = vld [vmem:[%s9] sm:$0x1]
    %v1306 = vlaneseq
    %v1307 = vshrl.u32 %v1306, 7
    %v1308 = vsub.s32 0, %v1307
    %v1309 = vrot.slane %v1304, %v1308
    %v1315 = vunpack.c.l.b16 %v1300
    %v1316 = vunpack.c.l.b16 %v1301
    %v1317 = vunpack.c.l.b16 %v1302
    %v1318 = vunpack.c.l.b16 %v1303
    %v1319 = vpack.c.b16 %v1316, %v1315
    %v1320 = vpack.c.b16 %v1318, %v1317
    %v1324 = vsel %vm278, %v1299, 0
    %1326 = vmatprep.subr.bf16.mxu0 0
    %1327 = vmatpush1.bf16.msra.mxu0 %v1319
    %1328 = vmatprep.subr.bf16.mxu0 0
    %1329 = vmatpush1.bf16.msra.mxu0 %v1320
    %1330 = vmatprep.subr.bf16.mxu0 0
    %1331 = vmatpush1.bf16.msra.mxu0 0
    %1332 = vmatprep.subr.bf16.mxu0 0
    %1333 = vmatpush1.bf16.msra.mxu0 0
    %1334 = vmatprep.subr.bf16.mxu0 0
    %1335 = vmatpush1.bf16.msra.mxu0 0
    %1336 = vmatprep.subr.bf16.mxu0 0
    %1337 = vmatpush1.bf16.msra.mxu0 0
    %1338 = vmatprep.subr.bf16.mxu0 0
    %1339 = vmatpush1.bf16.msra.mxu0 0
    %1340 = vmatprep.subr.bf16.mxu0 0
    %1341 = vmatpush1.bf16.msra.mxu0 0
    %1342 = vmatprep.subr.bf16.mxu0 0
    %1343 = vmatpush1.bf16.msra.mxu0 0
    %1344 = vmatprep.subr.bf16.mxu0 0
    %1345 = vmatpush1.bf16.msra.mxu0 0
    %1346 = vmatprep.subr.bf16.mxu0 0
    %1347 = vmatpush1.bf16.msra.mxu0 0
    %1348 = vmatprep.subr.bf16.mxu0 0
    %1349 = vmatpush1.bf16.msra.mxu0 0
    %1350 = vmatprep.subr.bf16.mxu0 0
    %1351 = vmatpush1.bf16.msra.mxu0 0
    %1352 = vmatprep.subr.bf16.mxu0 0
    %1353 = vmatpush1.bf16.msra.mxu0 0
    %1354 = vmatprep.subr.bf16.mxu0 0
    %1355 = vmatpush1.bf16.msra.mxu0 0
    %1356 = vmatprep.subr.bf16.mxu0 0
    %1357 = vmatpush1.bf16.msra.mxu0 0
    %1358 = vmatprep.mubr.bf16.mxu0 0
    %1359 = vmatmul.mubr.bf16.gmra.mrb[0].mxu0 %v1324
    %v1360 = vpop.f32.mrb[0].mxu0
    %v1361 = vadd.f32 %v1309, %v1360
    %v1362 = vpop.f32.mrb[0].mxu0
    %v1363 = vpop.f32.mrb[0].mxu0
    %v1364 = vadd.f32 %v1309, %v1363
    %v1365 = vpop.f32.mrb[0].mxu0
    %1366 = vdwg.mxu0
    %v1367 = vadd.f32 %v270, %v1361
    %v1368 = vadd.f32 %v271, %v1364
    %v1369 = vld [vmem:[%s10] sm:$0x1]
    %v1370 = vld [vmem:[%s11] sm:$0x1]
    %v1371 = vsel %vm278, %v1367, 0.0
    %1372 = vadd.xlane.f32.xlu0 %v1371
    %v1373 = vpop.xlane.xlu0 %1372
    %v1374 = vsel %vm278, %v1368, 0.0
    %1375 = vadd.xlane.f32.xlu0 %v1374
    %v1376 = vpop.xlane.xlu0 %1375
    %v1377 = vmul.f32 %v1373, %v285
    %v1378 = vmul.f32 %v1376, %v285
    %v1379 = vsub.f32 %v1367, %v1377
    %v1380 = vsub.f32 %v1368, %v1378
    %v1381 = vmul.f32 %v1379, %v1379
    %v1382 = vmul.f32 %v1380, %v1380
    %v1383 = vsel %vm278, %v1381, 0.0
    %1384 = vadd.xlane.f32.xlu0 %v1383
    %v1385 = vpop.xlane.xlu0 %1384
    %v1386 = vsel %vm278, %v1382, 0.0
    %1387 = vadd.xlane.f32.xlu0 %v1386
    %v1388 = vpop.xlane.xlu0 %1387
    %v1389 = vmul.f32 %v1385, %v285
    %v1390 = vmul.f32 %v1388, %v285
    %v1391 = vadd.f32 %v1389, 1e-05
    %v1392 = vadd.f32 %v1390, 1e-05
    %v1393 = vrsqrt.pop %v1391
    %v1394 = vrsqrt.pop %v1392
    %v1395 = vmul.f32 %v1379, %v1393
    %v1396 = vmul.f32 %v1380, %v1394
    %v1398 = vlaneseq
    %v1399 = vshrl.u32 %v1398, 7
    %v1400 = vsub.s32 0, %v1399
    %v1401 = vrot.slane %v1369, %v1400
    %v1403 = vmul.f32 %v1395, %v1401
    %v1404 = vmul.f32 %v1396, %v1401
    %v1406 = vlaneseq
    %v1407 = vshrl.u32 %v1406, 7
    %v1408 = vsub.s32 0, %v1407
    %v1409 = vrot.slane %v1370, %v1408
    %v1411 = vadd.f32 %v1403, %v1409
    %v1412 = vadd.f32 %v1404, %v1409
    %v1413 = vpack.c.bf16 %v1412, %v1411
    %v1414 = vld [vmem:[%s12] sm:$0xf]
    %v1415 = vld [vmem:[%s12 + $0x4] sm:$0xf]
    %v1416 = vld [vmem:[%s12 + $0x8] sm:$0xf]
    %v1417 = vld [vmem:[%s12 + $0xc] sm:$0xf]
    %v1418 = vld [vmem:[%s13] sm:$0x1]
    %v1420 = vlaneseq
    %v1421 = vshrl.u32 %v1420, 7
    %v1422 = vsub.s32 0, %v1421
    %v1423 = vrot.slane %v1418, %v1422
    %v1429 = vunpack.c.l.b16 %v1414
    %v1430 = vunpack.c.l.b16 %v1415
    %v1431 = vunpack.c.l.b16 %v1416
    %v1432 = vunpack.c.l.b16 %v1417
    %v1433 = vpack.c.b16 %v1430, %v1429
    %v1434 = vpack.c.b16 %v1432, %v1431
    %v1438 = vsel %vm278, %v1413, 0
    %1440 = vmatprep.subr.bf16.mxu0 0
    %1441 = vmatpush1.bf16.msra.mxu0 %v1433
    %1442 = vmatprep.subr.bf16.mxu0 0
    %1443 = vmatpush1.bf16.msra.mxu0 %v1434
    %1444 = vmatprep.subr.bf16.mxu0 0
    %1445 = vmatpush1.bf16.msra.mxu0 0
    %1446 = vmatprep.subr.bf16.mxu0 0
    %1447 = vmatpush1.bf16.msra.mxu0 0
    %1448 = vmatprep.subr.bf16.mxu0 0
    %1449 = vmatpush1.bf16.msra.mxu0 0
    %1450 = vmatprep.subr.bf16.mxu0 0
    %1451 = vmatpush1.bf16.msra.mxu0 0
    %1452 = vmatprep.subr.bf16.mxu0 0
    %1453 = vmatpush1.bf16.msra.mxu0 0
    %1454 = vmatprep.subr.bf16.mxu0 0
    %1455 = vmatpush1.bf16.msra.mxu0 0
    %1456 = vmatprep.subr.bf16.mxu0 0
    %1457 = vmatpush1.bf16.msra.mxu0 0
    %1458 = vmatprep.subr.bf16.mxu0 0
    %1459 = vmatpush1.bf16.msra.mxu0 0
    %1460 = vmatprep.subr.bf16.mxu0 0
    %1461 = vmatpush1.bf16.msra.mxu0 0
    %1462 = vmatprep.subr.bf16.mxu0 0
    %1463 = vmatpush1.bf16.msra.mxu0 0
    %1464 = vmatprep.subr.bf16.mxu0 0
    %1465 = vmatpush1.bf16.msra.mxu0 0
    %1466 = vmatprep.subr.bf16.mxu0 0
    %1467 = vmatpush1.bf16.msra.mxu0 0
    %1468 = vmatprep.subr.bf16.mxu0 0
    %1469 = vmatpush1.bf16.msra.mxu0 0
    %1470 = vmatprep.subr.bf16.mxu0 0
    %1471 = vmatpush1.bf16.msra.mxu0 0
    %1472 = vmatprep.mubr.bf16.mxu0 0
    %1473 = vmatmul.mubr.bf16.gmra.mrb[0].mxu0 %v1438
    %v1474 = vpop.f32.mrb[0].mxu0
    %v1475 = vadd.f32 %v1423, %v1474
    %v1476 = vpop.f32.mrb[0].mxu0
    %v1477 = vpop.f32.mrb[0].mxu0
    %v1478 = vadd.f32 %v1423, %v1477
    %v1479 = vpop.f32.mrb[0].mxu0
    %1480 = vdwg.mxu0
    %v1481 = vmul.f32 %v1475, 0.5
    %v1482 = vmul.f32 %v1478, 0.5
    %v1483 = vmul.f32 %v1475, 0.044715
    %v1484 = vmul.f32 %v1478, 0.044715
    %v1485 = vmul.f32 %v1483, %v1475
    %v1486 = vmul.f32 %v1484, %v1478
    %v1487 = vmul.f32 %v1485, %v1475
    %v1488 = vmul.f32 %v1486, %v1478
    %v1489 = vadd.f32 %v1475, %v1487
    %v1490 = vadd.f32 %v1478, %v1488
    %v1491 = vmul.f32 %v1489, 0.7978846
    %v1492 = vmul.f32 %v1490, 0.7978846
    %v1493 = vtanh.pop %v1491
    %v1494 = vtanh.pop %v1492
    %v1495 = vadd.f32 %v1493, 1.0
    %v1496 = vadd.f32 %v1494, 1.0
    %v1497 = vmul.f32 %v1481, %v1495
    %v1498 = vmul.f32 %v1482, %v1496
    %v1499 = vpack.c.bf16 %v1498, %v1497
    %v1500 = vld [vmem:[%s14] sm:$0xf]
    %v1501 = vld [vmem:[%s14 + $0x4] sm:$0xf]
    %v1502 = vld [vmem:[%s14 + $0x8] sm:$0xf]
    %v1503 = vld [vmem:[%s14 + $0xc] sm:$0xf]
    %v1504 = vld [vmem:[%s14 + $0x10] sm:$0xf]
    %v1505 = vld [vmem:[%s14 + $0x14] sm:$0xf]
    %v1506 = vld [vmem:[%s14 + $0x18] sm:$0xf]
    %v1507 = vld [vmem:[%s14 + $0x1c] sm:$0xf]
    %v1508 = vld [vmem:[%s14 + $0x20] sm:$0xf]
    %v1509 = vld [vmem:[%s14 + $0x24] sm:$0xf]
    %v1510 = vld [vmem:[%s14 + $0x28] sm:$0xf]
    %v1511 = vld [vmem:[%s14 + $0x2c] sm:$0xf]
    %v1512 = vld [vmem:[%s14 + $0x30] sm:$0xf]
    %v1513 = vld [vmem:[%s14 + $0x34] sm:$0xf]
    %v1514 = vld [vmem:[%s14 + $0x38] sm:$0xf]
    %v1515 = vld [vmem:[%s14 + $0x3c] sm:$0xf]
    %v1516 = vld [vmem:[%s15] sm:$0x1]
    %v1518 = vlaneseq
    %v1519 = vshrl.u32 %v1518, 7
    %v1520 = vsub.s32 0, %v1519
    %v1521 = vrot.slane %v1516, %v1520
    %v1539 = vunpack.c.l.b16 %v1500
    %v1540 = vunpack.c.l.b16 %v1501
    %v1541 = vunpack.c.l.b16 %v1502
    %v1542 = vunpack.c.l.b16 %v1503
    %v1543 = vunpack.c.l.b16 %v1504
    %v1544 = vunpack.c.l.b16 %v1505
    %v1545 = vunpack.c.l.b16 %v1506
    %v1546 = vunpack.c.l.b16 %v1507
    %v1547 = vunpack.c.l.b16 %v1508
    %v1548 = vunpack.c.l.b16 %v1509
    %v1549 = vunpack.c.l.b16 %v1510
    %v1550 = vunpack.c.l.b16 %v1511
    %v1551 = vunpack.c.l.b16 %v1512
    %v1552 = vunpack.c.l.b16 %v1513
    %v1553 = vunpack.c.l.b16 %v1514
    %v1554 = vunpack.c.l.b16 %v1515
    %v1555 = vpack.c.b16 %v1540, %v1539
    %v1556 = vpack.c.b16 %v1542, %v1541
    %v1557 = vpack.c.b16 %v1544, %v1543
    %v1558 = vpack.c.b16 %v1546, %v1545
    %v1559 = vpack.c.b16 %v1548, %v1547
    %v1560 = vpack.c.b16 %v1550, %v1549
    %v1561 = vpack.c.b16 %v1552, %v1551
    %v1562 = vpack.c.b16 %v1554, %v1553
    %1571 = vmatprep.subr.bf16.mxu0 0
    %1572 = vmatpush1.bf16.msra.mxu0 %v1555
    %1573 = vmatprep.subr.bf16.mxu0 0
    %1574 = vmatpush1.bf16.msra.mxu0 %v1556
    %1575 = vmatprep.subr.bf16.mxu0 0
    %1576 = vmatpush1.bf16.msra.mxu0 %v1557
    %1577 = vmatprep.subr.bf16.mxu0 0
    %1578 = vmatpush1.bf16.msra.mxu0 %v1558
    %1579 = vmatprep.subr.bf16.mxu0 0
    %1580 = vmatpush1.bf16.msra.mxu0 %v1559
    %1581 = vmatprep.subr.bf16.mxu0 0
    %1582 = vmatpush1.bf16.msra.mxu0 %v1560
    %1583 = vmatprep.subr.bf16.mxu0 0
    %1584 = vmatpush1.bf16.msra.mxu0 %v1561
    %1585 = vmatprep.subr.bf16.mxu0 0
    %1586 = vmatpush1.bf16.msra.mxu0 %v1562
    %1587 = vmatprep.subr.bf16.mxu0 0
    %1588 = vmatpush1.bf16.msra.mxu0 0
    %1589 = vmatprep.subr.bf16.mxu0 0
    %1590 = vmatpush1.bf16.msra.mxu0 0
    %1591 = vmatprep.subr.bf16.mxu0 0
    %1592 = vmatpush1.bf16.msra.mxu0 0
    %1593 = vmatprep.subr.bf16.mxu0 0
    %1594 = vmatpush1.bf16.msra.mxu0 0
    %1595 = vmatprep.subr.bf16.mxu0 0
    %1596 = vmatpush1.bf16.msra.mxu0 0
    %1597 = vmatprep.subr.bf16.mxu0 0
    %1598 = vmatpush1.bf16.msra.mxu0 0
    %1599 = vmatprep.subr.bf16.mxu0 0
    %1600 = vmatpush1.bf16.msra.mxu0 0
    %1601 = vmatprep.subr.bf16.mxu0 0
    %1602 = vmatpush1.bf16.msra.mxu0 0
    %1603 = vmatprep.mubr.bf16.mxu0 0
    %1604 = vmatmul.mubr.bf16.gmra.mrb[0].mxu0 %v1499
    %v1605 = vpop.f32.mrb[0].mxu0
    %v1606 = vadd.f32 %v1521, %v1605
    %v1607 = vpop.f32.mrb[0].mxu0
    %v1608 = vpop.f32.mrb[0].mxu0
    %v1609 = vadd.f32 %v1521, %v1608
    %v1610 = vpop.f32.mrb[0].mxu0
    %1611 = vdwg.mxu0
    %v1612 = vadd.f32 %v1411, %v1606
    %v1613 = vadd.f32 %v1412, %v1609
    %s1614 = scalar_lea.vmem %s5, 1
    %v1615 = vld [vmem:[%s1614] sm:$0x1]
    %s1616 = scalar_lea.vmem %s6, 1
    %v1617 = vld [vmem:[%s1616] sm:$0x1]
    %v1618 = vsel %vm278, %v1612, 0.0
    %1619 = vadd.xlane.f32.xlu0 %v1618
    %v1620 = vpop.xlane.xlu0 %1619
    %v1621 = vsel %vm278, %v1613, 0.0
    %1622 = vadd.xlane.f32.xlu0 %v1621
    %v1623 = vpop.xlane.xlu0 %1622
    %v1624 = vmul.f32 %v1620, %v285
    %v1625 = vmul.f32 %v1623, %v285
    %v1626 = vsub.f32 %v1612, %v1624
    %v1627 = vsub.f32 %v1613, %v1625
    %v1628 = vmul.f32 %v1626, %v1626
    %v1629 = vmul.f32 %v1627, %v1627
    %v1630 = vsel %vm278, %v1628, 0.0
    %1631 = vadd.xlane.f32.xlu0 %v1630
    %v1632 = vpop.xlane.xlu0 %1631
    %v1633 = vsel %vm278, %v1629, 0.0
    %1634 = vadd.xlane.f32.xlu0 %v1633
    %v1635 = vpop.xlane.xlu0 %1634
    %v1636 = vmul.f32 %v1632, %v285
    %v1637 = vmul.f32 %v1635, %v285
    %v1638 = vadd.f32 %v1636, 1e-05
    %v1639 = vadd.f32 %v1637, 1e-05
    %v1640 = vrsqrt.pop %v1638
    %v1641 = vrsqrt.pop %v1639
    %v1642 = vmul.f32 %v1626, %v1640
    %v1643 = vmul.f32 %v1627, %v1641
    %v1645 = vlaneseq
    %v1646 = vshrl.u32 %v1645, 7
    %v1647 = vsub.s32 0, %v1646
    %v1648 = vrot.slane %v1615, %v1647
    %v1650 = vmul.f32 %v1642, %v1648
    %v1651 = vmul.f32 %v1643, %v1648
    %v1653 = vlaneseq
    %v1654 = vshrl.u32 %v1653, 7
    %v1655 = vsub.s32 0, %v1654
    %v1656 = vrot.slane %v1617, %v1655
    %v1658 = vadd.f32 %v1650, %v1656
    %v1659 = vadd.f32 %v1651, %v1656
    %v1660 = vpack.c.bf16 %v1659, %v1658
    %s1661 = scalar_lea.vmem %s7, 16
    %v1662 = vld [vmem:[%s1661] sm:$0xf]
    %v1663 = vld [vmem:[%s1661 + $0x4] sm:$0xf]
    %v1664 = vld [vmem:[%s1661 + $0x8] sm:$0xf]
    %v1665 = vld [vmem:[%s1661 + $0xc] sm:$0xf]
    %v1670 = vunpack.c.l.b16 %v1662
    %v1671 = vunpack.c.l.b16 %v1663
    %v1672 = vunpack.c.l.b16 %v1664
    %v1673 = vunpack.c.l.b16 %v1665
    %v1674 = vpack.c.b16 %v1671, %v1670
    %v1675 = vpack.c.b16 %v1673, %v1672
    %v1679 = vsel %vm278, %v1660, 0
    %1681 = vmatprep.subr.bf16.mxu0 0
    %1682 = vmatpush1.bf16.msra.mxu0 %v1674
    %1683 = vmatprep.subr.bf16.mxu0 0
    %1684 = vmatpush1.bf16.msra.mxu0 %v1675
    %1685 = vmatprep.subr.bf16.mxu0 0
    %1686 = vmatpush1.bf16.msra.mxu0 0
    %1687 = vmatprep.subr.bf16.mxu0 0
    %1688 = vmatpush1.bf16.msra.mxu0 0
    %1689 = vmatprep.subr.bf16.mxu0 0
    %1690 = vmatpush1.bf16.msra.mxu0 0
    %1691 = vmatprep.subr.bf16.mxu0 0
    %1692 = vmatpush1.bf16.msra.mxu0 0
    %1693 = vmatprep.subr.bf16.mxu0 0
    %1694 = vmatpush1.bf16.msra.mxu0 0
    %1695 = vmatprep.subr.bf16.mxu0 0
    %1696 = vmatpush1.bf16.msra.mxu0 0
    %1697 = vmatprep.subr.bf16.mxu0 0
    %1698 = vmatpush1.bf16.msra.mxu0 0
    %1699 = vmatprep.subr.bf16.mxu0 0
    %1700 = vmatpush1.bf16.msra.mxu0 0
    %1701 = vmatprep.subr.bf16.mxu0 0
    %1702 = vmatpush1.bf16.msra.mxu0 0
    %1703 = vmatprep.subr.bf16.mxu0 0
    %1704 = vmatpush1.bf16.msra.mxu0 0
    %1705 = vmatprep.subr.bf16.mxu0 0
    %1706 = vmatpush1.bf16.msra.mxu0 0
    %1707 = vmatprep.subr.bf16.mxu0 0
    %1708 = vmatpush1.bf16.msra.mxu0 0
    %1709 = vmatprep.subr.bf16.mxu0 0
    %1710 = vmatpush1.bf16.msra.mxu0 0
    %1711 = vmatprep.subr.bf16.mxu0 0
    %1712 = vmatpush1.bf16.msra.mxu0 0
    %1713 = vmatprep.mubr.bf16.mxu0 0
    %1714 = vmatmul.mubr.bf16.gmra.mrb[0].mxu0 %v1679
    %v1715 = vpop.f32.mrb[0].mxu0
    %v1716 = vadd.f32 0.0, %v1715
    %v1717 = vpop.f32.mrb[0].mxu0
    %v1718 = vpop.f32.mrb[0].mxu0
    %v1719 = vadd.f32 0.0, %v1718
    %v1720 = vpop.f32.mrb[0].mxu0
    %1721 = vdwg.mxu0
    %v1722 = vpack.c.bf16 %v1719, %v1716
    %v1724 = vunpack.c.l.b16 %v1722
    %v1725 = vunpack.c.h.b16 %v1722
    %v1726 = vpack.c.b16 %v1724, %v1724
    %v1727 = vpack.c.b16 %v1725, %v1725
    %1728 = vrot.lane.b32.xlu0 %v1726, 96
    %v1729 = vpop.permute.xlu0 %1728
    %v1731 = vsel %vm391, %v1726, 0
    %v1734 = vsel %vm391, %v1729, 0
    %1736 = vmatprep.subr.bf16.mxu0 0
    %1737 = vmatpush1.bf16.xpose.msra.mxu0 %v1734
    %1738 = vmatprep.subr.bf16.mxu0 0
    %1739 = vmatpush1.bf16.xpose.msra.mxu0 0
    %1740 = vmatprep.subr.bf16.mxu0 0
    %1741 = vmatpush1.bf16.xpose.msra.mxu0 0
    %1742 = vmatprep.subr.bf16.mxu0 0
    %1743 = vmatpush1.bf16.xpose.msra.mxu0 0
    %1744 = vmatprep.subr.bf16.mxu0 0
    %1745 = vmatpush1.bf16.xpose.msra.mxu0 0
    %1746 = vmatprep.subr.bf16.mxu0 0
    %1747 = vmatpush1.bf16.xpose.msra.mxu0 0
    %1748 = vmatprep.subr.bf16.mxu0 0
    %1749 = vmatpush1.bf16.xpose.msra.mxu0 0
    %1750 = vmatprep.subr.bf16.mxu0 0
    %1751 = vmatpush1.bf16.xpose.msra.mxu0 0
    %1752 = vmatprep.subr.bf16.mxu0 0
    %1753 = vmatpush1.bf16.xpose.msra.mxu0 0
    %1754 = vmatprep.subr.bf16.mxu0 0
    %1755 = vmatpush1.bf16.xpose.msra.mxu0 0
    %1756 = vmatprep.subr.bf16.mxu0 0
    %1757 = vmatpush1.bf16.xpose.msra.mxu0 0
    %1758 = vmatprep.subr.bf16.mxu0 0
    %1759 = vmatpush1.bf16.xpose.msra.mxu0 0
    %1760 = vmatprep.subr.bf16.mxu0 0
    %1761 = vmatpush1.bf16.xpose.msra.mxu0 0
    %1762 = vmatprep.subr.bf16.mxu0 0
    %1763 = vmatpush1.bf16.xpose.msra.mxu0 0
    %1764 = vmatprep.subr.bf16.mxu0 0
    %1765 = vmatpush1.bf16.xpose.msra.mxu0 0
    %1766 = vmatprep.subr.bf16.mxu0 0
    %1767 = vmatpush1.bf16.xpose.msra.mxu0 0
    %1768 = vmatprep.mubr.bf16.mxu0 0
    %1769 = vmatmul.mubr.bf16.gmra.mrb[0].mxu0 %v1731
    %v1770 = vpop.f32.mrb[0].mxu0
    %v1771 = vadd.f32 %v275, %v1770
    %v1772 = vpop.f32.mrb[0].mxu0
    %v1773 = vpop.f32.mrb[0].mxu0
    %v1774 = vpop.f32.mrb[0].mxu0
    %1775 = vdwg.mxu0
    %1776 = vrot.lane.b32.xlu0 %v1727, 96
    %v1777 = vpop.permute.xlu0 %1776
    %v1779 = vsel %vm391, %v1727, 0
    %v1782 = vsel %vm391, %v1777, 0
    %1784 = vmatprep.subr.bf16.mxu0 0
    %1785 = vmatpush1.bf16.xpose.msra.mxu0 %v1782
    %1786 = vmatprep.subr.bf16.mxu0 0
    %1787 = vmatpush1.bf16.xpose.msra.mxu0 0
    %1788 = vmatprep.subr.bf16.mxu0 0
    %1789 = vmatpush1.bf16.xpose.msra.mxu0 0
    %1790 = vmatprep.subr.bf16.mxu0 0
    %1791 = vmatpush1.bf16.xpose.msra.mxu0 0
    %1792 = vmatprep.subr.bf16.mxu0 0
    %1793 = vmatpush1.bf16.xpose.msra.mxu0 0
    %1794 = vmatprep.subr.bf16.mxu0 0
    %1795 = vmatpush1.bf16.xpose.msra.mxu0 0
    %1796 = vmatprep.subr.bf16.mxu0 0
    %1797 = vmatpush1.bf16.xpose.msra.mxu0 0
    %1798 = vmatprep.subr.bf16.mxu0 0
    %1799 = vmatpush1.bf16.xpose.msra.mxu0 0
    %1800 = vmatprep.subr.bf16.mxu0 0
    %1801 = vmatpush1.bf16.xpose.msra.mxu0 0
    %1802 = vmatprep.subr.bf16.mxu0 0
    %1803 = vmatpush1.bf16.xpose.msra.mxu0 0
    %1804 = vmatprep.subr.bf16.mxu0 0
    %1805 = vmatpush1.bf16.xpose.msra.mxu0 0
    %1806 = vmatprep.subr.bf16.mxu0 0
    %1807 = vmatpush1.bf16.xpose.msra.mxu0 0
    %1808 = vmatprep.subr.bf16.mxu0 0
    %1809 = vmatpush1.bf16.xpose.msra.mxu0 0
    %1810 = vmatprep.subr.bf16.mxu0 0
    %1811 = vmatpush1.bf16.xpose.msra.mxu0 0
    %1812 = vmatprep.subr.bf16.mxu0 0
    %1813 = vmatpush1.bf16.xpose.msra.mxu0 0
    %1814 = vmatprep.subr.bf16.mxu0 0
    %1815 = vmatpush1.bf16.xpose.msra.mxu0 0
    %1816 = vmatprep.mubr.bf16.mxu0 0
    %1817 = vmatmul.mubr.bf16.gmra.mrb[0].mxu0 %v1779
    %v1818 = vpop.f32.mrb[0].mxu0
    %v1819 = vadd.f32 %v275, %v1818
    %v1820 = vpop.f32.mrb[0].mxu0
    %v1821 = vpop.f32.mrb[0].mxu0
    %v1822 = vpop.f32.mrb[0].mxu0
    %1823 = vdwg.mxu0
    %v1824 = vsel %vm391, %v1771, -inf
    %1825 = vmax.xlane.f32.xlu0 %v1824
    %v1826 = vpop.xlane.xlu0 %1825
    %v1827 = vsel %vm391, %v1819, -inf
    %1828 = vmax.xlane.f32.xlu0 %v1827
    %v1829 = vpop.xlane.xlu0 %1828
    %v1830 = vsub.f32 %v1771, %v1826
    %v1831 = vsub.f32 %v1819, %v1829
    %v1832 = vmul.f32 %v1830, 1.442695
    %v1833 = vpow.pop %v1832
    %v1834 = vmul.f32 %v1831, 1.442695
    %v1835 = vpow.pop %v1834
    %v1836 = vsel %vm391, %v1833, 0.0
    %1837 = vadd.xlane.f32.xlu0 %v1836
    %v1838 = vpop.xlane.xlu0 %1837
    %v1839 = vsel %vm391, %v1835, 0.0
    %1840 = vadd.xlane.f32.xlu0 %v1839
    %v1841 = vpop.xlane.xlu0 %1840
    %v1842 = vrcp.pop %v1838
    %v1843 = vrcp.pop %v1841
    %v1844 = vmul.f32 %v1833, %v1842
    %v1845 = vmul.f32 %v1835, %v1843
    %v1846 = vpack.c.bf16 %v1844, %v1844
    %v1847 = vpack.c.bf16 %v1845, %v1845
    %1848 = vrot.lane.b32.xlu0 %v1726, 64
    %v1849 = vpop.permute.xlu0 %1848
    %v1851 = vsel %vm391, %v1846, 0
    %v1854 = vsel %vm515, %v1849, 0
    %1856 = vmatprep.subr.bf16.mxu0 0
    %1857 = vmatpush1.bf16.msra.mxu0 %v1854
    %1858 = vmatprep.subr.bf16.mxu0 0
    %1859 = vmatpush1.bf16.msra.mxu0 0
    %1860 = vmatprep.subr.bf16.mxu0 0
    %1861 = vmatpush1.bf16.msra.mxu0 0
    %1862 = vmatprep.subr.bf16.mxu0 0
    %1863 = vmatpush1.bf16.msra.mxu0 0
    %1864 = vmatprep.subr.bf16.mxu0 0
    %1865 = vmatpush1.bf16.msra.mxu0 0
    %1866 = vmatprep.subr.bf16.mxu0 0
    %1867 = vmatpush1.bf16.msra.mxu0 0
    %1868 = vmatprep.subr.bf16.mxu0 0
    %1869 = vmatpush1.bf16.msra.mxu0 0
    %1870 = vmatprep.subr.bf16.mxu0 0
    %1871 = vmatpush1.bf16.msra.mxu0 0
    %1872 = vmatprep.subr.bf16.mxu0 0
    %1873 = vmatpush1.bf16.msra.mxu0 0
    %1874 = vmatprep.subr.bf16.mxu0 0
    %1875 = vmatpush1.bf16.msra.mxu0 0
    %1876 = vmatprep.subr.bf16.mxu0 0
    %1877 = vmatpush1.bf16.msra.mxu0 0
    %1878 = vmatprep.subr.bf16.mxu0 0
    %1879 = vmatpush1.bf16.msra.mxu0 0
    %1880 = vmatprep.subr.bf16.mxu0 0
    %1881 = vmatpush1.bf16.msra.mxu0 0
    %1882 = vmatprep.subr.bf16.mxu0 0
    %1883 = vmatpush1.bf16.msra.mxu0 0
    %1884 = vmatprep.subr.bf16.mxu0 0
    %1885 = vmatpush1.bf16.msra.mxu0 0
    %1886 = vmatprep.subr.bf16.mxu0 0
    %1887 = vmatpush1.bf16.msra.mxu0 0
    %1888 = vmatprep.mubr.bf16.mxu0 0
    %1889 = vmatmul.mubr.bf16.gmra.mrb[0].mxu0 %v1851
    %v1890 = vpop.f32.mrb[0].mxu0
    %v1891 = vadd.f32 0.0, %v1890
    %v1892 = vpop.f32.mrb[0].mxu0
    %v1893 = vpop.f32.mrb[0].mxu0
    %v1894 = vpop.f32.mrb[0].mxu0
    %1895 = vdwg.mxu0
    %1896 = vrot.lane.b32.xlu0 %v1727, 64
    %v1897 = vpop.permute.xlu0 %1896
    %v1899 = vsel %vm391, %v1847, 0
    %v1902 = vsel %vm515, %v1897, 0
    %1904 = vmatprep.subr.bf16.mxu0 0
    %1905 = vmatpush1.bf16.msra.mxu0 %v1902
    %1906 = vmatprep.subr.bf16.mxu0 0
    %1907 = vmatpush1.bf16.msra.mxu0 0
    %1908 = vmatprep.subr.bf16.mxu0 0
    %1909 = vmatpush1.bf16.msra.mxu0 0
    %1910 = vmatprep.subr.bf16.mxu0 0
    %1911 = vmatpush1.bf16.msra.mxu0 0
    %1912 = vmatprep.subr.bf16.mxu0 0
    %1913 = vmatpush1.bf16.msra.mxu0 0
    %1914 = vmatprep.subr.bf16.mxu0 0
    %1915 = vmatpush1.bf16.msra.mxu0 0
    %1916 = vmatprep.subr.bf16.mxu0 0
    %1917 = vmatpush1.bf16.msra.mxu0 0
    %1918 = vmatprep.subr.bf16.mxu0 0
    %1919 = vmatpush1.bf16.msra.mxu0 0
    %1920 = vmatprep.subr.bf16.mxu0 0
    %1921 = vmatpush1.bf16.msra.mxu0 0
    %1922 = vmatprep.subr.bf16.mxu0 0
    %1923 = vmatpush1.bf16.msra.mxu0 0
    %1924 = vmatprep.subr.bf16.mxu0 0
    %1925 = vmatpush1.bf16.msra.mxu0 0
    %1926 = vmatprep.subr.bf16.mxu0 0
    %1927 = vmatpush1.bf16.msra.mxu0 0
    %1928 = vmatprep.subr.bf16.mxu0 0
    %1929 = vmatpush1.bf16.msra.mxu0 0
    %1930 = vmatprep.subr.bf16.mxu0 0
    %1931 = vmatpush1.bf16.msra.mxu0 0
    %1932 = vmatprep.subr.bf16.mxu0 0
    %1933 = vmatpush1.bf16.msra.mxu0 0
    %1934 = vmatprep.subr.bf16.mxu0 0
    %1935 = vmatpush1.bf16.msra.mxu0 0
    %1936 = vmatprep.mubr.bf16.mxu0 0
    %1937 = vmatmul.mubr.bf16.gmra.mrb[0].mxu0 %v1899
    %v1938 = vpop.f32.mrb[0].mxu0
    %v1939 = vadd.f32 0.0, %v1938
    %v1940 = vpop.f32.mrb[0].mxu0
    %v1941 = vpop.f32.mrb[0].mxu0
    %v1942 = vpop.f32.mrb[0].mxu0
    %1943 = vdwg.mxu0
    %1944 = vrot.lane.b32.xlu0 %v1726, 120
    %v1945 = vpop.permute.xlu0 %1944
    %1946 = vrot.lane.b32.xlu0 %v1726, 88
    %v1947 = vpop.permute.xlu0 %1946
    %v1949 = vsel %vm391, %v1945, 0
    %v1952 = vsel %vm391, %v1947, 0
    %1954 = vmatprep.subr.bf16.mxu0 0
    %1955 = vmatpush1.bf16.xpose.msra.mxu0 %v1952
    %1956 = vmatprep.subr.bf16.mxu0 0
    %1957 = vmatpush1.bf16.xpose.msra.mxu0 0
    %1958 = vmatprep.subr.bf16.mxu0 0
    %1959 = vmatpush1.bf16.xpose.msra.mxu0 0
    %1960 = vmatprep.subr.bf16.mxu0 0
    %1961 = vmatpush1.bf16.xpose.msra.mxu0 0
    %1962 = vmatprep.subr.bf16.mxu0 0
    %1963 = vmatpush1.bf16.xpose.msra.mxu0 0
    %1964 = vmatprep.subr.bf16.mxu0 0
    %1965 = vmatpush1.bf16.xpose.msra.mxu0 0
    %1966 = vmatprep.subr.bf16.mxu0 0
    %1967 = vmatpush1.bf16.xpose.msra.mxu0 0
    %1968 = vmatprep.subr.bf16.mxu0 0
    %1969 = vmatpush1.bf16.xpose.msra.mxu0 0
    %1970 = vmatprep.subr.bf16.mxu0 0
    %1971 = vmatpush1.bf16.xpose.msra.mxu0 0
    %1972 = vmatprep.subr.bf16.mxu0 0
    %1973 = vmatpush1.bf16.xpose.msra.mxu0 0
    %1974 = vmatprep.subr.bf16.mxu0 0
    %1975 = vmatpush1.bf16.xpose.msra.mxu0 0
    %1976 = vmatprep.subr.bf16.mxu0 0
    %1977 = vmatpush1.bf16.xpose.msra.mxu0 0
    %1978 = vmatprep.subr.bf16.mxu0 0
    %1979 = vmatpush1.bf16.xpose.msra.mxu0 0
    %1980 = vmatprep.subr.bf16.mxu0 0
    %1981 = vmatpush1.bf16.xpose.msra.mxu0 0
    %1982 = vmatprep.subr.bf16.mxu0 0
    %1983 = vmatpush1.bf16.xpose.msra.mxu0 0
    %1984 = vmatprep.subr.bf16.mxu0 0
    %1985 = vmatpush1.bf16.xpose.msra.mxu0 0
    %1986 = vmatprep.mubr.bf16.mxu0 0
    %1987 = vmatmul.mubr.bf16.gmra.mrb[0].mxu0 %v1949
    %v1988 = vpop.f32.mrb[0].mxu0
    %v1989 = vadd.f32 %v275, %v1988
    %v1990 = vpop.f32.mrb[0].mxu0
    %v1991 = vpop.f32.mrb[0].mxu0
    %v1992 = vpop.f32.mrb[0].mxu0
    %1993 = vdwg.mxu0
    %1994 = vrot.lane.b32.xlu0 %v1727, 120
    %v1995 = vpop.permute.xlu0 %1994
    %1996 = vrot.lane.b32.xlu0 %v1727, 88
    %v1997 = vpop.permute.xlu0 %1996
    %v1999 = vsel %vm391, %v1995, 0
    %v2002 = vsel %vm391, %v1997, 0
    %2004 = vmatprep.subr.bf16.mxu0 0
    %2005 = vmatpush1.bf16.xpose.msra.mxu0 %v2002
    %2006 = vmatprep.subr.bf16.mxu0 0
    %2007 = vmatpush1.bf16.xpose.msra.mxu0 0
    %2008 = vmatprep.subr.bf16.mxu0 0
    %2009 = vmatpush1.bf16.xpose.msra.mxu0 0
    %2010 = vmatprep.subr.bf16.mxu0 0
    %2011 = vmatpush1.bf16.xpose.msra.mxu0 0
    %2012 = vmatprep.subr.bf16.mxu0 0
    %2013 = vmatpush1.bf16.xpose.msra.mxu0 0
    %2014 = vmatprep.subr.bf16.mxu0 0
    %2015 = vmatpush1.bf16.xpose.msra.mxu0 0
    %2016 = vmatprep.subr.bf16.mxu0 0
    %2017 = vmatpush1.bf16.xpose.msra.mxu0 0
    %2018 = vmatprep.subr.bf16.mxu0 0
    %2019 = vmatpush1.bf16.xpose.msra.mxu0 0
    %2020 = vmatprep.subr.bf16.mxu0 0
    %2021 = vmatpush1.bf16.xpose.msra.mxu0 0
    %2022 = vmatprep.subr.bf16.mxu0 0
    %2023 = vmatpush1.bf16.xpose.msra.mxu0 0
    %2024 = vmatprep.subr.bf16.mxu0 0
    %2025 = vmatpush1.bf16.xpose.msra.mxu0 0
    %2026 = vmatprep.subr.bf16.mxu0 0
    %2027 = vmatpush1.bf16.xpose.msra.mxu0 0
    %2028 = vmatprep.subr.bf16.mxu0 0
    %2029 = vmatpush1.bf16.xpose.msra.mxu0 0
    %2030 = vmatprep.subr.bf16.mxu0 0
    %2031 = vmatpush1.bf16.xpose.msra.mxu0 0
    %2032 = vmatprep.subr.bf16.mxu0 0
    %2033 = vmatpush1.bf16.xpose.msra.mxu0 0
    %2034 = vmatprep.subr.bf16.mxu0 0
    %2035 = vmatpush1.bf16.xpose.msra.mxu0 0
    %2036 = vmatprep.mubr.bf16.mxu0 0
    %2037 = vmatmul.mubr.bf16.gmra.mrb[0].mxu0 %v1999
    %v2038 = vpop.f32.mrb[0].mxu0
    %v2039 = vadd.f32 %v275, %v2038
    %v2040 = vpop.f32.mrb[0].mxu0
    %v2041 = vpop.f32.mrb[0].mxu0
    %v2042 = vpop.f32.mrb[0].mxu0
    %2043 = vdwg.mxu0
    %v2044 = vsel %vm391, %v1989, -inf
    %2045 = vmax.xlane.f32.xlu0 %v2044
    %v2046 = vpop.xlane.xlu0 %2045
    %v2047 = vsel %vm391, %v2039, -inf
    %2048 = vmax.xlane.f32.xlu0 %v2047
    %v2049 = vpop.xlane.xlu0 %2048
    %v2050 = vsub.f32 %v1989, %v2046
    %v2051 = vsub.f32 %v2039, %v2049
    %v2052 = vmul.f32 %v2050, 1.442695
    %v2053 = vpow.pop %v2052
    %v2054 = vmul.f32 %v2051, 1.442695
    %v2055 = vpow.pop %v2054
    %v2056 = vsel %vm391, %v2053, 0.0
    %2057 = vadd.xlane.f32.xlu0 %v2056
    %v2058 = vpop.xlane.xlu0 %2057
    %v2059 = vsel %vm391, %v2055, 0.0
    %2060 = vadd.xlane.f32.xlu0 %v2059
    %v2061 = vpop.xlane.xlu0 %2060
    %v2062 = vrcp.pop %v2058
    %v2063 = vrcp.pop %v2061
    %v2064 = vmul.f32 %v2053, %v2062
    %v2065 = vmul.f32 %v2055, %v2063
    %v2066 = vpack.c.bf16 %v2064, %v2064
    %v2067 = vpack.c.bf16 %v2065, %v2065
    %2068 = vrot.lane.b32.xlu0 %v1726, 56
    %v2069 = vpop.permute.xlu0 %2068
    %v2071 = vsel %vm391, %v2066, 0
    %v2074 = vsel %vm515, %v2069, 0
    %2076 = vmatprep.subr.bf16.mxu0 0
    %2077 = vmatpush1.bf16.msra.mxu0 %v2074
    %2078 = vmatprep.subr.bf16.mxu0 0
    %2079 = vmatpush1.bf16.msra.mxu0 0
    %2080 = vmatprep.subr.bf16.mxu0 0
    %2081 = vmatpush1.bf16.msra.mxu0 0
    %2082 = vmatprep.subr.bf16.mxu0 0
    %2083 = vmatpush1.bf16.msra.mxu0 0
    %2084 = vmatprep.subr.bf16.mxu0 0
    %2085 = vmatpush1.bf16.msra.mxu0 0
    %2086 = vmatprep.subr.bf16.mxu0 0
    %2087 = vmatpush1.bf16.msra.mxu0 0
    %2088 = vmatprep.subr.bf16.mxu0 0
    %2089 = vmatpush1.bf16.msra.mxu0 0
    %2090 = vmatprep.subr.bf16.mxu0 0
    %2091 = vmatpush1.bf16.msra.mxu0 0
    %2092 = vmatprep.subr.bf16.mxu0 0
    %2093 = vmatpush1.bf16.msra.mxu0 0
    %2094 = vmatprep.subr.bf16.mxu0 0
    %2095 = vmatpush1.bf16.msra.mxu0 0
    %2096 = vmatprep.subr.bf16.mxu0 0
    %2097 = vmatpush1.bf16.msra.mxu0 0
    %2098 = vmatprep.subr.bf16.mxu0 0
    %2099 = vmatpush1.bf16.msra.mxu0 0
    %2100 = vmatprep.subr.bf16.mxu0 0
    %2101 = vmatpush1.bf16.msra.mxu0 0
    %2102 = vmatprep.subr.bf16.mxu0 0
    %2103 = vmatpush1.bf16.msra.mxu0 0
    %2104 = vmatprep.subr.bf16.mxu0 0
    %2105 = vmatpush1.bf16.msra.mxu0 0
    %2106 = vmatprep.subr.bf16.mxu0 0
    %2107 = vmatpush1.bf16.msra.mxu0 0
    %2108 = vmatprep.mubr.bf16.mxu0 0
    %2109 = vmatmul.mubr.bf16.gmra.mrb[0].mxu0 %v2071
    %v2110 = vpop.f32.mrb[0].mxu0
    %v2111 = vadd.f32 0.0, %v2110
    %v2112 = vpop.f32.mrb[0].mxu0
    %v2113 = vpop.f32.mrb[0].mxu0
    %v2114 = vpop.f32.mrb[0].mxu0
    %2115 = vdwg.mxu0
    %2116 = vrot.lane.b32.xlu0 %v1727, 56
    %v2117 = vpop.permute.xlu0 %2116
    %v2119 = vsel %vm391, %v2067, 0
    %v2122 = vsel %vm515, %v2117, 0
    %2124 = vmatprep.subr.bf16.mxu0 0
    %2125 = vmatpush1.bf16.msra.mxu0 %v2122
    %2126 = vmatprep.subr.bf16.mxu0 0
    %2127 = vmatpush1.bf16.msra.mxu0 0
    %2128 = vmatprep.subr.bf16.mxu0 0
    %2129 = vmatpush1.bf16.msra.mxu0 0
    %2130 = vmatprep.subr.bf16.mxu0 0
    %2131 = vmatpush1.bf16.msra.mxu0 0
    %2132 = vmatprep.subr.bf16.mxu0 0
    %2133 = vmatpush1.bf16.msra.mxu0 0
    %2134 = vmatprep.subr.bf16.mxu0 0
    %2135 = vmatpush1.bf16.msra.mxu0 0
    %2136 = vmatprep.subr.bf16.mxu0 0
    %2137 = vmatpush1.bf16.msra.mxu0 0
    %2138 = vmatprep.subr.bf16.mxu0 0
    %2139 = vmatpush1.bf16.msra.mxu0 0
    %2140 = vmatprep.subr.bf16.mxu0 0
    %2141 = vmatpush1.bf16.msra.mxu0 0
    %2142 = vmatprep.subr.bf16.mxu0 0
    %2143 = vmatpush1.bf16.msra.mxu0 0
    %2144 = vmatprep.subr.bf16.mxu0 0
    %2145 = vmatpush1.bf16.msra.mxu0 0
    %2146 = vmatprep.subr.bf16.mxu0 0
    %2147 = vmatpush1.bf16.msra.mxu0 0
    %2148 = vmatprep.subr.bf16.mxu0 0
    %2149 = vmatpush1.bf16.msra.mxu0 0
    %2150 = vmatprep.subr.bf16.mxu0 0
    %2151 = vmatpush1.bf16.msra.mxu0 0
    %2152 = vmatprep.subr.bf16.mxu0 0
    %2153 = vmatpush1.bf16.msra.mxu0 0
    %2154 = vmatprep.subr.bf16.mxu0 0
    %2155 = vmatpush1.bf16.msra.mxu0 0
    %2156 = vmatprep.mubr.bf16.mxu0 0
    %2157 = vmatmul.mubr.bf16.gmra.mrb[0].mxu0 %v2119
    %v2158 = vpop.f32.mrb[0].mxu0
    %v2159 = vadd.f32 0.0, %v2158
    %v2160 = vpop.f32.mrb[0].mxu0
    %v2161 = vpop.f32.mrb[0].mxu0
    %v2162 = vpop.f32.mrb[0].mxu0
    %2163 = vdwg.mxu0
    %2164 = vrot.lane.b32.xlu0 %v1726, 112
    %v2165 = vpop.permute.xlu0 %2164
    %2166 = vrot.lane.b32.xlu0 %v1726, 80
    %v2167 = vpop.permute.xlu0 %2166
    %v2169 = vsel %vm391, %v2165, 0
    %v2172 = vsel %vm391, %v2167, 0
    %2174 = vmatprep.subr.bf16.mxu0 0
    %2175 = vmatpush1.bf16.xpose.msra.mxu0 %v2172
    %2176 = vmatprep.subr.bf16.mxu0 0
    %2177 = vmatpush1.bf16.xpose.msra.mxu0 0
    %2178 = vmatprep.subr.bf16.mxu0 0
    %2179 = vmatpush1.bf16.xpose.msra.mxu0 0
    %2180 = vmatprep.subr.bf16.mxu0 0
    %2181 = vmatpush1.bf16.xpose.msra.mxu0 0
    %2182 = vmatprep.subr.bf16.mxu0 0
    %2183 = vmatpush1.bf16.xpose.msra.mxu0 0
    %2184 = vmatprep.subr.bf16.mxu0 0
    %2185 = vmatpush1.bf16.xpose.msra.mxu0 0
    %2186 = vmatprep.subr.bf16.mxu0 0
    %2187 = vmatpush1.bf16.xpose.msra.mxu0 0
    %2188 = vmatprep.subr.bf16.mxu0 0
    %2189 = vmatpush1.bf16.xpose.msra.mxu0 0
    %2190 = vmatprep.subr.bf16.mxu0 0
    %2191 = vmatpush1.bf16.xpose.msra.mxu0 0
    %2192 = vmatprep.subr.bf16.mxu0 0
    %2193 = vmatpush1.bf16.xpose.msra.mxu0 0
    %2194 = vmatprep.subr.bf16.mxu0 0
    %2195 = vmatpush1.bf16.xpose.msra.mxu0 0
    %2196 = vmatprep.subr.bf16.mxu0 0
    %2197 = vmatpush1.bf16.xpose.msra.mxu0 0
    %2198 = vmatprep.subr.bf16.mxu0 0
    %2199 = vmatpush1.bf16.xpose.msra.mxu0 0
    %2200 = vmatprep.subr.bf16.mxu0 0
    %2201 = vmatpush1.bf16.xpose.msra.mxu0 0
    %2202 = vmatprep.subr.bf16.mxu0 0
    %2203 = vmatpush1.bf16.xpose.msra.mxu0 0
    %2204 = vmatprep.subr.bf16.mxu0 0
    %2205 = vmatpush1.bf16.xpose.msra.mxu0 0
    %2206 = vmatprep.mubr.bf16.mxu0 0
    %2207 = vmatmul.mubr.bf16.gmra.mrb[0].mxu0 %v2169
    %v2208 = vpop.f32.mrb[0].mxu0
    %v2209 = vadd.f32 %v275, %v2208
    %v2210 = vpop.f32.mrb[0].mxu0
    %v2211 = vpop.f32.mrb[0].mxu0
    %v2212 = vpop.f32.mrb[0].mxu0
    %2213 = vdwg.mxu0
    %2214 = vrot.lane.b32.xlu0 %v1727, 112
    %v2215 = vpop.permute.xlu0 %2214
    %2216 = vrot.lane.b32.xlu0 %v1727, 80
    %v2217 = vpop.permute.xlu0 %2216
    %v2219 = vsel %vm391, %v2215, 0
    %v2222 = vsel %vm391, %v2217, 0
    %2224 = vmatprep.subr.bf16.mxu0 0
    %2225 = vmatpush1.bf16.xpose.msra.mxu0 %v2222
    %2226 = vmatprep.subr.bf16.mxu0 0
    %2227 = vmatpush1.bf16.xpose.msra.mxu0 0
    %2228 = vmatprep.subr.bf16.mxu0 0
    %2229 = vmatpush1.bf16.xpose.msra.mxu0 0
    %2230 = vmatprep.subr.bf16.mxu0 0
    %2231 = vmatpush1.bf16.xpose.msra.mxu0 0
    %2232 = vmatprep.subr.bf16.mxu0 0
    %2233 = vmatpush1.bf16.xpose.msra.mxu0 0
    %2234 = vmatprep.subr.bf16.mxu0 0
    %2235 = vmatpush1.bf16.xpose.msra.mxu0 0
    %2236 = vmatprep.subr.bf16.mxu0 0
    %2237 = vmatpush1.bf16.xpose.msra.mxu0 0
    %2238 = vmatprep.subr.bf16.mxu0 0
    %2239 = vmatpush1.bf16.xpose.msra.mxu0 0
    %2240 = vmatprep.subr.bf16.mxu0 0
    %2241 = vmatpush1.bf16.xpose.msra.mxu0 0
    %2242 = vmatprep.subr.bf16.mxu0 0
    %2243 = vmatpush1.bf16.xpose.msra.mxu0 0
    %2244 = vmatprep.subr.bf16.mxu0 0
    %2245 = vmatpush1.bf16.xpose.msra.mxu0 0
    %2246 = vmatprep.subr.bf16.mxu0 0
    %2247 = vmatpush1.bf16.xpose.msra.mxu0 0
    %2248 = vmatprep.subr.bf16.mxu0 0
    %2249 = vmatpush1.bf16.xpose.msra.mxu0 0
    %2250 = vmatprep.subr.bf16.mxu0 0
    %2251 = vmatpush1.bf16.xpose.msra.mxu0 0
    %2252 = vmatprep.subr.bf16.mxu0 0
    %2253 = vmatpush1.bf16.xpose.msra.mxu0 0
    %2254 = vmatprep.subr.bf16.mxu0 0
    %2255 = vmatpush1.bf16.xpose.msra.mxu0 0
    %2256 = vmatprep.mubr.bf16.mxu0 0
    %2257 = vmatmul.mubr.bf16.gmra.mrb[0].mxu0 %v2219
    %v2258 = vpop.f32.mrb[0].mxu0
    %v2259 = vadd.f32 %v275, %v2258
    %v2260 = vpop.f32.mrb[0].mxu0
    %v2261 = vpop.f32.mrb[0].mxu0
    %v2262 = vpop.f32.mrb[0].mxu0
    %2263 = vdwg.mxu0
    %v2264 = vsel %vm391, %v2209, -inf
    %2265 = vmax.xlane.f32.xlu0 %v2264
    %v2266 = vpop.xlane.xlu0 %2265
    %v2267 = vsel %vm391, %v2259, -inf
    %2268 = vmax.xlane.f32.xlu0 %v2267
    %v2269 = vpop.xlane.xlu0 %2268
    %v2270 = vsub.f32 %v2209, %v2266
    %v2271 = vsub.f32 %v2259, %v2269
    %v2272 = vmul.f32 %v2270, 1.442695
    %v2273 = vpow.pop %v2272
    %v2274 = vmul.f32 %v2271, 1.442695
    %v2275 = vpow.pop %v2274
    %v2276 = vsel %vm391, %v2273, 0.0
    %2277 = vadd.xlane.f32.xlu0 %v2276
    %v2278 = vpop.xlane.xlu0 %2277
    %v2279 = vsel %vm391, %v2275, 0.0
    %2280 = vadd.xlane.f32.xlu0 %v2279
    %v2281 = vpop.xlane.xlu0 %2280
    %v2282 = vrcp.pop %v2278
    %v2283 = vrcp.pop %v2281
    %v2284 = vmul.f32 %v2273, %v2282
    %v2285 = vmul.f32 %v2275, %v2283
    %v2286 = vpack.c.bf16 %v2284, %v2284
    %v2287 = vpack.c.bf16 %v2285, %v2285
    %2288 = vrot.lane.b32.xlu0 %v1726, 48
    %v2289 = vpop.permute.xlu0 %2288
    %v2291 = vsel %vm391, %v2286, 0
    %v2294 = vsel %vm515, %v2289, 0
    %2296 = vmatprep.subr.bf16.mxu0 0
    %2297 = vmatpush1.bf16.msra.mxu0 %v2294
    %2298 = vmatprep.subr.bf16.mxu0 0
    %2299 = vmatpush1.bf16.msra.mxu0 0
    %2300 = vmatprep.subr.bf16.mxu0 0
    %2301 = vmatpush1.bf16.msra.mxu0 0
    %2302 = vmatprep.subr.bf16.mxu0 0
    %2303 = vmatpush1.bf16.msra.mxu0 0
    %2304 = vmatprep.subr.bf16.mxu0 0
    %2305 = vmatpush1.bf16.msra.mxu0 0
    %2306 = vmatprep.subr.bf16.mxu0 0
    %2307 = vmatpush1.bf16.msra.mxu0 0
    %2308 = vmatprep.subr.bf16.mxu0 0
    %2309 = vmatpush1.bf16.msra.mxu0 0
    %2310 = vmatprep.subr.bf16.mxu0 0
    %2311 = vmatpush1.bf16.msra.mxu0 0
    %2312 = vmatprep.subr.bf16.mxu0 0
    %2313 = vmatpush1.bf16.msra.mxu0 0
    %2314 = vmatprep.subr.bf16.mxu0 0
    %2315 = vmatpush1.bf16.msra.mxu0 0
    %2316 = vmatprep.subr.bf16.mxu0 0
    %2317 = vmatpush1.bf16.msra.mxu0 0
    %2318 = vmatprep.subr.bf16.mxu0 0
    %2319 = vmatpush1.bf16.msra.mxu0 0
    %2320 = vmatprep.subr.bf16.mxu0 0
    %2321 = vmatpush1.bf16.msra.mxu0 0
    %2322 = vmatprep.subr.bf16.mxu0 0
    %2323 = vmatpush1.bf16.msra.mxu0 0
    %2324 = vmatprep.subr.bf16.mxu0 0
    %2325 = vmatpush1.bf16.msra.mxu0 0
    %2326 = vmatprep.subr.bf16.mxu0 0
    %2327 = vmatpush1.bf16.msra.mxu0 0
    %2328 = vmatprep.mubr.bf16.mxu0 0
    %2329 = vmatmul.mubr.bf16.gmra.mrb[0].mxu0 %v2291
    %v2330 = vpop.f32.mrb[0].mxu0
    %v2331 = vadd.f32 0.0, %v2330
    %v2332 = vpop.f32.mrb[0].mxu0
    %v2333 = vpop.f32.mrb[0].mxu0
    %v2334 = vpop.f32.mrb[0].mxu0
    %2335 = vdwg.mxu0
    %2336 = vrot.lane.b32.xlu0 %v1727, 48
    %v2337 = vpop.permute.xlu0 %2336
    %v2339 = vsel %vm391, %v2287, 0
    %v2342 = vsel %vm515, %v2337, 0
    %2344 = vmatprep.subr.bf16.mxu0 0
    %2345 = vmatpush1.bf16.msra.mxu0 %v2342
    %2346 = vmatprep.subr.bf16.mxu0 0
    %2347 = vmatpush1.bf16.msra.mxu0 0
    %2348 = vmatprep.subr.bf16.mxu0 0
    %2349 = vmatpush1.bf16.msra.mxu0 0
    %2350 = vmatprep.subr.bf16.mxu0 0
    %2351 = vmatpush1.bf16.msra.mxu0 0
    %2352 = vmatprep.subr.bf16.mxu0 0
    %2353 = vmatpush1.bf16.msra.mxu0 0
    %2354 = vmatprep.subr.bf16.mxu0 0
    %2355 = vmatpush1.bf16.msra.mxu0 0
    %2356 = vmatprep.subr.bf16.mxu0 0
    %2357 = vmatpush1.bf16.msra.mxu0 0
    %2358 = vmatprep.subr.bf16.mxu0 0
    %2359 = vmatpush1.bf16.msra.mxu0 0
    %2360 = vmatprep.subr.bf16.mxu0 0
    %2361 = vmatpush1.bf16.msra.mxu0 0
    %2362 = vmatprep.subr.bf16.mxu0 0
    %2363 = vmatpush1.bf16.msra.mxu0 0
    %2364 = vmatprep.subr.bf16.mxu0 0
    %2365 = vmatpush1.bf16.msra.mxu0 0
    %2366 = vmatprep.subr.bf16.mxu0 0
    %2367 = vmatpush1.bf16.msra.mxu0 0
    %2368 = vmatprep.subr.bf16.mxu0 0
    %2369 = vmatpush1.bf16.msra.mxu0 0
    %2370 = vmatprep.subr.bf16.mxu0 0
    %2371 = vmatpush1.bf16.msra.mxu0 0
    %2372 = vmatprep.subr.bf16.mxu0 0
    %2373 = vmatpush1.bf16.msra.mxu0 0
    %2374 = vmatprep.subr.bf16.mxu0 0
    %2375 = vmatpush1.bf16.msra.mxu0 0
    %2376 = vmatprep.mubr.bf16.mxu0 0
    %2377 = vmatmul.mubr.bf16.gmra.mrb[0].mxu0 %v2339
    %v2378 = vpop.f32.mrb[0].mxu0
    %v2379 = vadd.f32 0.0, %v2378
    %v2380 = vpop.f32.mrb[0].mxu0
    %v2381 = vpop.f32.mrb[0].mxu0
    %v2382 = vpop.f32.mrb[0].mxu0
    %2383 = vdwg.mxu0
    %2384 = vrot.lane.b32.xlu0 %v1726, 104
    %v2385 = vpop.permute.xlu0 %2384
    %2386 = vrot.lane.b32.xlu0 %v1726, 72
    %v2387 = vpop.permute.xlu0 %2386
    %v2389 = vsel %vm391, %v2385, 0
    %v2392 = vsel %vm391, %v2387, 0
    %2394 = vmatprep.subr.bf16.mxu0 0
    %2395 = vmatpush1.bf16.xpose.msra.mxu0 %v2392
    %2396 = vmatprep.subr.bf16.mxu0 0
    %2397 = vmatpush1.bf16.xpose.msra.mxu0 0
    %2398 = vmatprep.subr.bf16.mxu0 0
    %2399 = vmatpush1.bf16.xpose.msra.mxu0 0
    %2400 = vmatprep.subr.bf16.mxu0 0
    %2401 = vmatpush1.bf16.xpose.msra.mxu0 0
    %2402 = vmatprep.subr.bf16.mxu0 0
    %2403 = vmatpush1.bf16.xpose.msra.mxu0 0
    %2404 = vmatprep.subr.bf16.mxu0 0
    %2405 = vmatpush1.bf16.xpose.msra.mxu0 0
    %2406 = vmatprep.subr.bf16.mxu0 0
    %2407 = vmatpush1.bf16.xpose.msra.mxu0 0
    %2408 = vmatprep.subr.bf16.mxu0 0
    %2409 = vmatpush1.bf16.xpose.msra.mxu0 0
    %2410 = vmatprep.subr.bf16.mxu0 0
    %2411 = vmatpush1.bf16.xpose.msra.mxu0 0
    %2412 = vmatprep.subr.bf16.mxu0 0
    %2413 = vmatpush1.bf16.xpose.msra.mxu0 0
    %2414 = vmatprep.subr.bf16.mxu0 0
    %2415 = vmatpush1.bf16.xpose.msra.mxu0 0
    %2416 = vmatprep.subr.bf16.mxu0 0
    %2417 = vmatpush1.bf16.xpose.msra.mxu0 0
    %2418 = vmatprep.subr.bf16.mxu0 0
    %2419 = vmatpush1.bf16.xpose.msra.mxu0 0
    %2420 = vmatprep.subr.bf16.mxu0 0
    %2421 = vmatpush1.bf16.xpose.msra.mxu0 0
    %2422 = vmatprep.subr.bf16.mxu0 0
    %2423 = vmatpush1.bf16.xpose.msra.mxu0 0
    %2424 = vmatprep.subr.bf16.mxu0 0
    %2425 = vmatpush1.bf16.xpose.msra.mxu0 0
    %2426 = vmatprep.mubr.bf16.mxu0 0
    %2427 = vmatmul.mubr.bf16.gmra.mrb[0].mxu0 %v2389
    %v2428 = vpop.f32.mrb[0].mxu0
    %v2429 = vadd.f32 %v275, %v2428
    %v2430 = vpop.f32.mrb[0].mxu0
    %v2431 = vpop.f32.mrb[0].mxu0
    %v2432 = vpop.f32.mrb[0].mxu0
    %2433 = vdwg.mxu0
    %2434 = vrot.lane.b32.xlu0 %v1727, 104
    %v2435 = vpop.permute.xlu0 %2434
    %2436 = vrot.lane.b32.xlu0 %v1727, 72
    %v2437 = vpop.permute.xlu0 %2436
    %v2439 = vsel %vm391, %v2435, 0
    %v2442 = vsel %vm391, %v2437, 0
    %2444 = vmatprep.subr.bf16.mxu0 0
    %2445 = vmatpush1.bf16.xpose.msra.mxu0 %v2442
    %2446 = vmatprep.subr.bf16.mxu0 0
    %2447 = vmatpush1.bf16.xpose.msra.mxu0 0
    %2448 = vmatprep.subr.bf16.mxu0 0
    %2449 = vmatpush1.bf16.xpose.msra.mxu0 0
    %2450 = vmatprep.subr.bf16.mxu0 0
    %2451 = vmatpush1.bf16.xpose.msra.mxu0 0
    %2452 = vmatprep.subr.bf16.mxu0 0
    %2453 = vmatpush1.bf16.xpose.msra.mxu0 0
    %2454 = vmatprep.subr.bf16.mxu0 0
    %2455 = vmatpush1.bf16.xpose.msra.mxu0 0
    %2456 = vmatprep.subr.bf16.mxu0 0
    %2457 = vmatpush1.bf16.xpose.msra.mxu0 0
    %2458 = vmatprep.subr.bf16.mxu0 0
    %2459 = vmatpush1.bf16.xpose.msra.mxu0 0
    %2460 = vmatprep.subr.bf16.mxu0 0
    %2461 = vmatpush1.bf16.xpose.msra.mxu0 0
    %2462 = vmatprep.subr.bf16.mxu0 0
    %2463 = vmatpush1.bf16.xpose.msra.mxu0 0
    %2464 = vmatprep.subr.bf16.mxu0 0
    %2465 = vmatpush1.bf16.xpose.msra.mxu0 0
    %2466 = vmatprep.subr.bf16.mxu0 0
    %2467 = vmatpush1.bf16.xpose.msra.mxu0 0
    %2468 = vmatprep.subr.bf16.mxu0 0
    %2469 = vmatpush1.bf16.xpose.msra.mxu0 0
    %2470 = vmatprep.subr.bf16.mxu0 0
    %2471 = vmatpush1.bf16.xpose.msra.mxu0 0
    %2472 = vmatprep.subr.bf16.mxu0 0
    %2473 = vmatpush1.bf16.xpose.msra.mxu0 0
    %2474 = vmatprep.subr.bf16.mxu0 0
    %2475 = vmatpush1.bf16.xpose.msra.mxu0 0
    %2476 = vmatprep.mubr.bf16.mxu0 0
    %2477 = vmatmul.mubr.bf16.gmra.mrb[0].mxu0 %v2439
    %v2478 = vpop.f32.mrb[0].mxu0
    %v2479 = vadd.f32 %v275, %v2478
    %v2480 = vpop.f32.mrb[0].mxu0
    %v2481 = vpop.f32.mrb[0].mxu0
    %v2482 = vpop.f32.mrb[0].mxu0
    %2483 = vdwg.mxu0
    %v2484 = vsel %vm391, %v2429, -inf
    %2485 = vmax.xlane.f32.xlu0 %v2484
    %v2486 = vpop.xlane.xlu0 %2485
    %v2487 = vsel %vm391, %v2479, -inf
    %2488 = vmax.xlane.f32.xlu0 %v2487
    %v2489 = vpop.xlane.xlu0 %2488
    %v2490 = vsub.f32 %v2429, %v2486
    %v2491 = vsub.f32 %v2479, %v2489
    %v2492 = vmul.f32 %v2490, 1.442695
    %v2493 = vpow.pop %v2492
    %v2494 = vmul.f32 %v2491, 1.442695
    %v2495 = vpow.pop %v2494
    %v2496 = vsel %vm391, %v2493, 0.0
    %2497 = vadd.xlane.f32.xlu0 %v2496
    %v2498 = vpop.xlane.xlu0 %2497
    %v2499 = vsel %vm391, %v2495, 0.0
    %2500 = vadd.xlane.f32.xlu0 %v2499
    %v2501 = vpop.xlane.xlu0 %2500
    %v2502 = vrcp.pop %v2498
    %v2503 = vrcp.pop %v2501
    %v2504 = vmul.f32 %v2493, %v2502
    %v2505 = vmul.f32 %v2495, %v2503
    %v2506 = vpack.c.bf16 %v2504, %v2504
    %v2507 = vpack.c.bf16 %v2505, %v2505
    %2508 = vrot.lane.b32.xlu0 %v1726, 40
    %v2509 = vpop.permute.xlu0 %2508
    %v2511 = vsel %vm391, %v2506, 0
    %v2514 = vsel %vm515, %v2509, 0
    %2516 = vmatprep.subr.bf16.mxu0 0
    %2517 = vmatpush1.bf16.msra.mxu0 %v2514
    %2518 = vmatprep.subr.bf16.mxu0 0
    %2519 = vmatpush1.bf16.msra.mxu0 0
    %2520 = vmatprep.subr.bf16.mxu0 0
    %2521 = vmatpush1.bf16.msra.mxu0 0
    %2522 = vmatprep.subr.bf16.mxu0 0
    %2523 = vmatpush1.bf16.msra.mxu0 0
    %2524 = vmatprep.subr.bf16.mxu0 0
    %2525 = vmatpush1.bf16.msra.mxu0 0
    %2526 = vmatprep.subr.bf16.mxu0 0
    %2527 = vmatpush1.bf16.msra.mxu0 0
    %2528 = vmatprep.subr.bf16.mxu0 0
    %2529 = vmatpush1.bf16.msra.mxu0 0
    %2530 = vmatprep.subr.bf16.mxu0 0
    %2531 = vmatpush1.bf16.msra.mxu0 0
    %2532 = vmatprep.subr.bf16.mxu0 0
    %2533 = vmatpush1.bf16.msra.mxu0 0
    %2534 = vmatprep.subr.bf16.mxu0 0
    %2535 = vmatpush1.bf16.msra.mxu0 0
    %2536 = vmatprep.subr.bf16.mxu0 0
    %2537 = vmatpush1.bf16.msra.mxu0 0
    %2538 = vmatprep.subr.bf16.mxu0 0
    %2539 = vmatpush1.bf16.msra.mxu0 0
    %2540 = vmatprep.subr.bf16.mxu0 0
    %2541 = vmatpush1.bf16.msra.mxu0 0
    %2542 = vmatprep.subr.bf16.mxu0 0
    %2543 = vmatpush1.bf16.msra.mxu0 0
    %2544 = vmatprep.subr.bf16.mxu0 0
    %2545 = vmatpush1.bf16.msra.mxu0 0
    %2546 = vmatprep.subr.bf16.mxu0 0
    %2547 = vmatpush1.bf16.msra.mxu0 0
    %2548 = vmatprep.mubr.bf16.mxu0 0
    %2549 = vmatmul.mubr.bf16.gmra.mrb[0].mxu0 %v2511
    %v2550 = vpop.f32.mrb[0].mxu0
    %v2551 = vadd.f32 0.0, %v2550
    %v2552 = vpop.f32.mrb[0].mxu0
    %v2553 = vpop.f32.mrb[0].mxu0
    %v2554 = vpop.f32.mrb[0].mxu0
    %2555 = vdwg.mxu0
    %2556 = vrot.lane.b32.xlu0 %v1727, 40
    %v2557 = vpop.permute.xlu0 %2556
    %v2559 = vsel %vm391, %v2507, 0
    %v2562 = vsel %vm515, %v2557, 0
    %2564 = vmatprep.subr.bf16.mxu0 0
    %2565 = vmatpush1.bf16.msra.mxu0 %v2562
    %2566 = vmatprep.subr.bf16.mxu0 0
    %2567 = vmatpush1.bf16.msra.mxu0 0
    %2568 = vmatprep.subr.bf16.mxu0 0
    %2569 = vmatpush1.bf16.msra.mxu0 0
    %2570 = vmatprep.subr.bf16.mxu0 0
    %2571 = vmatpush1.bf16.msra.mxu0 0
    %2572 = vmatprep.subr.bf16.mxu0 0
    %2573 = vmatpush1.bf16.msra.mxu0 0
    %2574 = vmatprep.subr.bf16.mxu0 0
    %2575 = vmatpush1.bf16.msra.mxu0 0
    %2576 = vmatprep.subr.bf16.mxu0 0
    %2577 = vmatpush1.bf16.msra.mxu0 0
    %2578 = vmatprep.subr.bf16.mxu0 0
    %2579 = vmatpush1.bf16.msra.mxu0 0
    %2580 = vmatprep.subr.bf16.mxu0 0
    %2581 = vmatpush1.bf16.msra.mxu0 0
    %2582 = vmatprep.subr.bf16.mxu0 0
    %2583 = vmatpush1.bf16.msra.mxu0 0
    %2584 = vmatprep.subr.bf16.mxu0 0
    %2585 = vmatpush1.bf16.msra.mxu0 0
    %2586 = vmatprep.subr.bf16.mxu0 0
    %2587 = vmatpush1.bf16.msra.mxu0 0
    %2588 = vmatprep.subr.bf16.mxu0 0
    %2589 = vmatpush1.bf16.msra.mxu0 0
    %2590 = vmatprep.subr.bf16.mxu0 0
    %2591 = vmatpush1.bf16.msra.mxu0 0
    %2592 = vmatprep.subr.bf16.mxu0 0
    %2593 = vmatpush1.bf16.msra.mxu0 0
    %2594 = vmatprep.subr.bf16.mxu0 0
    %2595 = vmatpush1.bf16.msra.mxu0 0
    %2596 = vmatprep.mubr.bf16.mxu0 0
    %2597 = vmatmul.mubr.bf16.gmra.mrb[0].mxu0 %v2559
    %v2598 = vpop.f32.mrb[0].mxu0
    %v2599 = vadd.f32 0.0, %v2598
    %v2600 = vpop.f32.mrb[0].mxu0
    %v2601 = vpop.f32.mrb[0].mxu0
    %v2602 = vpop.f32.mrb[0].mxu0
    %2603 = vdwg.mxu0
    %2606 = vrot.lane.b32.xlu0 %v2111, 8
    %v2607 = vpop.permute.xlu0 %2606
    %2608 = vrot.lane.b32.xlu0 %v2159, 8
    %v2609 = vpop.permute.xlu0 %2608
    %2614 = vrot.lane.b32.xlu0 %v2331, 16
    %v2615 = vpop.permute.xlu0 %2614
    %2616 = vrot.lane.b32.xlu0 %v2379, 16
    %v2617 = vpop.permute.xlu0 %2616
    %2622 = vrot.lane.b32.xlu0 %v2551, 24
    %v2623 = vpop.permute.xlu0 %2622
    %2624 = vrot.lane.b32.xlu0 %v2599, 24
    %v2625 = vpop.permute.xlu0 %2624
    %v2628 = vsel %vm391, %v1891, %v2607
    %v2629 = vsel %vm391, %v1939, %v2609
    %v2630 = vsel %vm1293, %v2628, %v2615
    %v2631 = vsel %vm1293, %v2629, %v2617
    %v2632 = vsel %vm1296, %v2630, %v2623
    %v2633 = vsel %vm1296, %v2631, %v2625
    %v2634 = vpack.c.bf16 %v2633, %v2632
    %s2635 = scalar_lea.vmem %s8, 16
    %v2636 = vld [vmem:[%s2635] sm:$0xf]
    %v2637 = vld [vmem:[%s2635 + $0x4] sm:$0xf]
    %v2638 = vld [vmem:[%s2635 + $0x8] sm:$0xf]
    %v2639 = vld [vmem:[%s2635 + $0xc] sm:$0xf]
    %s2640 = scalar_lea.vmem %s9, 1
    %v2641 = vld [vmem:[%s2640] sm:$0x1]
    %v2643 = vlaneseq
    %v2644 = vshrl.u32 %v2643, 7
    %v2645 = vsub.s32 0, %v2644
    %v2646 = vrot.slane %v2641, %v2645
    %v2652 = vunpack.c.l.b16 %v2636
    %v2653 = vunpack.c.l.b16 %v2637
    %v2654 = vunpack.c.l.b16 %v2638
    %v2655 = vunpack.c.l.b16 %v2639
    %v2656 = vpack.c.b16 %v2653, %v2652
    %v2657 = vpack.c.b16 %v2655, %v2654
    %v2661 = vsel %vm278, %v2634, 0
    %2663 = vmatprep.subr.bf16.mxu0 0
    %2664 = vmatpush1.bf16.msra.mxu0 %v2656
    %2665 = vmatprep.subr.bf16.mxu0 0
    %2666 = vmatpush1.bf16.msra.mxu0 %v2657
    %2667 = vmatprep.subr.bf16.mxu0 0
    %2668 = vmatpush1.bf16.msra.mxu0 0
    %2669 = vmatprep.subr.bf16.mxu0 0
    %2670 = vmatpush1.bf16.msra.mxu0 0
    %2671 = vmatprep.subr.bf16.mxu0 0
    %2672 = vmatpush1.bf16.msra.mxu0 0
    %2673 = vmatprep.subr.bf16.mxu0 0
    %2674 = vmatpush1.bf16.msra.mxu0 0
    %2675 = vmatprep.subr.bf16.mxu0 0
    %2676 = vmatpush1.bf16.msra.mxu0 0
    %2677 = vmatprep.subr.bf16.mxu0 0
    %2678 = vmatpush1.bf16.msra.mxu0 0
    %2679 = vmatprep.subr.bf16.mxu0 0
    %2680 = vmatpush1.bf16.msra.mxu0 0
    %2681 = vmatprep.subr.bf16.mxu0 0
    %2682 = vmatpush1.bf16.msra.mxu0 0
    %2683 = vmatprep.subr.bf16.mxu0 0
    %2684 = vmatpush1.bf16.msra.mxu0 0
    %2685 = vmatprep.subr.bf16.mxu0 0
    %2686 = vmatpush1.bf16.msra.mxu0 0
    %2687 = vmatprep.subr.bf16.mxu0 0
    %2688 = vmatpush1.bf16.msra.mxu0 0
    %2689 = vmatprep.subr.bf16.mxu0 0
    %2690 = vmatpush1.bf16.msra.mxu0 0
    %2691 = vmatprep.subr.bf16.mxu0 0
    %2692 = vmatpush1.bf16.msra.mxu0 0
    %2693 = vmatprep.subr.bf16.mxu0 0
    %2694 = vmatpush1.bf16.msra.mxu0 0
    %2695 = vmatprep.mubr.bf16.mxu0 0
    %2696 = vmatmul.mubr.bf16.gmra.mrb[0].mxu0 %v2661
    %v2697 = vpop.f32.mrb[0].mxu0
    %v2698 = vadd.f32 %v2646, %v2697
    %v2699 = vpop.f32.mrb[0].mxu0
    %v2700 = vpop.f32.mrb[0].mxu0
    %v2701 = vadd.f32 %v2646, %v2700
    %v2702 = vpop.f32.mrb[0].mxu0
    %2703 = vdwg.mxu0
    %v2704 = vadd.f32 %v1612, %v2698
    %v2705 = vadd.f32 %v1613, %v2701
    %v2707 = vrot.slane %v2705, 7
    %vm2709 = vcmask 1040384
    %v2710 = vsel %vm2709, %v2704, %v2707
    %s2711 = scalar_lea.vmem %s10, 1
    %v2712 = vld [vmem:[%s2711] sm:$0x1]
    %s2713 = scalar_lea.vmem %s11, 1
    %v2714 = vld [vmem:[%s2713] sm:$0x1]
    %vm2715 = vcmask 254976
    %v2716 = vsel %vm2715, %v2710, 0.0
    %2717 = vadd.xlane.f32.xlu0 %v2716
    %v2718 = vpop.xlane.xlu0 %2717
    %v2719 = vmul.f32 %v2718, %v285
    %v2720 = vsub.f32 %v2710, %v2719
    %v2721 = vmul.f32 %v2720, %v2720
    %v2722 = vsel %vm2715, %v2721, 0.0
    %2723 = vadd.xlane.f32.xlu0 %v2722
    %v2724 = vpop.xlane.xlu0 %2723
    %v2725 = vmul.f32 %v2724, %v285
    %v2726 = vadd.f32 %v2725, 1e-05
    %v2727 = vrsqrt.pop %v2726
    %v2728 = vmul.f32 %v2720, %v2727
    %v2730 = vlaneseq
    %v2731 = vshrl.u32 %v2730, 7
    %v2732 = vsub.s32 0, %v2731
    %v2733 = vrot.slane %v2712, %v2732
    %v2735 = vmul.f32 %v2728, %v2733
    %v2737 = vlaneseq
    %v2738 = vshrl.u32 %v2737, 7
    %v2739 = vsub.s32 0, %v2738
    %v2740 = vrot.slane %v2714, %v2739
    %v2742 = vadd.f32 %v2735, %v2740
    %v2743 = vpack.c.bf16 %v2742, %v2742
    %s2744 = scalar_lea.vmem %s12, 16
    %v2745 = vld [vmem:[%s2744] sm:$0xf]
    %v2746 = vld [vmem:[%s2744 + $0x4] sm:$0xf]
    %v2747 = vld [vmem:[%s2744 + $0x8] sm:$0xf]
    %v2748 = vld [vmem:[%s2744 + $0xc] sm:$0xf]
    %s2749 = scalar_lea.vmem %s13, 1
    %v2750 = vld [vmem:[%s2749] sm:$0x1]
    %v2752 = vlaneseq
    %v2753 = vshrl.u32 %v2752, 7
    %v2754 = vsub.s32 0, %v2753
    %v2755 = vrot.slane %v2750, %v2754
    %v2761 = vunpack.c.l.b16 %v2745
    %v2762 = vunpack.c.l.b16 %v2746
    %v2763 = vunpack.c.l.b16 %v2747
    %v2764 = vunpack.c.l.b16 %v2748
    %v2765 = vpack.c.b16 %v2762, %v2761
    %v2766 = vpack.c.b16 %v2764, %v2763
    %v2770 = vsel %vm278, %v2743, 0
    %2772 = vmatprep.subr.bf16.mxu0 0
    %2773 = vmatpush1.bf16.msra.mxu0 %v2765
    %2774 = vmatprep.subr.bf16.mxu0 0
    %2775 = vmatpush1.bf16.msra.mxu0 %v2766
    %2776 = vmatprep.subr.bf16.mxu0 0
    %2777 = vmatpush1.bf16.msra.mxu0 0
    %2778 = vmatprep.subr.bf16.mxu0 0
    %2779 = vmatpush1.bf16.msra.mxu0 0
    %2780 = vmatprep.subr.bf16.mxu0 0
    %2781 = vmatpush1.bf16.msra.mxu0 0
    %2782 = vmatprep.subr.bf16.mxu0 0
    %2783 = vmatpush1.bf16.msra.mxu0 0
    %2784 = vmatprep.subr.bf16.mxu0 0
    %2785 = vmatpush1.bf16.msra.mxu0 0
    %2786 = vmatprep.subr.bf16.mxu0 0
    %2787 = vmatpush1.bf16.msra.mxu0 0
    %2788 = vmatprep.subr.bf16.mxu0 0
    %2789 = vmatpush1.bf16.msra.mxu0 0
    %2790 = vmatprep.subr.bf16.mxu0 0
    %2791 = vmatpush1.bf16.msra.mxu0 0
    %2792 = vmatprep.subr.bf16.mxu0 0
    %2793 = vmatpush1.bf16.msra.mxu0 0
    %2794 = vmatprep.subr.bf16.mxu0 0
    %2795 = vmatpush1.bf16.msra.mxu0 0
    %2796 = vmatprep.subr.bf16.mxu0 0
    %2797 = vmatpush1.bf16.msra.mxu0 0
    %2798 = vmatprep.subr.bf16.mxu0 0
    %2799 = vmatpush1.bf16.msra.mxu0 0
    %2800 = vmatprep.subr.bf16.mxu0 0
    %2801 = vmatpush1.bf16.msra.mxu0 0
    %2802 = vmatprep.subr.bf16.mxu0 0
    %2803 = vmatpush1.bf16.msra.mxu0 0
    %2804 = vmatprep.mubr.bf16.mxu0 0
    %2805 = vmatmul.mubr.bf16.gmra.mrb[0].mxu0 %v2770
    %v2806 = vpop.f32.mrb[0].mxu0
    %v2807 = vadd.f32 %v2755, %v2806
    %v2808 = vpop.f32.mrb[0].mxu0
    %v2809 = vpop.f32.mrb[0].mxu0
    %v2810 = vpop.f32.mrb[0].mxu0
    %2811 = vdwg.mxu0
    %v2812 = vmul.f32 %v2807, 0.5
    %v2813 = vmul.f32 %v2807, 0.044715
    %v2814 = vmul.f32 %v2813, %v2807
    %v2815 = vmul.f32 %v2814, %v2807
    %v2816 = vadd.f32 %v2807, %v2815
    %v2817 = vmul.f32 %v2816, 0.7978846
    %v2818 = vtanh.pop %v2817
    %v2819 = vadd.f32 %v2818, 1.0
    %v2820 = vmul.f32 %v2812, %v2819
    %v2821 = vpack.c.bf16 %v2820, %v2820
    %s2822 = scalar_lea.vmem %s14, 64
    %v2823 = vld [vmem:[%s2822] sm:$0xf]
    %v2824 = vld [vmem:[%s2822 + $0x4] sm:$0xf]
    %v2825 = vld [vmem:[%s2822 + $0x8] sm:$0xf]
    %v2826 = vld [vmem:[%s2822 + $0xc] sm:$0xf]
    %v2827 = vld [vmem:[%s2822 + $0x10] sm:$0xf]
    %v2828 = vld [vmem:[%s2822 + $0x14] sm:$0xf]
    %v2829 = vld [vmem:[%s2822 + $0x18] sm:$0xf]
    %v2830 = vld [vmem:[%s2822 + $0x1c] sm:$0xf]
    %v2831 = vld [vmem:[%s2822 + $0x20] sm:$0xf]
    %v2832 = vld [vmem:[%s2822 + $0x24] sm:$0xf]
    %v2833 = vld [vmem:[%s2822 + $0x28] sm:$0xf]
    %v2834 = vld [vmem:[%s2822 + $0x2c] sm:$0xf]
    %v2835 = vld [vmem:[%s2822 + $0x30] sm:$0xf]
    %v2836 = vld [vmem:[%s2822 + $0x34] sm:$0xf]
    %v2837 = vld [vmem:[%s2822 + $0x38] sm:$0xf]
    %v2838 = vld [vmem:[%s2822 + $0x3c] sm:$0xf]
    %s2839 = scalar_lea.vmem %s15, 1
    %v2840 = vld [vmem:[%s2839] sm:$0x1]
    %v2842 = vlaneseq
    %v2843 = vshrl.u32 %v2842, 7
    %v2844 = vsub.s32 0, %v2843
    %v2845 = vrot.slane %v2840, %v2844
    %v2863 = vunpack.c.l.b16 %v2823
    %v2864 = vunpack.c.l.b16 %v2824
    %v2865 = vunpack.c.l.b16 %v2825
    %v2866 = vunpack.c.l.b16 %v2826
    %v2867 = vunpack.c.l.b16 %v2827
    %v2868 = vunpack.c.l.b16 %v2828
    %v2869 = vunpack.c.l.b16 %v2829
    %v2870 = vunpack.c.l.b16 %v2830
    %v2871 = vunpack.c.l.b16 %v2831
    %v2872 = vunpack.c.l.b16 %v2832
    %v2873 = vunpack.c.l.b16 %v2833
    %v2874 = vunpack.c.l.b16 %v2834
    %v2875 = vunpack.c.l.b16 %v2835
    %v2876 = vunpack.c.l.b16 %v2836
    %v2877 = vunpack.c.l.b16 %v2837
    %v2878 = vunpack.c.l.b16 %v2838
    %v2879 = vpack.c.b16 %v2864, %v2863
    %v2880 = vpack.c.b16 %v2866, %v2865
    %v2881 = vpack.c.b16 %v2868, %v2867
    %v2882 = vpack.c.b16 %v2870, %v2869
    %v2883 = vpack.c.b16 %v2872, %v2871
    %v2884 = vpack.c.b16 %v2874, %v2873
    %v2885 = vpack.c.b16 %v2876, %v2875
    %v2886 = vpack.c.b16 %v2878, %v2877
    %2895 = vmatprep.subr.bf16.mxu0 0
    %2896 = vmatpush1.bf16.msra.mxu0 %v2879
    %2897 = vmatprep.subr.bf16.mxu0 0
    %2898 = vmatpush1.bf16.msra.mxu0 %v2880
    %2899 = vmatprep.subr.bf16.mxu0 0
    %2900 = vmatpush1.bf16.msra.mxu0 %v2881
    %2901 = vmatprep.subr.bf16.mxu0 0
    %2902 = vmatpush1.bf16.msra.mxu0 %v2882
    %2903 = vmatprep.subr.bf16.mxu0 0
    %2904 = vmatpush1.bf16.msra.mxu0 %v2883
    %2905 = vmatprep.subr.bf16.mxu0 0
    %2906 = vmatpush1.bf16.msra.mxu0 %v2884
    %2907 = vmatprep.subr.bf16.mxu0 0
    %2908 = vmatpush1.bf16.msra.mxu0 %v2885
    %2909 = vmatprep.subr.bf16.mxu0 0
    %2910 = vmatpush1.bf16.msra.mxu0 %v2886
    %2911 = vmatprep.subr.bf16.mxu0 0
    %2912 = vmatpush1.bf16.msra.mxu0 0
    %2913 = vmatprep.subr.bf16.mxu0 0
    %2914 = vmatpush1.bf16.msra.mxu0 0
    %2915 = vmatprep.subr.bf16.mxu0 0
    %2916 = vmatpush1.bf16.msra.mxu0 0
    %2917 = vmatprep.subr.bf16.mxu0 0
    %2918 = vmatpush1.bf16.msra.mxu0 0
    %2919 = vmatprep.subr.bf16.mxu0 0
    %2920 = vmatpush1.bf16.msra.mxu0 0
    %2921 = vmatprep.subr.bf16.mxu0 0
    %2922 = vmatpush1.bf16.msra.mxu0 0
    %2923 = vmatprep.subr.bf16.mxu0 0
    %2924 = vmatpush1.bf16.msra.mxu0 0
    %2925 = vmatprep.subr.bf16.mxu0 0
    %2926 = vmatpush1.bf16.msra.mxu0 0
    %2927 = vmatprep.mubr.bf16.mxu0 0
    %2928 = vmatmul.mubr.bf16.gmra.mrb[0].mxu0 %v2821
    %v2929 = vpop.f32.mrb[0].mxu0
    %v2930 = vadd.f32 %v2845, %v2929
    %v2931 = vpop.f32.mrb[0].mxu0
    %v2932 = vpop.f32.mrb[0].mxu0
    %v2933 = vpop.f32.mrb[0].mxu0
    %2934 = vdwg.mxu0
    %v2935 = vadd.f32 %v2742, %v2930
    %v2936 = vld [vmem:[%s16] sm:$0x1]
    %v2937 = vld [vmem:[%s17] sm:$0x1]
    %v2938 = vsel %vm2715, %v2935, 0.0
    %2939 = vadd.xlane.f32.xlu0 %v2938
    %v2940 = vpop.xlane.xlu0 %2939
    %v2941 = vmul.f32 %v2940, %v285
    %v2942 = vsub.f32 %v2935, %v2941
    %v2943 = vmul.f32 %v2942, %v2942
    %v2944 = vsel %vm2715, %v2943, 0.0
    %2945 = vadd.xlane.f32.xlu0 %v2944
    %v2946 = vpop.xlane.xlu0 %2945
    %v2947 = vmul.f32 %v2946, %v285
    %v2948 = vadd.f32 %v2947, 1e-05
    %v2949 = vrsqrt.pop %v2948
    %v2950 = vmul.f32 %v2942, %v2949
    %v2952 = vlaneseq
    %v2953 = vshrl.u32 %v2952, 7
    %v2954 = vsub.s32 0, %v2953
    %v2955 = vrot.slane %v2936, %v2954
    %v2957 = vmul.f32 %v2950, %v2955
    %v2959 = vlaneseq
    %v2960 = vshrl.u32 %v2959, 7
    %v2961 = vsub.s32 0, %v2960
    %v2962 = vrot.slane %v2937, %v2961
    %v2964 = vadd.f32 %v2957, %v2962
    %v2965 = vpack.c.bf16 %v2964, %v2964
    %v2966 = vld [vmem:[%s18] sm:$0xf]
    %v2967 = vld [vmem:[%s18 + $0x4] sm:$0xf]
    %v2968 = vld [vmem:[%s18 + $0x8] sm:$0xf]
    %v2969 = vld [vmem:[%s18 + $0xc] sm:$0xf]
    %v2970 = vld [vmem:[%s19] sm:$0x1]
    %v2972 = vlaneseq
    %v2973 = vshrl.u32 %v2972, 7
    %v2974 = vsub.s32 0, %v2973
    %v2975 = vrot.slane %v2970, %v2974
    %v2981 = vunpack.c.l.b16 %v2966
    %v2982 = vunpack.c.l.b16 %v2967
    %v2983 = vunpack.c.l.b16 %v2968
    %v2984 = vunpack.c.l.b16 %v2969
    %v2985 = vpack.c.b16 %v2982, %v2981
    %v2986 = vpack.c.b16 %v2984, %v2983
    %v2990 = vsel %vm278, %v2965, 0
    %2992 = vmatprep.subr.bf16.mxu0 0
    %2993 = vmatpush1.bf16.msra.mxu0 %v2985
    %2994 = vmatprep.subr.bf16.mxu0 0
    %2995 = vmatpush1.bf16.msra.mxu0 %v2986
    %2996 = vmatprep.subr.bf16.mxu0 0
    %2997 = vmatpush1.bf16.msra.mxu0 0
    %2998 = vmatprep.subr.bf16.mxu0 0
    %2999 = vmatpush1.bf16.msra.mxu0 0
    %3000 = vmatprep.subr.bf16.mxu0 0
    %3001 = vmatpush1.bf16.msra.mxu0 0
    %3002 = vmatprep.subr.bf16.mxu0 0
    %3003 = vmatpush1.bf16.msra.mxu0 0
    %3004 = vmatprep.subr.bf16.mxu0 0
    %3005 = vmatpush1.bf16.msra.mxu0 0
    %3006 = vmatprep.subr.bf16.mxu0 0
    %3007 = vmatpush1.bf16.msra.mxu0 0
    %3008 = vmatprep.subr.bf16.mxu0 0
    %3009 = vmatpush1.bf16.msra.mxu0 0
    %3010 = vmatprep.subr.bf16.mxu0 0
    %3011 = vmatpush1.bf16.msra.mxu0 0
    %3012 = vmatprep.subr.bf16.mxu0 0
    %3013 = vmatpush1.bf16.msra.mxu0 0
    %3014 = vmatprep.subr.bf16.mxu0 0
    %3015 = vmatpush1.bf16.msra.mxu0 0
    %3016 = vmatprep.subr.bf16.mxu0 0
    %3017 = vmatpush1.bf16.msra.mxu0 0
    %3018 = vmatprep.subr.bf16.mxu0 0
    %3019 = vmatpush1.bf16.msra.mxu0 0
    %3020 = vmatprep.subr.bf16.mxu0 0
    %3021 = vmatpush1.bf16.msra.mxu0 0
    %3022 = vmatprep.subr.bf16.mxu0 0
    %3023 = vmatpush1.bf16.msra.mxu0 0
    %3024 = vmatprep.mubr.bf16.mxu0 0
    %3025 = vmatmul.mubr.bf16.gmra.mrb[0].mxu0 %v2990
    %v3026 = vpop.f32.mrb[0].mxu0
    %v3027 = vadd.f32 %v2975, %v3026
    %v3028 = vpop.f32.mrb[0].mxu0
    %v3029 = vpop.f32.mrb[0].mxu0
    %v3030 = vpop.f32.mrb[0].mxu0
    %3031 = vdwg.mxu0
    %3032 = vst [vmem:[#allocation3] sm:$0x3] %v3027
    // Predicated region
    $region82: #{tpu_custom_call.1} parent=1 // pred_check
      _
    $region83: #{tpu_custom_call.1} parent=1 // pred_check_branch
      %3034 = sbr.rel (0) target = $region85
    $region84: #{tpu_custom_call.1} parent=1 // pred_region
      %s3036 = ssub.s32 32, 32
      %3037 = vsyncadd [#allocation4], %s3036
      %s3039 = sshll.u32 [#allocation3], 4
      %s3040 = int_to_ptr.vmem [resolvable:$true] %s3039
      %3042 = dma.vmem_to_hbm [thread:$0]  %s3040, 32, %s20, [#allocation4]
    $region85: #{tpu_custom_call.1} parent=1 // pred_fallthru
      _
    // Predicated region
    $region86: #{tpu_custom_call.1} parent=1 // pred_check
      _
    $region87: #{tpu_custom_call.1} parent=1 // pred_check_branch
      %3044 = sbr.rel (0) target = $region89
    $region88: #{tpu_custom_call.1} parent=1 // pred_region
      %3045 = dma.done [#allocation4], 32
    $region89: #{tpu_custom_call.1} parent=1 // pred_fallthru
      _
    %3046 = vsyncpa [#allocation4], 1

</llo_original>
